<compile_context>
chip_gen: v5e
topology: v5e:2x2
jax: 0.10.0
libtpu: 0.0.40
codegen_flags: <defaults>
</compile_context>

<pallas_src>
import jax
import jax.numpy as jnp
from jax import lax
from jax.experimental import pallas as pl
from jax.experimental.pallas import tpu as pltpu

NUM_LAYERS = 2          # torch.nn.RNN(128, 128, 2)
HIDDEN = 128            # args.hidden_units == rnn input/hidden size == 128
ROWS_PER_BLOCK = 64     # rows gathered per grid step (divides 2*B*L below)


# --------------------------------------------------------------------------
# Kernel 1: embedding gather with a VMEM-resident table.
#   idx_ref   : (N,) int32, scalar-prefetched into SMEM
#   table_ref : (2V, H) f32, whole table copied into VMEM once (small, frozen)
#   out_ref   : (ROWS_PER_BLOCK, H) f32 output tile for this grid step
# --------------------------------------------------------------------------
def gather_kernel(idx_ref, table_ref, out_ref):
    base = pl.program_id(0) * ROWS_PER_BLOCK
    for r in range(ROWS_PER_BLOCK):                    # static unroll
        row = idx_ref[base + r]                        # scalar from SMEM
        out_ref[pl.ds(r, 1), :] = table_ref[pl.ds(row, 1), :]   # in-VMEM row read


def pallas_embedding_gather(idx_flat, table):
    """rows[i] = table[idx_flat[i]] -- table resident in VMEM, no per-row DMA."""
    N = idx_flat.shape[0]
    _, H = table.shape
    n_blocks = pl.cdiv(N, ROWS_PER_BLOCK)
    n_pad = n_blocks * ROWS_PER_BLOCK
    idx_p = idx_flat.astype(jnp.int32)
    if n_pad != N:                                     # avoided when N divides
        idx_p = jnp.pad(idx_p, (0, n_pad - N))

    out = pl.pallas_call(
        gather_kernel,
        out_shape=jax.ShapeDtypeStruct((n_pad, H), table.dtype),
        grid_spec=pltpu.PrefetchScalarGridSpec(
            num_scalar_prefetch=1,
            grid=(n_blocks,),
            in_specs=[pl.BlockSpec(memory_space=pltpu.MemorySpace.VMEM)],  # whole table
            out_specs=pl.BlockSpec((ROWS_PER_BLOCK, H), lambda i, idx: (i, 0)),
        ),
        compiler_params=pltpu.CompilerParams(
            dimension_semantics=("parallel",)),        # independent blocks -> 2-TC on v7x
    )(idx_p, table)
    if n_pad != N:
        out = out[:N]
    return out


# --------------------------------------------------------------------------
# Kernel 2: 2-layer Elman RNN (tanh), PyTorch semantics, h_0 = 0:
#   h_t = tanh(x_t @ W_ih^T + b_ih + h_{t-1} @ W_hh^T + b_hh)
# Layer-0 pre-activations (x_t @ W_ih0^T + b0) arrive PRE-COMPUTED in pre0_ref
# (frozen embedding table), so only the recurrence lives in the kernel.
# Wavefront: layer-1 step t runs right after layer-0 emits h0[t]; hidden states
# are carried in registers (bf16 for the MXU, f32 written to out_ref).
# --------------------------------------------------------------------------
def rnn_kernel(pre0_ref, wih1_ref, whh_ref, b1_ref, out_ref):
    L, B, H = pre0_ref.shape
    whh0 = whh_ref[0]            # (H, H) bf16, loop-invariant
    whh1 = whh_ref[1]            # (H, H) bf16
    wih1 = wih1_ref[...]         # (H, H) bf16
    b1 = b1_ref[...]             # (1, H) f32

    # t = 0: h_{-1} = 0, so the h @ W_hh terms are exactly zero -> skip them.
    h0 = jnp.tanh(pre0_ref[0])
    h0_b = h0.astype(jnp.bfloat16)
    h1 = jnp.tanh(jnp.dot(h0_b, wih1, preferred_element_type=jnp.float32) + b1)
    h1_b = h1.astype(jnp.bfloat16)
    out_ref[0] = h1

    for t in range(1, L):        # static unroll; LLO overlaps the 3 tiny matmuls
        h0 = jnp.tanh(pre0_ref[t]
                      + jnp.dot(h0_b, whh0, preferred_element_type=jnp.float32))
        h0_b = h0.astype(jnp.bfloat16)
        h1 = jnp.tanh(jnp.dot(h0_b, wih1, preferred_element_type=jnp.float32) + b1
                      + jnp.dot(h1_b, whh1, preferred_element_type=jnp.float32))
        h1_b = h1.astype(jnp.bfloat16)
        out_ref[t] = h1


def pallas_rnn(pre0_tm, wih1_t, whh_t, b1):
    L, B, H = pre0_tm.shape
    return pl.pallas_call(
        rnn_kernel,
        out_shape=jax.ShapeDtypeStruct((L, B, H), jnp.float32),
        in_specs=[pl.BlockSpec(memory_space=pltpu.MemorySpace.VMEM)] * 4,
        out_specs=pl.BlockSpec(memory_space=pltpu.MemorySpace.VMEM),
        compiler_params=pltpu.CompilerParams(vmem_limit_bytes=32 * 1024 * 1024),
    )(pre0_tm.astype(jnp.float32),
      wih1_t.astype(jnp.bfloat16),
      whh_t.astype(jnp.bfloat16),
      b1.astype(jnp.float32))


# --------------------------------------------------------------------------
# SASRec.forward wrapper (glue: index packing / reshapes)
# --------------------------------------------------------------------------
def sasrec_forward(params, user_ids, log_seqs, pos_seqs, neg_seqs):
    del user_ids, neg_seqs                 # unused by the reference forward()
    gather_table = params["gather_table"]  # (2V, H): [0,V)=proj0, [V,2V)=emb
    V = gather_table.shape[0] // 2
    B, L = log_seqs.shape
    H = gather_table.shape[1]
    BL = B * L

    # One fused gather for both streams.  log_seqs is flattened time-major and
    # points into the precomputed layer-0 pre-activation half of the table, so
    # its gathered rows are directly the (L, B, H) RNN layer-0 pre-activations.
    idx = jnp.concatenate([
        jnp.transpose(log_seqs).reshape(-1),        # (L*B,) -> proj0 rows
        pos_seqs.reshape(-1) + V,                   # (B*L,) -> raw emb rows
    ]).astype(jnp.int32)
    rows = pallas_embedding_gather(idx, gather_table)   # (2*B*L, H)

    pre0_tm = rows[:BL].reshape(L, B, H)            # layer-0 pre-activations
    pos_out = rows[BL:].reshape(B, L, H)            # item_emb(pos_seqs), exact

    out_tm = pallas_rnn(pre0_tm, params["wih1_t"], params["whh_t"], params["b1"])
    seqs_out = jnp.transpose(out_tm, (1, 0, 2))     # (B, L, H)
    return seqs_out, pos_out


def init_params(key, item_num, hidden=HIDDEN):
    V = item_num + 1
    ks = jax.random.split(key, 3 + 4 * NUM_LAYERS)
    # __init__: e1 ~ N(0, 0.1) (the .tsv file read is not reproducible in-script),
    # embs = Linear(768 -> hidden)(e1); the embedding table is frozen.
    e1 = 0.1 * jax.random.normal(ks[0], (V, 768), jnp.float32)
    w_lin = (jax.random.uniform(ks[1], (hidden, 768), jnp.float32) - 0.5) * 2 / jnp.sqrt(768.0)
    b_lin = (jax.random.uniform(ks[2], (hidden,), jnp.float32) - 0.5) * 2 / jnp.sqrt(768.0)
    emb_table = e1 @ w_lin.T + b_lin                      # (V, hidden), frozen

    bound = 1.0 / jnp.sqrt(jnp.float32(hidden))
    w_ih, w_hh, b_ih, b_hh = [], [], [], []
    for l in range(NUM_LAYERS):
        k0, k1, k2, k3 = ks[3 + 4 * l: 7 + 4 * l]
        w_ih.append((jax.random.uniform(k0, (hidden, hidden), jnp.float32) - 0.5) * 2 * bound)
        w_hh.append((jax.random.uniform(k1, (hidden, hidden), jnp.float32) - 0.5) * 2 * bound)
        b_ih.append((jax.random.uniform(k2, (hidden,), jnp.float32) - 0.5) * 2 * bound)
        b_hh.append((jax.random.uniform(k3, (hidden,), jnp.float32) - 0.5) * 2 * bound)

    # Frozen embedding -> precompute layer-0 pre-activation table in f32 (one-time).
    proj0 = emb_table @ w_ih[0].T + (b_ih[0] + b_hh[0])   # (V, hidden)
    gather_table = jnp.concatenate([proj0, emb_table], axis=0)   # (2V, hidden)

    params = {
        "gather_table": gather_table,
        # pre-transposed so the kernel computes x @ W == x @ W_orig^T
        "wih1_t": w_ih[1].T,                              # (H, H)
        "whh_t": jnp.stack([w.T for w in w_hh]),          # (2, H, H)
        "b1": (b_ih[1] + b_hh[1]).reshape(1, hidden),     # (1, H)
    }
    raw = {"w_ih": w_ih, "w_hh": w_hh, "b_ih": b_ih, "b_hh": b_hh,
           "emb_table": emb_table}
    return params, raw


# --------------------------------------------------------------------------
# References (plain JAX)
# --------------------------------------------------------------------------
def rnn_reference_f32(x_tm, raw):
    """Pure-f32 torch.nn.RNN(128,128,2) forward (tanh), time-major in/out."""
    out = x_tm
    B = x_tm.shape[1]
    for l in range(NUM_LAYERS):
        w_ih_t = raw["w_ih"][l].T
        w_hh_t = raw["w_hh"][l].T
        b = raw["b_ih"][l] + raw["b_hh"][l]

        def step(h, x_t, w_ih_t=w_ih_t, w_hh_t=w_hh_t, b=b):
            h_new = jnp.tanh(x_t @ w_ih_t + h @ w_hh_t + b)
            return h_new, h_new

        _, out = lax.scan(step, jnp.zeros((B, HIDDEN), jnp.float32), out)
    return out


def rnn_reference_mixed(pre0_tm, raw):
    """Mirrors kernel numerics: f32 precomputed layer-0 pre-activations,
    bf16 MXU inputs elsewhere, f32 accumulation."""
    L, B, H = pre0_tm.shape
    whh0 = raw["w_hh"][0].astype(jnp.bfloat16).T
    wih1 = raw["w_ih"][1].astype(jnp.bfloat16).T
    whh1 = raw["w_hh"][1].astype(jnp.bfloat16).T
    b1 = raw["b_ih"][1] + raw["b_hh"][1]
    h0_b = jnp.zeros((B, H), jnp.bfloat16)
    h1_b = jnp.zeros((B, H), jnp.bfloat16)
    outs = []
    for t in range(L):
        h0 = jnp.tanh(pre0_tm[t]
                      + jnp.dot(h0_b, whh0, preferred_element_type=jnp.float32))
        h0_b = h0.astype(jnp.bfloat16)
        h1 = jnp.tanh(jnp.dot(h0_b, wih1, preferred_element_type=jnp.float32) + b1
                      + jnp.dot(h1_b, whh1, preferred_element_type=jnp.float32))
        h1_b = h1.astype(jnp.bfloat16)
        outs.append(h1)
    return jnp.stack(outs)


if __name__ == "__main__":
    item_num = 999            # V = 1000 rows; [proj0 ; emb] table = 1 MB in VMEM
    B, L = 8, 16              # batch, maxlen (small); 2*B*L = 256 = 4 * ROWS_PER_BLOCK

    root = jax.random.PRNGKey(0)
    kp, k1, k2, k3 = jax.random.split(root, 4)
    params, raw = init_params(kp, item_num)

    user_ids = jnp.arange(B, dtype=jnp.int32)
    log_seqs = jax.random.randint(k1, (B, L), 0, item_num + 1, dtype=jnp.int32)
    pos_seqs = jax.random.randint(k2, (B, L), 0, item_num + 1, dtype=jnp.int32)
    neg_seqs = jax.random.randint(k3, (B, L), 0, item_num + 1, dtype=jnp.int32)

    fwd = jax.jit(sasrec_forward)
    seqs_out, pos_out = fwd(params, user_ids, log_seqs, pos_seqs, neg_seqs)
    jax.block_until_ready((seqs_out, pos_out))

    assert seqs_out.shape == (B, L, HIDDEN) and pos_out.shape == (B, L, HIDDEN)

    # pos_out is a pure row gather of the frozen embedding table -> exact.
    pos_ref = jnp.take(raw["emb_table"], pos_seqs, axis=0)
    assert jnp.allclose(pos_out, pos_ref, rtol=0, atol=1e-6)

    # RNN: tight check against a reference that mirrors the kernel numerics, and
    # loose check against the pure-f32 PyTorch-equivalent RNN (bf16 recurrence
    # rounding accumulates ~1e-3..1e-2 at these magnitudes / L=16).
    V = item_num + 1
    pre0_tm_ref = jnp.take(params["gather_table"][:V], jnp.transpose(log_seqs), axis=0)
    ref_mixed = jnp.transpose(rnn_reference_mixed(pre0_tm_ref, raw), (1, 0, 2))
    x_tm_ref = jnp.transpose(jnp.take(raw["emb_table"], log_seqs, axis=0), (1, 0, 2))
    ref_f32 = jnp.transpose(rnn_reference_f32(x_tm_ref, raw), (1, 0, 2))
    assert jnp.allclose(seqs_out, ref_mixed, rtol=5e-3, atol=5e-3)
    assert jnp.allclose(seqs_out, ref_f32, rtol=2e-2, atol=2e-2)

    print("KERNEL_OK")
</pallas_src>

<mosaic_0001>
module attributes {stable_mosaic.version = 11 : i64} {
  func.func @gather_kernel(%arg0: i32, %arg1: memref<256xi32, #tpu.memory_space<smem>>, %arg2: memref<2000x128xf32, #tpu.memory_space<vmem>>, %arg3: memref<64x128xf32, #tpu.memory_space<vmem>>) attributes {dimension_semantics = [#tpu.dimension_semantics<parallel>], iteration_bounds = array<i64: 4>, scalar_prefetch = 1 : i64, scratch_operands = 0 : i64, tpu.core_type = #tpu.core_type<tc>, window_params = [{pipeline_mode = #tpu.pipeline_mode<synchronous>, transform_indices = @transform_0, window_bounds = array<i64: 2000, 128>}, {transform_indices = @transform_1, window_bounds = array<i64: 64, 128>}]} {
    %c64_i32 = arith.constant 64 : i32
    %0 = arith.muli %arg0, %c64_i32 : i32
    %c0_i32 = arith.constant 0 : i32
    %1 = arith.addi %0, %c0_i32 : i32
    %2 = arith.index_cast %1 : i32 to index
    %3 = memref.load %arg1[%2] : memref<256xi32, #tpu.memory_space<smem>>
    %4 = arith.index_cast %3 : i32 to index
    %c0 = arith.constant 0 : index
    %5 = vector.load %arg2[%4, %c0] : memref<2000x128xf32, #tpu.memory_space<vmem>>, vector<1x128xf32>
    %c0_0 = arith.constant 0 : index
    %c0_1 = arith.constant 0 : index
    %6 = vector.load %arg3[%c0_0, %c0_1] : memref<64x128xf32, #tpu.memory_space<vmem>>, vector<1x128xf32>
    tpu.vector_store %arg3[%c0_0, %c0_1], %5 {strides = array<i32>} : memref<64x128xf32, #tpu.memory_space<vmem>>, vector<1x128xf32>,
    %c1_i32 = arith.constant 1 : i32
    %7 = arith.addi %0, %c1_i32 : i32
    %8 = arith.index_cast %7 : i32 to index
    %9 = memref.load %arg1[%8] : memref<256xi32, #tpu.memory_space<smem>>
    %10 = arith.index_cast %9 : i32 to index
    %c0_2 = arith.constant 0 : index
    %11 = vector.load %arg2[%10, %c0_2] : memref<2000x128xf32, #tpu.memory_space<vmem>>, vector<1x128xf32>
    %c1 = arith.constant 1 : index
    %c0_3 = arith.constant 0 : index
    %12 = vector.load %arg3[%c1, %c0_3] : memref<64x128xf32, #tpu.memory_space<vmem>>, vector<1x128xf32>
    tpu.vector_store %arg3[%c1, %c0_3], %11 {strides = array<i32>} : memref<64x128xf32, #tpu.memory_space<vmem>>, vector<1x128xf32>,
    %c2_i32 = arith.constant 2 : i32
    %13 = arith.addi %0, %c2_i32 : i32
    %14 = arith.index_cast %13 : i32 to index
    %15 = memref.load %arg1[%14] : memref<256xi32, #tpu.memory_space<smem>>
    %16 = arith.index_cast %15 : i32 to index
    %c0_4 = arith.constant 0 : index
    %17 = vector.load %arg2[%16, %c0_4] : memref<2000x128xf32, #tpu.memory_space<vmem>>, vector<1x128xf32>
    %c2 = arith.constant 2 : index
    %c0_5 = arith.constant 0 : index
    %18 = vector.load %arg3[%c2, %c0_5] : memref<64x128xf32, #tpu.memory_space<vmem>>, vector<1x128xf32>
    tpu.vector_store %arg3[%c2, %c0_5], %17 {strides = array<i32>} : memref<64x128xf32, #tpu.memory_space<vmem>>, vector<1x128xf32>,
    %c3_i32 = arith.constant 3 : i32
    %19 = arith.addi %0, %c3_i32 : i32
    %20 = arith.index_cast %19 : i32 to index
    %21 = memref.load %arg1[%20] : memref<256xi32, #tpu.memory_space<smem>>
    %22 = arith.index_cast %21 : i32 to index
    %c0_6 = arith.constant 0 : index
    %23 = vector.load %arg2[%22, %c0_6] : memref<2000x128xf32, #tpu.memory_space<vmem>>, vector<1x128xf32>
    %c3 = arith.constant 3 : index
    %c0_7 = arith.constant 0 : index
    %24 = vector.load %arg3[%c3, %c0_7] : memref<64x128xf32, #tpu.memory_space<vmem>>, vector<1x128xf32>
    tpu.vector_store %arg3[%c3, %c0_7], %23 {strides = array<i32>} : memref<64x128xf32, #tpu.memory_space<vmem>>, vector<1x128xf32>,
    %c4_i32 = arith.constant 4 : i32
    %25 = arith.addi %0, %c4_i32 : i32
    %26 = arith.index_cast %25 : i32 to index
    %27 = memref.load %arg1[%26] : memref<256xi32, #tpu.memory_space<smem>>
    %28 = arith.index_cast %27 : i32 to index
    %c0_8 = arith.constant 0 : index
    %29 = vector.load %arg2[%28, %c0_8] : memref<2000x128xf32, #tpu.memory_space<vmem>>, vector<1x128xf32>
    %c4 = arith.constant 4 : index
    %c0_9 = arith.constant 0 : index
    %30 = vector.load %arg3[%c4, %c0_9] : memref<64x128xf32, #tpu.memory_space<vmem>>, vector<1x128xf32>
    tpu.vector_store %arg3[%c4, %c0_9], %29 {strides = array<i32>} : memref<64x128xf32, #tpu.memory_space<vmem>>, vector<1x128xf32>,
    %c5_i32 = arith.constant 5 : i32
    %31 = arith.addi %0, %c5_i32 : i32
    %32 = arith.index_cast %31 : i32 to index
    %33 = memref.load %arg1[%32] : memref<256xi32, #tpu.memory_space<smem>>
    %34 = arith.index_cast %33 : i32 to index
    %c0_10 = arith.constant 0 : index
    %35 = vector.load %arg2[%34, %c0_10] : memref<2000x128xf32, #tpu.memory_space<vmem>>, vector<1x128xf32>
    %c5 = arith.constant 5 : index
    %c0_11 = arith.constant 0 : index
    %36 = vector.load %arg3[%c5, %c0_11] : memref<64x128xf32, #tpu.memory_space<vmem>>, vector<1x128xf32>
    tpu.vector_store %arg3[%c5, %c0_11], %35 {strides = array<i32>} : memref<64x128xf32, #tpu.memory_space<vmem>>, vector<1x128xf32>,
    %c6_i32 = arith.constant 6 : i32
    %37 = arith.addi %0, %c6_i32 : i32
    %38 = arith.index_cast %37 : i32 to index
    %39 = memref.load %arg1[%38] : memref<256xi32, #tpu.memory_space<smem>>
    %40 = arith.index_cast %39 : i32 to index
    %c0_12 = arith.constant 0 : index
    %41 = vector.load %arg2[%40, %c0_12] : memref<2000x128xf32, #tpu.memory_space<vmem>>, vector<1x128xf32>
    %c6 = arith.constant 6 : index
    %c0_13 = arith.constant 0 : index
    %42 = vector.load %arg3[%c6, %c0_13] : memref<64x128xf32, #tpu.memory_space<vmem>>, vector<1x128xf32>
    tpu.vector_store %arg3[%c6, %c0_13], %41 {strides = array<i32>} : memref<64x128xf32, #tpu.memory_space<vmem>>, vector<1x128xf32>,
    %c7_i32 = arith.constant 7 : i32
    %43 = arith.addi %0, %c7_i32 : i32
    %44 = arith.index_cast %43 : i32 to index
    %45 = memref.load %arg1[%44] : memref<256xi32, #tpu.memory_space<smem>>
    %46 = arith.index_cast %45 : i32 to index
    %c0_14 = arith.constant 0 : index
    %47 = vector.load %arg2[%46, %c0_14] : memref<2000x128xf32, #tpu.memory_space<vmem>>, vector<1x128xf32>
    %c7 = arith.constant 7 : index
    %c0_15 = arith.constant 0 : index
    %48 = vector.load %arg3[%c7, %c0_15] : memref<64x128xf32, #tpu.memory_space<vmem>>, vector<1x128xf32>
    tpu.vector_store %arg3[%c7, %c0_15], %47 {strides = array<i32>} : memref<64x128xf32, #tpu.memory_space<vmem>>, vector<1x128xf32>,
    %c8_i32 = arith.constant 8 : i32
    %49 = arith.addi %0, %c8_i32 : i32
    %50 = arith.index_cast %49 : i32 to index
    %51 = memref.load %arg1[%50] : memref<256xi32, #tpu.memory_space<smem>>
    %52 = arith.index_cast %51 : i32 to index
    %c0_16 = arith.constant 0 : index
    %53 = vector.load %arg2[%52, %c0_16] : memref<2000x128xf32, #tpu.memory_space<vmem>>, vector<1x128xf32>
    %c8 = arith.constant 8 : index
    %c0_17 = arith.constant 0 : index
    %54 = vector.load %arg3[%c8, %c0_17] : memref<64x128xf32, #tpu.memory_space<vmem>>, vector<1x128xf32>
    tpu.vector_store %arg3[%c8, %c0_17], %53 {strides = array<i32>} : memref<64x128xf32, #tpu.memory_space<vmem>>, vector<1x128xf32>,
    %c9_i32 = arith.constant 9 : i32
    %55 = arith.addi %0, %c9_i32 : i32
    %56 = arith.index_cast %55 : i32 to index
    %57 = memref.load %arg1[%56] : memref<256xi32, #tpu.memory_space<smem>>
    %58 = arith.index_cast %57 : i32 to index
    %c0_18 = arith.constant 0 : index
    %59 = vector.load %arg2[%58, %c0_18] : memref<2000x128xf32, #tpu.memory_space<vmem>>, vector<1x128xf32>
    %c9 = arith.constant 9 : index
    %c0_19 = arith.constant 0 : index
    %60 = vector.load %arg3[%c9, %c0_19] : memref<64x128xf32, #tpu.memory_space<vmem>>, vector<1x128xf32>
    tpu.vector_store %arg3[%c9, %c0_19], %59 {strides = array<i32>} : memref<64x128xf32, #tpu.memory_space<vmem>>, vector<1x128xf32>,
    %c10_i32 = arith.constant 10 : i32
    %61 = arith.addi %0, %c10_i32 : i32
    %62 = arith.index_cast %61 : i32 to index
    %63 = memref.load %arg1[%62] : memref<256xi32, #tpu.memory_space<smem>>
    %64 = arith.index_cast %63 : i32 to index
    %c0_20 = arith.constant 0 : index
    %65 = vector.load %arg2[%64, %c0_20] : memref<2000x128xf32, #tpu.memory_space<vmem>>, vector<1x128xf32>
    %c10 = arith.constant 10 : index
    %c0_21 = arith.constant 0 : index
    %66 = vector.load %arg3[%c10, %c0_21] : memref<64x128xf32, #tpu.memory_space<vmem>>, vector<1x128xf32>
    tpu.vector_store %arg3[%c10, %c0_21], %65 {strides = array<i32>} : memref<64x128xf32, #tpu.memory_space<vmem>>, vector<1x128xf32>,
    %c11_i32 = arith.constant 11 : i32
    %67 = arith.addi %0, %c11_i32 : i32
    %68 = arith.index_cast %67 : i32 to index
    %69 = memref.load %arg1[%68] : memref<256xi32, #tpu.memory_space<smem>>
    %70 = arith.index_cast %69 : i32 to index
    %c0_22 = arith.constant 0 : index
    %71 = vector.load %arg2[%70, %c0_22] : memref<2000x128xf32, #tpu.memory_space<vmem>>, vector<1x128xf32>
    %c11 = arith.constant 11 : index
    %c0_23 = arith.constant 0 : index
    %72 = vector.load %arg3[%c11, %c0_23] : memref<64x128xf32, #tpu.memory_space<vmem>>, vector<1x128xf32>
    tpu.vector_store %arg3[%c11, %c0_23], %71 {strides = array<i32>} : memref<64x128xf32, #tpu.memory_space<vmem>>, vector<1x128xf32>,
    %c12_i32 = arith.constant 12 : i32
    %73 = arith.addi %0, %c12_i32 : i32
    %74 = arith.index_cast %73 : i32 to index
    %75 = memref.load %arg1[%74] : memref<256xi32, #tpu.memory_space<smem>>
    %76 = arith.index_cast %75 : i32 to index
    %c0_24 = arith.constant 0 : index
    %77 = vector.load %arg2[%76, %c0_24] : memref<2000x128xf32, #tpu.memory_space<vmem>>, vector<1x128xf32>
    %c12 = arith.constant 12 : index
    %c0_25 = arith.constant 0 : index
    %78 = vector.load %arg3[%c12, %c0_25] : memref<64x128xf32, #tpu.memory_space<vmem>>, vector<1x128xf32>
    tpu.vector_store %arg3[%c12, %c0_25], %77 {strides = array<i32>} : memref<64x128xf32, #tpu.memory_space<vmem>>, vector<1x128xf32>,
    %c13_i32 = arith.constant 13 : i32
    %79 = arith.addi %0, %c13_i32 : i32
    %80 = arith.index_cast %79 : i32 to index
    %81 = memref.load %arg1[%80] : memref<256xi32, #tpu.memory_space<smem>>
    %82 = arith.index_cast %81 : i32 to index
    %c0_26 = arith.constant 0 : index
    %83 = vector.load %arg2[%82, %c0_26] : memref<2000x128xf32, #tpu.memory_space<vmem>>, vector<1x128xf32>
    %c13 = arith.constant 13 : index
    %c0_27 = arith.constant 0 : index
    %84 = vector.load %arg3[%c13, %c0_27] : memref<64x128xf32, #tpu.memory_space<vmem>>, vector<1x128xf32>
    tpu.vector_store %arg3[%c13, %c0_27], %83 {strides = array<i32>} : memref<64x128xf32, #tpu.memory_space<vmem>>, vector<1x128xf32>,
    %c14_i32 = arith.constant 14 : i32
    %85 = arith.addi %0, %c14_i32 : i32
    %86 = arith.index_cast %85 : i32 to index
    %87 = memref.load %arg1[%86] : memref<256xi32, #tpu.memory_space<smem>>
    %88 = arith.index_cast %87 : i32 to index
    %c0_28 = arith.constant 0 : index
    %89 = vector.load %arg2[%88, %c0_28] : memref<2000x128xf32, #tpu.memory_space<vmem>>, vector<1x128xf32>
    %c14 = arith.constant 14 : index
    %c0_29 = arith.constant 0 : index
    %90 = vector.load %arg3[%c14, %c0_29] : memref<64x128xf32, #tpu.memory_space<vmem>>, vector<1x128xf32>
    tpu.vector_store %arg3[%c14, %c0_29], %89 {strides = array<i32>} : memref<64x128xf32, #tpu.memory_space<vmem>>, vector<1x128xf32>,
    %c15_i32 = arith.constant 15 : i32
    %91 = arith.addi %0, %c15_i32 : i32
    %92 = arith.index_cast %91 : i32 to index
    %93 = memref.load %arg1[%92] : memref<256xi32, #tpu.memory_space<smem>>
    %94 = arith.index_cast %93 : i32 to index
    %c0_30 = arith.constant 0 : index
    %95 = vector.load %arg2[%94, %c0_30] : memref<2000x128xf32, #tpu.memory_space<vmem>>, vector<1x128xf32>
    %c15 = arith.constant 15 : index
    %c0_31 = arith.constant 0 : index
    %96 = vector.load %arg3[%c15, %c0_31] : memref<64x128xf32, #tpu.memory_space<vmem>>, vector<1x128xf32>
    tpu.vector_store %arg3[%c15, %c0_31], %95 {strides = array<i32>} : memref<64x128xf32, #tpu.memory_space<vmem>>, vector<1x128xf32>,
    %c16_i32 = arith.constant 16 : i32
    %97 = arith.addi %0, %c16_i32 : i32
    %98 = arith.index_cast %97 : i32 to index
    %99 = memref.load %arg1[%98] : memref<256xi32, #tpu.memory_space<smem>>
    %100 = arith.index_cast %99 : i32 to index
    %c0_32 = arith.constant 0 : index
    %101 = vector.load %arg2[%100, %c0_32] : memref<2000x128xf32, #tpu.memory_space<vmem>>, vector<1x128xf32>
    %c16 = arith.constant 16 : index
    %c0_33 = arith.constant 0 : index
    %102 = vector.load %arg3[%c16, %c0_33] : memref<64x128xf32, #tpu.memory_space<vmem>>, vector<1x128xf32>
    tpu.vector_store %arg3[%c16, %c0_33], %101 {strides = array<i32>} : memref<64x128xf32, #tpu.memory_space<vmem>>, vector<1x128xf32>,
    %c17_i32 = arith.constant 17 : i32
    %103 = arith.addi %0, %c17_i32 : i32
    %104 = arith.index_cast %103 : i32 to index
    %105 = memref.load %arg1[%104] : memref<256xi32, #tpu.memory_space<smem>>
    %106 = arith.index_cast %105 : i32 to index
    %c0_34 = arith.constant 0 : index
    %107 = vector.load %arg2[%106, %c0_34] : memref<2000x128xf32, #tpu.memory_space<vmem>>, vector<1x128xf32>
    %c17 = arith.constant 17 : index
    %c0_35 = arith.constant 0 : index
    %108 = vector.load %arg3[%c17, %c0_35] : memref<64x128xf32, #tpu.memory_space<vmem>>, vector<1x128xf32>
    tpu.vector_store %arg3[%c17, %c0_35], %107 {strides = array<i32>} : memref<64x128xf32, #tpu.memory_space<vmem>>, vector<1x128xf32>,
    %c18_i32 = arith.constant 18 : i32
    %109 = arith.addi %0, %c18_i32 : i32
    %110 = arith.index_cast %109 : i32 to index
    %111 = memref.load %arg1[%110] : memref<256xi32, #tpu.memory_space<smem>>
    %112 = arith.index_cast %111 : i32 to index
    %c0_36 = arith.constant 0 : index
    %113 = vector.load %arg2[%112, %c0_36] : memref<2000x128xf32, #tpu.memory_space<vmem>>, vector<1x128xf32>
    %c18 = arith.constant 18 : index
    %c0_37 = arith.constant 0 : index
    %114 = vector.load %arg3[%c18, %c0_37] : memref<64x128xf32, #tpu.memory_space<vmem>>, vector<1x128xf32>
    tpu.vector_store %arg3[%c18, %c0_37], %113 {strides = array<i32>} : memref<64x128xf32, #tpu.memory_space<vmem>>, vector<1x128xf32>,
    %c19_i32 = arith.constant 19 : i32
    %115 = arith.addi %0, %c19_i32 : i32
    %116 = arith.index_cast %115 : i32 to index
    %117 = memref.load %arg1[%116] : memref<256xi32, #tpu.memory_space<smem>>
    %118 = arith.index_cast %117 : i32 to index
    %c0_38 = arith.constant 0 : index
    %119 = vector.load %arg2[%118, %c0_38] : memref<2000x128xf32, #tpu.memory_space<vmem>>, vector<1x128xf32>
    %c19 = arith.constant 19 : index
    %c0_39 = arith.constant 0 : index
    %120 = vector.load %arg3[%c19, %c0_39] : memref<64x128xf32, #tpu.memory_space<vmem>>, vector<1x128xf32>
    tpu.vector_store %arg3[%c19, %c0_39], %119 {strides = array<i32>} : memref<64x128xf32, #tpu.memory_space<vmem>>, vector<1x128xf32>,
    %c20_i32 = arith.constant 20 : i32
    %121 = arith.addi %0, %c20_i32 : i32
    %122 = arith.index_cast %121 : i32 to index
    %123 = memref.load %arg1[%122] : memref<256xi32, #tpu.memory_space<smem>>
    %124 = arith.index_cast %123 : i32 to index
    %c0_40 = arith.constant 0 : index
    %125 = vector.load %arg2[%124, %c0_40] : memref<2000x128xf32, #tpu.memory_space<vmem>>, vector<1x128xf32>
    %c20 = arith.constant 20 : index
    %c0_41 = arith.constant 0 : index
    %126 = vector.load %arg3[%c20, %c0_41] : memref<64x128xf32, #tpu.memory_space<vmem>>, vector<1x128xf32>
    tpu.vector_store %arg3[%c20, %c0_41], %125 {strides = array<i32>} : memref<64x128xf32, #tpu.memory_space<vmem>>, vector<1x128xf32>,
    %c21_i32 = arith.constant 21 : i32
    %127 = arith.addi %0, %c21_i32 : i32
    %128 = arith.index_cast %127 : i32 to index
    %129 = memref.load %arg1[%128] : memref<256xi32, #tpu.memory_space<smem>>
    %130 = arith.index_cast %129 : i32 to index
    %c0_42 = arith.constant 0 : index
    %131 = vector.load %arg2[%130, %c0_42] : memref<2000x128xf32, #tpu.memory_space<vmem>>, vector<1x128xf32>
    %c21 = arith.constant 21 : index
    %c0_43 = arith.constant 0 : index
    %132 = vector.load %arg3[%c21, %c0_43] : memref<64x128xf32, #tpu.memory_space<vmem>>, vector<1x128xf32>
    tpu.vector_store %arg3[%c21, %c0_43], %131 {strides = array<i32>} : memref<64x128xf32, #tpu.memory_space<vmem>>, vector<1x128xf32>,
    %c22_i32 = arith.constant 22 : i32
    %133 = arith.addi %0, %c22_i32 : i32
    %134 = arith.index_cast %133 : i32 to index
    %135 = memref.load %arg1[%134] : memref<256xi32, #tpu.memory_space<smem>>
    %136 = arith.index_cast %135 : i32 to index
    %c0_44 = arith.constant 0 : index
    %137 = vector.load %arg2[%136, %c0_44] : memref<2000x128xf32, #tpu.memory_space<vmem>>, vector<1x128xf32>
    %c22 = arith.constant 22 : index
    %c0_45 = arith.constant 0 : index
    %138 = vector.load %arg3[%c22, %c0_45] : memref<64x128xf32, #tpu.memory_space<vmem>>, vector<1x128xf32>
    tpu.vector_store %arg3[%c22, %c0_45], %137 {strides = array<i32>} : memref<64x128xf32, #tpu.memory_space<vmem>>, vector<1x128xf32>,
    %c23_i32 = arith.constant 23 : i32
    %139 = arith.addi %0, %c23_i32 : i32
    %140 = arith.index_cast %139 : i32 to index
    %141 = memref.load %arg1[%140] : memref<256xi32, #tpu.memory_space<smem>>
    %142 = arith.index_cast %141 : i32 to index
    %c0_46 = arith.constant 0 : index
    %143 = vector.load %arg2[%142, %c0_46] : memref<2000x128xf32, #tpu.memory_space<vmem>>, vector<1x128xf32>
    %c23 = arith.constant 23 : index
    %c0_47 = arith.constant 0 : index
    %144 = vector.load %arg3[%c23, %c0_47] : memref<64x128xf32, #tpu.memory_space<vmem>>, vector<1x128xf32>
    tpu.vector_store %arg3[%c23, %c0_47], %143 {strides = array<i32>} : memref<64x128xf32, #tpu.memory_space<vmem>>, vector<1x128xf32>,
    %c24_i32 = arith.constant 24 : i32
    %145 = arith.addi %0, %c24_i32 : i32
    %146 = arith.index_cast %145 : i32 to index
    %147 = memref.load %arg1[%146] : memref<256xi32, #tpu.memory_space<smem>>
    %148 = arith.index_cast %147 : i32 to index
    %c0_48 = arith.constant 0 : index
    %149 = vector.load %arg2[%148, %c0_48] : memref<2000x128xf32, #tpu.memory_space<vmem>>, vector<1x128xf32>
    %c24 = arith.constant 24 : index
    %c0_49 = arith.constant 0 : index
    %150 = vector.load %arg3[%c24, %c0_49] : memref<64x128xf32, #tpu.memory_space<vmem>>, vector<1x128xf32>
    tpu.vector_store %arg3[%c24, %c0_49], %149 {strides = array<i32>} : memref<64x128xf32, #tpu.memory_space<vmem>>, vector<1x128xf32>,
    %c25_i32 = arith.constant 25 : i32
    %151 = arith.addi %0, %c25_i32 : i32
    %152 = arith.index_cast %151 : i32 to index
    %153 = memref.load %arg1[%152] : memref<256xi32, #tpu.memory_space<smem>>
    %154 = arith.index_cast %153 : i32 to index
    %c0_50 = arith.constant 0 : index
    %155 = vector.load %arg2[%154, %c0_50] : memref<2000x128xf32, #tpu.memory_space<vmem>>, vector<1x128xf32>
    %c25 = arith.constant 25 : index
    %c0_51 = arith.constant 0 : index
    %156 = vector.load %arg3[%c25, %c0_51] : memref<64x128xf32, #tpu.memory_space<vmem>>, vector<1x128xf32>
    tpu.vector_store %arg3[%c25, %c0_51], %155 {strides = array<i32>} : memref<64x128xf32, #tpu.memory_space<vmem>>, vector<1x128xf32>,
    %c26_i32 = arith.constant 26 : i32
    %157 = arith.addi %0, %c26_i32 : i32
    %158 = arith.index_cast %157 : i32 to index
    %159 = memref.load %arg1[%158] : memref<256xi32, #tpu.memory_space<smem>>
    %160 = arith.index_cast %159 : i32 to index
    %c0_52 = arith.constant 0 : index
    %161 = vector.load %arg2[%160, %c0_52] : memref<2000x128xf32, #tpu.memory_space<vmem>>, vector<1x128xf32>
    %c26 = arith.constant 26 : index
    %c0_53 = arith.constant 0 : index
    %162 = vector.load %arg3[%c26, %c0_53] : memref<64x128xf32, #tpu.memory_space<vmem>>, vector<1x128xf32>
    tpu.vector_store %arg3[%c26, %c0_53], %161 {strides = array<i32>} : memref<64x128xf32, #tpu.memory_space<vmem>>, vector<1x128xf32>,
    %c27_i32 = arith.constant 27 : i32
    %163 = arith.addi %0, %c27_i32 : i32
    %164 = arith.index_cast %163 : i32 to index
    %165 = memref.load %arg1[%164] : memref<256xi32, #tpu.memory_space<smem>>
    %166 = arith.index_cast %165 : i32 to index
    %c0_54 = arith.constant 0 : index
    %167 = vector.load %arg2[%166, %c0_54] : memref<2000x128xf32, #tpu.memory_space<vmem>>, vector<1x128xf32>
    %c27 = arith.constant 27 : index
    %c0_55 = arith.constant 0 : index
    %168 = vector.load %arg3[%c27, %c0_55] : memref<64x128xf32, #tpu.memory_space<vmem>>, vector<1x128xf32>
    tpu.vector_store %arg3[%c27, %c0_55], %167 {strides = array<i32>} : memref<64x128xf32, #tpu.memory_space<vmem>>, vector<1x128xf32>,
    %c28_i32 = arith.constant 28 : i32
    %169 = arith.addi %0, %c28_i32 : i32
    %170 = arith.index_cast %169 : i32 to index
    %171 = memref.load %arg1[%170] : memref<256xi32, #tpu.memory_space<smem>>
    %172 = arith.index_cast %171 : i32 to index
    %c0_56 = arith.constant 0 : index
    %173 = vector.load %arg2[%172, %c0_56] : memref<2000x128xf32, #tpu.memory_space<vmem>>, vector<1x128xf32>
    %c28 = arith.constant 28 : index
    %c0_57 = arith.constant 0 : index
    %174 = vector.load %arg3[%c28, %c0_57] : memref<64x128xf32, #tpu.memory_space<vmem>>, vector<1x128xf32>
    tpu.vector_store %arg3[%c28, %c0_57], %173 {strides = array<i32>} : memref<64x128xf32, #tpu.memory_space<vmem>>, vector<1x128xf32>,
    %c29_i32 = arith.constant 29 : i32
    %175 = arith.addi %0, %c29_i32 : i32
    %176 = arith.index_cast %175 : i32 to index
    %177 = memref.load %arg1[%176] : memref<256xi32, #tpu.memory_space<smem>>
    %178 = arith.index_cast %177 : i32 to index
    %c0_58 = arith.constant 0 : index
    %179 = vector.load %arg2[%178, %c0_58] : memref<2000x128xf32, #tpu.memory_space<vmem>>, vector<1x128xf32>
    %c29 = arith.constant 29 : index
    %c0_59 = arith.constant 0 : index
    %180 = vector.load %arg3[%c29, %c0_59] : memref<64x128xf32, #tpu.memory_space<vmem>>, vector<1x128xf32>
    tpu.vector_store %arg3[%c29, %c0_59], %179 {strides = array<i32>} : memref<64x128xf32, #tpu.memory_space<vmem>>, vector<1x128xf32>,
    %c30_i32 = arith.constant 30 : i32
    %181 = arith.addi %0, %c30_i32 : i32
    %182 = arith.index_cast %181 : i32 to index
    %183 = memref.load %arg1[%182] : memref<256xi32, #tpu.memory_space<smem>>
    %184 = arith.index_cast %183 : i32 to index
    %c0_60 = arith.constant 0 : index
    %185 = vector.load %arg2[%184, %c0_60] : memref<2000x128xf32, #tpu.memory_space<vmem>>, vector<1x128xf32>
    %c30 = arith.constant 30 : index
    %c0_61 = arith.constant 0 : index
    %186 = vector.load %arg3[%c30, %c0_61] : memref<64x128xf32, #tpu.memory_space<vmem>>, vector<1x128xf32>
    tpu.vector_store %arg3[%c30, %c0_61], %185 {strides = array<i32>} : memref<64x128xf32, #tpu.memory_space<vmem>>, vector<1x128xf32>,
    %c31_i32 = arith.constant 31 : i32
    %187 = arith.addi %0, %c31_i32 : i32
    %188 = arith.index_cast %187 : i32 to index
    %189 = memref.load %arg1[%188] : memref<256xi32, #tpu.memory_space<smem>>
    %190 = arith.index_cast %189 : i32 to index
    %c0_62 = arith.constant 0 : index
    %191 = vector.load %arg2[%190, %c0_62] : memref<2000x128xf32, #tpu.memory_space<vmem>>, vector<1x128xf32>
    %c31 = arith.constant 31 : index
    %c0_63 = arith.constant 0 : index
    %192 = vector.load %arg3[%c31, %c0_63] : memref<64x128xf32, #tpu.memory_space<vmem>>, vector<1x128xf32>
    tpu.vector_store %arg3[%c31, %c0_63], %191 {strides = array<i32>} : memref<64x128xf32, #tpu.memory_space<vmem>>, vector<1x128xf32>,
    %c32_i32 = arith.constant 32 : i32
    %193 = arith.addi %0, %c32_i32 : i32
    %194 = arith.index_cast %193 : i32 to index
    %195 = memref.load %arg1[%194] : memref<256xi32, #tpu.memory_space<smem>>
    %196 = arith.index_cast %195 : i32 to index
    %c0_64 = arith.constant 0 : index
    %197 = vector.load %arg2[%196, %c0_64] : memref<2000x128xf32, #tpu.memory_space<vmem>>, vector<1x128xf32>
    %c32 = arith.constant 32 : index
    %c0_65 = arith.constant 0 : index
    %198 = vector.load %arg3[%c32, %c0_65] : memref<64x128xf32, #tpu.memory_space<vmem>>, vector<1x128xf32>
    tpu.vector_store %arg3[%c32, %c0_65], %197 {strides = array<i32>} : memref<64x128xf32, #tpu.memory_space<vmem>>, vector<1x128xf32>,
    %c33_i32 = arith.constant 33 : i32
    %199 = arith.addi %0, %c33_i32 : i32
    %200 = arith.index_cast %199 : i32 to index
    %201 = memref.load %arg1[%200] : memref<256xi32, #tpu.memory_space<smem>>
    %202 = arith.index_cast %201 : i32 to index
    %c0_66 = arith.constant 0 : index
    %203 = vector.load %arg2[%202, %c0_66] : memref<2000x128xf32, #tpu.memory_space<vmem>>, vector<1x128xf32>
    %c33 = arith.constant 33 : index
    %c0_67 = arith.constant 0 : index
    %204 = vector.load %arg3[%c33, %c0_67] : memref<64x128xf32, #tpu.memory_space<vmem>>, vector<1x128xf32>
    tpu.vector_store %arg3[%c33, %c0_67], %203 {strides = array<i32>} : memref<64x128xf32, #tpu.memory_space<vmem>>, vector<1x128xf32>,
    %c34_i32 = arith.constant 34 : i32
    %205 = arith.addi %0, %c34_i32 : i32
    %206 = arith.index_cast %205 : i32 to index
    %207 = memref.load %arg1[%206] : memref<256xi32, #tpu.memory_space<smem>>
    %208 = arith.index_cast %207 : i32 to index
    %c0_68 = arith.constant 0 : index
    %209 = vector.load %arg2[%208, %c0_68] : memref<2000x128xf32, #tpu.memory_space<vmem>>, vector<1x128xf32>
    %c34 = arith.constant 34 : index
    %c0_69 = arith.constant 0 : index
    %210 = vector.load %arg3[%c34, %c0_69] : memref<64x128xf32, #tpu.memory_space<vmem>>, vector<1x128xf32>
    tpu.vector_store %arg3[%c34, %c0_69], %209 {strides = array<i32>} : memref<64x128xf32, #tpu.memory_space<vmem>>, vector<1x128xf32>,
    %c35_i32 = arith.constant 35 : i32
    %211 = arith.addi %0, %c35_i32 : i32
    %212 = arith.index_cast %211 : i32 to index
    %213 = memref.load %arg1[%212] : memref<256xi32, #tpu.memory_space<smem>>
    %214 = arith.index_cast %213 : i32 to index
    %c0_70 = arith.constant 0 : index
    %215 = vector.load %arg2[%214, %c0_70] : memref<2000x128xf32, #tpu.memory_space<vmem>>, vector<1x128xf32>
    %c35 = arith.constant 35 : index
    %c0_71 = arith.constant 0 : index
    %216 = vector.load %arg3[%c35, %c0_71] : memref<64x128xf32, #tpu.memory_space<vmem>>, vector<1x128xf32>
    tpu.vector_store %arg3[%c35, %c0_71], %215 {strides = array<i32>} : memref<64x128xf32, #tpu.memory_space<vmem>>, vector<1x128xf32>,
    %c36_i32 = arith.constant 36 : i32
    %217 = arith.addi %0, %c36_i32 : i32
    %218 = arith.index_cast %217 : i32 to index
    %219 = memref.load %arg1[%218] : memref<256xi32, #tpu.memory_space<smem>>
    %220 = arith.index_cast %219 : i32 to index
    %c0_72 = arith.constant 0 : index
    %221 = vector.load %arg2[%220, %c0_72] : memref<2000x128xf32, #tpu.memory_space<vmem>>, vector<1x128xf32>
    %c36 = arith.constant 36 : index
    %c0_73 = arith.constant 0 : index
    %222 = vector.load %arg3[%c36, %c0_73] : memref<64x128xf32, #tpu.memory_space<vmem>>, vector<1x128xf32>
    tpu.vector_store %arg3[%c36, %c0_73], %221 {strides = array<i32>} : memref<64x128xf32, #tpu.memory_space<vmem>>, vector<1x128xf32>,
    %c37_i32 = arith.constant 37 : i32
    %223 = arith.addi %0, %c37_i32 : i32
    %224 = arith.index_cast %223 : i32 to index
    %225 = memref.load %arg1[%224] : memref<256xi32, #tpu.memory_space<smem>>
    %226 = arith.index_cast %225 : i32 to index
    %c0_74 = arith.constant 0 : index
    %227 = vector.load %arg2[%226, %c0_74] : memref<2000x128xf32, #tpu.memory_space<vmem>>, vector<1x128xf32>
    %c37 = arith.constant 37 : index
    %c0_75 = arith.constant 0 : index
    %228 = vector.load %arg3[%c37, %c0_75] : memref<64x128xf32, #tpu.memory_space<vmem>>, vector<1x128xf32>
    tpu.vector_store %arg3[%c37, %c0_75], %227 {strides = array<i32>} : memref<64x128xf32, #tpu.memory_space<vmem>>, vector<1x128xf32>,
    %c38_i32 = arith.constant 38 : i32
    %229 = arith.addi %0, %c38_i32 : i32
    %230 = arith.index_cast %229 : i32 to index
    %231 = memref.load %arg1[%230] : memref<256xi32, #tpu.memory_space<smem>>
    %232 = arith.index_cast %231 : i32 to index
    %c0_76 = arith.constant 0 : index
    %233 = vector.load %arg2[%232, %c0_76] : memref<2000x128xf32, #tpu.memory_space<vmem>>, vector<1x128xf32>
    %c38 = arith.constant 38 : index
    %c0_77 = arith.constant 0 : index
    %234 = vector.load %arg3[%c38, %c0_77] : memref<64x128xf32, #tpu.memory_space<vmem>>, vector<1x128xf32>
    tpu.vector_store %arg3[%c38, %c0_77], %233 {strides = array<i32>} : memref<64x128xf32, #tpu.memory_space<vmem>>, vector<1x128xf32>,
    %c39_i32 = arith.constant 39 : i32
    %235 = arith.addi %0, %c39_i32 : i32
    %236 = arith.index_cast %235 : i32 to index
    %237 = memref.load %arg1[%236] : memref<256xi32, #tpu.memory_space<smem>>
    %238 = arith.index_cast %237 : i32 to index
    %c0_78 = arith.constant 0 : index
    %239 = vector.load %arg2[%238, %c0_78] : memref<2000x128xf32, #tpu.memory_space<vmem>>, vector<1x128xf32>
    %c39 = arith.constant 39 : index
    %c0_79 = arith.constant 0 : index
    %240 = vector.load %arg3[%c39, %c0_79] : memref<64x128xf32, #tpu.memory_space<vmem>>, vector<1x128xf32>
    tpu.vector_store %arg3[%c39, %c0_79], %239 {strides = array<i32>} : memref<64x128xf32, #tpu.memory_space<vmem>>, vector<1x128xf32>,
    %c40_i32 = arith.constant 40 : i32
    %241 = arith.addi %0, %c40_i32 : i32
    %242 = arith.index_cast %241 : i32 to index
    %243 = memref.load %arg1[%242] : memref<256xi32, #tpu.memory_space<smem>>
    %244 = arith.index_cast %243 : i32 to index
    %c0_80 = arith.constant 0 : index
    %245 = vector.load %arg2[%244, %c0_80] : memref<2000x128xf32, #tpu.memory_space<vmem>>, vector<1x128xf32>
    %c40 = arith.constant 40 : index
    %c0_81 = arith.constant 0 : index
    %246 = vector.load %arg3[%c40, %c0_81] : memref<64x128xf32, #tpu.memory_space<vmem>>, vector<1x128xf32>
    tpu.vector_store %arg3[%c40, %c0_81], %245 {strides = array<i32>} : memref<64x128xf32, #tpu.memory_space<vmem>>, vector<1x128xf32>,
    %c41_i32 = arith.constant 41 : i32
    %247 = arith.addi %0, %c41_i32 : i32
    %248 = arith.index_cast %247 : i32 to index
    %249 = memref.load %arg1[%248] : memref<256xi32, #tpu.memory_space<smem>>
    %250 = arith.index_cast %249 : i32 to index
    %c0_82 = arith.constant 0 : index
    %251 = vector.load %arg2[%250, %c0_82] : memref<2000x128xf32, #tpu.memory_space<vmem>>, vector<1x128xf32>
    %c41 = arith.constant 41 : index
    %c0_83 = arith.constant 0 : index
    %252 = vector.load %arg3[%c41, %c0_83] : memref<64x128xf32, #tpu.memory_space<vmem>>, vector<1x128xf32>
    tpu.vector_store %arg3[%c41, %c0_83], %251 {strides = array<i32>} : memref<64x128xf32, #tpu.memory_space<vmem>>, vector<1x128xf32>,
    %c42_i32 = arith.constant 42 : i32
    %253 = arith.addi %0, %c42_i32 : i32
    %254 = arith.index_cast %253 : i32 to index
    %255 = memref.load %arg1[%254] : memref<256xi32, #tpu.memory_space<smem>>
    %256 = arith.index_cast %255 : i32 to index
    %c0_84 = arith.constant 0 : index
    %257 = vector.load %arg2[%256, %c0_84] : memref<2000x128xf32, #tpu.memory_space<vmem>>, vector<1x128xf32>
    %c42 = arith.constant 42 : index
    %c0_85 = arith.constant 0 : index
    %258 = vector.load %arg3[%c42, %c0_85] : memref<64x128xf32, #tpu.memory_space<vmem>>, vector<1x128xf32>
    tpu.vector_store %arg3[%c42, %c0_85], %257 {strides = array<i32>} : memref<64x128xf32, #tpu.memory_space<vmem>>, vector<1x128xf32>,
    %c43_i32 = arith.constant 43 : i32
    %259 = arith.addi %0, %c43_i32 : i32
    %260 = arith.index_cast %259 : i32 to index
    %261 = memref.load %arg1[%260] : memref<256xi32, #tpu.memory_space<smem>>
    %262 = arith.index_cast %261 : i32 to index
    %c0_86 = arith.constant 0 : index
    %263 = vector.load %arg2[%262, %c0_86] : memref<2000x128xf32, #tpu.memory_space<vmem>>, vector<1x128xf32>
    %c43 = arith.constant 43 : index
    %c0_87 = arith.constant 0 : index
    %264 = vector.load %arg3[%c43, %c0_87] : memref<64x128xf32, #tpu.memory_space<vmem>>, vector<1x128xf32>
    tpu.vector_store %arg3[%c43, %c0_87], %263 {strides = array<i32>} : memref<64x128xf32, #tpu.memory_space<vmem>>, vector<1x128xf32>,
    %c44_i32 = arith.constant 44 : i32
    %265 = arith.addi %0, %c44_i32 : i32
    %266 = arith.index_cast %265 : i32 to index
    %267 = memref.load %arg1[%266] : memref<256xi32, #tpu.memory_space<smem>>
    %268 = arith.index_cast %267 : i32 to index
    %c0_88 = arith.constant 0 : index
    %269 = vector.load %arg2[%268, %c0_88] : memref<2000x128xf32, #tpu.memory_space<vmem>>, vector<1x128xf32>
    %c44 = arith.constant 44 : index
    %c0_89 = arith.constant 0 : index
    %270 = vector.load %arg3[%c44, %c0_89] : memref<64x128xf32, #tpu.memory_space<vmem>>, vector<1x128xf32>
    tpu.vector_store %arg3[%c44, %c0_89], %269 {strides = array<i32>} : memref<64x128xf32, #tpu.memory_space<vmem>>, vector<1x128xf32>,
    %c45_i32 = arith.constant 45 : i32
    %271 = arith.addi %0, %c45_i32 : i32
    %272 = arith.index_cast %271 : i32 to index
    %273 = memref.load %arg1[%272] : memref<256xi32, #tpu.memory_space<smem>>
    %274 = arith.index_cast %273 : i32 to index
    %c0_90 = arith.constant 0 : index
    %275 = vector.load %arg2[%274, %c0_90] : memref<2000x128xf32, #tpu.memory_space<vmem>>, vector<1x128xf32>
    %c45 = arith.constant 45 : index
    %c0_91 = arith.constant 0 : index
    %276 = vector.load %arg3[%c45, %c0_91] : memref<64x128xf32, #tpu.memory_space<vmem>>, vector<1x128xf32>
    tpu.vector_store %arg3[%c45, %c0_91], %275 {strides = array<i32>} : memref<64x128xf32, #tpu.memory_space<vmem>>, vector<1x128xf32>,
    %c46_i32 = arith.constant 46 : i32
    %277 = arith.addi %0, %c46_i32 : i32
    %278 = arith.index_cast %277 : i32 to index
    %279 = memref.load %arg1[%278] : memref<256xi32, #tpu.memory_space<smem>>
    %280 = arith.index_cast %279 : i32 to index
    %c0_92 = arith.constant 0 : index
    %281 = vector.load %arg2[%280, %c0_92] : memref<2000x128xf32, #tpu.memory_space<vmem>>, vector<1x128xf32>
    %c46 = arith.constant 46 : index
    %c0_93 = arith.constant 0 : index
    %282 = vector.load %arg3[%c46, %c0_93] : memref<64x128xf32, #tpu.memory_space<vmem>>, vector<1x128xf32>
    tpu.vector_store %arg3[%c46, %c0_93], %281 {strides = array<i32>} : memref<64x128xf32, #tpu.memory_space<vmem>>, vector<1x128xf32>,
    %c47_i32 = arith.constant 47 : i32
    %283 = arith.addi %0, %c47_i32 : i32
    %284 = arith.index_cast %283 : i32 to index
    %285 = memref.load %arg1[%284] : memref<256xi32, #tpu.memory_space<smem>>
    %286 = arith.index_cast %285 : i32 to index
    %c0_94 = arith.constant 0 : index
    %287 = vector.load %arg2[%286, %c0_94] : memref<2000x128xf32, #tpu.memory_space<vmem>>, vector<1x128xf32>
    %c47 = arith.constant 47 : index
    %c0_95 = arith.constant 0 : index
    %288 = vector.load %arg3[%c47, %c0_95] : memref<64x128xf32, #tpu.memory_space<vmem>>, vector<1x128xf32>
    tpu.vector_store %arg3[%c47, %c0_95], %287 {strides = array<i32>} : memref<64x128xf32, #tpu.memory_space<vmem>>, vector<1x128xf32>,
    %c48_i32 = arith.constant 48 : i32
    %289 = arith.addi %0, %c48_i32 : i32
    %290 = arith.index_cast %289 : i32 to index
    %291 = memref.load %arg1[%290] : memref<256xi32, #tpu.memory_space<smem>>
    %292 = arith.index_cast %291 : i32 to index
    %c0_96 = arith.constant 0 : index
    %293 = vector.load %arg2[%292, %c0_96] : memref<2000x128xf32, #tpu.memory_space<vmem>>, vector<1x128xf32>
    %c48 = arith.constant 48 : index
    %c0_97 = arith.constant 0 : index
    %294 = vector.load %arg3[%c48, %c0_97] : memref<64x128xf32, #tpu.memory_space<vmem>>, vector<1x128xf32>
    tpu.vector_store %arg3[%c48, %c0_97], %293 {strides = array<i32>} : memref<64x128xf32, #tpu.memory_space<vmem>>, vector<1x128xf32>,
    %c49_i32 = arith.constant 49 : i32
    %295 = arith.addi %0, %c49_i32 : i32
    %296 = arith.index_cast %295 : i32 to index
    %297 = memref.load %arg1[%296] : memref<256xi32, #tpu.memory_space<smem>>
    %298 = arith.index_cast %297 : i32 to index
    %c0_98 = arith.constant 0 : index
    %299 = vector.load %arg2[%298, %c0_98] : memref<2000x128xf32, #tpu.memory_space<vmem>>, vector<1x128xf32>
    %c49 = arith.constant 49 : index
    %c0_99 = arith.constant 0 : index
    %300 = vector.load %arg3[%c49, %c0_99] : memref<64x128xf32, #tpu.memory_space<vmem>>, vector<1x128xf32>
    tpu.vector_store %arg3[%c49, %c0_99], %299 {strides = array<i32>} : memref<64x128xf32, #tpu.memory_space<vmem>>, vector<1x128xf32>,
    %c50_i32 = arith.constant 50 : i32
    %301 = arith.addi %0, %c50_i32 : i32
    %302 = arith.index_cast %301 : i32 to index
    %303 = memref.load %arg1[%302] : memref<256xi32, #tpu.memory_space<smem>>
    %304 = arith.index_cast %303 : i32 to index
    %c0_100 = arith.constant 0 : index
    %305 = vector.load %arg2[%304, %c0_100] : memref<2000x128xf32, #tpu.memory_space<vmem>>, vector<1x128xf32>
    %c50 = arith.constant 50 : index
    %c0_101 = arith.constant 0 : index
    %306 = vector.load %arg3[%c50, %c0_101] : memref<64x128xf32, #tpu.memory_space<vmem>>, vector<1x128xf32>
    tpu.vector_store %arg3[%c50, %c0_101], %305 {strides = array<i32>} : memref<64x128xf32, #tpu.memory_space<vmem>>, vector<1x128xf32>,
    %c51_i32 = arith.constant 51 : i32
    %307 = arith.addi %0, %c51_i32 : i32
    %308 = arith.index_cast %307 : i32 to index
    %309 = memref.load %arg1[%308] : memref<256xi32, #tpu.memory_space<smem>>
    %310 = arith.index_cast %309 : i32 to index
    %c0_102 = arith.constant 0 : index
    %311 = vector.load %arg2[%310, %c0_102] : memref<2000x128xf32, #tpu.memory_space<vmem>>, vector<1x128xf32>
    %c51 = arith.constant 51 : index
    %c0_103 = arith.constant 0 : index
    %312 = vector.load %arg3[%c51, %c0_103] : memref<64x128xf32, #tpu.memory_space<vmem>>, vector<1x128xf32>
    tpu.vector_store %arg3[%c51, %c0_103], %311 {strides = array<i32>} : memref<64x128xf32, #tpu.memory_space<vmem>>, vector<1x128xf32>,
    %c52_i32 = arith.constant 52 : i32
    %313 = arith.addi %0, %c52_i32 : i32
    %314 = arith.index_cast %313 : i32 to index
    %315 = memref.load %arg1[%314] : memref<256xi32, #tpu.memory_space<smem>>
    %316 = arith.index_cast %315 : i32 to index
    %c0_104 = arith.constant 0 : index
    %317 = vector.load %arg2[%316, %c0_104] : memref<2000x128xf32, #tpu.memory_space<vmem>>, vector<1x128xf32>
    %c52 = arith.constant 52 : index
    %c0_105 = arith.constant 0 : index
    %318 = vector.load %arg3[%c52, %c0_105] : memref<64x128xf32, #tpu.memory_space<vmem>>, vector<1x128xf32>
    tpu.vector_store %arg3[%c52, %c0_105], %317 {strides = array<i32>} : memref<64x128xf32, #tpu.memory_space<vmem>>, vector<1x128xf32>,
    %c53_i32 = arith.constant 53 : i32
    %319 = arith.addi %0, %c53_i32 : i32
    %320 = arith.index_cast %319 : i32 to index
    %321 = memref.load %arg1[%320] : memref<256xi32, #tpu.memory_space<smem>>
    %322 = arith.index_cast %321 : i32 to index
    %c0_106 = arith.constant 0 : index
    %323 = vector.load %arg2[%322, %c0_106] : memref<2000x128xf32, #tpu.memory_space<vmem>>, vector<1x128xf32>
    %c53 = arith.constant 53 : index
    %c0_107 = arith.constant 0 : index
    %324 = vector.load %arg3[%c53, %c0_107] : memref<64x128xf32, #tpu.memory_space<vmem>>, vector<1x128xf32>
    tpu.vector_store %arg3[%c53, %c0_107], %323 {strides = array<i32>} : memref<64x128xf32, #tpu.memory_space<vmem>>, vector<1x128xf32>,
    %c54_i32 = arith.constant 54 : i32
    %325 = arith.addi %0, %c54_i32 : i32
    %326 = arith.index_cast %325 : i32 to index
    %327 = memref.load %arg1[%326] : memref<256xi32, #tpu.memory_space<smem>>
    %328 = arith.index_cast %327 : i32 to index
    %c0_108 = arith.constant 0 : index
    %329 = vector.load %arg2[%328, %c0_108] : memref<2000x128xf32, #tpu.memory_space<vmem>>, vector<1x128xf32>
    %c54 = arith.constant 54 : index
    %c0_109 = arith.constant 0 : index
    %330 = vector.load %arg3[%c54, %c0_109] : memref<64x128xf32, #tpu.memory_space<vmem>>, vector<1x128xf32>
    tpu.vector_store %arg3[%c54, %c0_109], %329 {strides = array<i32>} : memref<64x128xf32, #tpu.memory_space<vmem>>, vector<1x128xf32>,
    %c55_i32 = arith.constant 55 : i32
    %331 = arith.addi %0, %c55_i32 : i32
    %332 = arith.index_cast %331 : i32 to index
    %333 = memref.load %arg1[%332] : memref<256xi32, #tpu.memory_space<smem>>
    %334 = arith.index_cast %333 : i32 to index
    %c0_110 = arith.constant 0 : index
    %335 = vector.load %arg2[%334, %c0_110] : memref<2000x128xf32, #tpu.memory_space<vmem>>, vector<1x128xf32>
    %c55 = arith.constant 55 : index
    %c0_111 = arith.constant 0 : index
    %336 = vector.load %arg3[%c55, %c0_111] : memref<64x128xf32, #tpu.memory_space<vmem>>, vector<1x128xf32>
    tpu.vector_store %arg3[%c55, %c0_111], %335 {strides = array<i32>} : memref<64x128xf32, #tpu.memory_space<vmem>>, vector<1x128xf32>,
    %c56_i32 = arith.constant 56 : i32
    %337 = arith.addi %0, %c56_i32 : i32
    %338 = arith.index_cast %337 : i32 to index
    %339 = memref.load %arg1[%338] : memref<256xi32, #tpu.memory_space<smem>>
    %340 = arith.index_cast %339 : i32 to index
    %c0_112 = arith.constant 0 : index
    %341 = vector.load %arg2[%340, %c0_112] : memref<2000x128xf32, #tpu.memory_space<vmem>>, vector<1x128xf32>
    %c56 = arith.constant 56 : index
    %c0_113 = arith.constant 0 : index
    %342 = vector.load %arg3[%c56, %c0_113] : memref<64x128xf32, #tpu.memory_space<vmem>>, vector<1x128xf32>
    tpu.vector_store %arg3[%c56, %c0_113], %341 {strides = array<i32>} : memref<64x128xf32, #tpu.memory_space<vmem>>, vector<1x128xf32>,
    %c57_i32 = arith.constant 57 : i32
    %343 = arith.addi %0, %c57_i32 : i32
    %344 = arith.index_cast %343 : i32 to index
    %345 = memref.load %arg1[%344] : memref<256xi32, #tpu.memory_space<smem>>
    %346 = arith.index_cast %345 : i32 to index
    %c0_114 = arith.constant 0 : index
    %347 = vector.load %arg2[%346, %c0_114] : memref<2000x128xf32, #tpu.memory_space<vmem>>, vector<1x128xf32>
    %c57 = arith.constant 57 : index
    %c0_115 = arith.constant 0 : index
    %348 = vector.load %arg3[%c57, %c0_115] : memref<64x128xf32, #tpu.memory_space<vmem>>, vector<1x128xf32>
    tpu.vector_store %arg3[%c57, %c0_115], %347 {strides = array<i32>} : memref<64x128xf32, #tpu.memory_space<vmem>>, vector<1x128xf32>,
    %c58_i32 = arith.constant 58 : i32
    %349 = arith.addi %0, %c58_i32 : i32
    %350 = arith.index_cast %349 : i32 to index
    %351 = memref.load %arg1[%350] : memref<256xi32, #tpu.memory_space<smem>>
    %352 = arith.index_cast %351 : i32 to index
    %c0_116 = arith.constant 0 : index
    %353 = vector.load %arg2[%352, %c0_116] : memref<2000x128xf32, #tpu.memory_space<vmem>>, vector<1x128xf32>
    %c58 = arith.constant 58 : index
    %c0_117 = arith.constant 0 : index
    %354 = vector.load %arg3[%c58, %c0_117] : memref<64x128xf32, #tpu.memory_space<vmem>>, vector<1x128xf32>
    tpu.vector_store %arg3[%c58, %c0_117], %353 {strides = array<i32>} : memref<64x128xf32, #tpu.memory_space<vmem>>, vector<1x128xf32>,
    %c59_i32 = arith.constant 59 : i32
    %355 = arith.addi %0, %c59_i32 : i32
    %356 = arith.index_cast %355 : i32 to index
    %357 = memref.load %arg1[%356] : memref<256xi32, #tpu.memory_space<smem>>
    %358 = arith.index_cast %357 : i32 to index
    %c0_118 = arith.constant 0 : index
    %359 = vector.load %arg2[%358, %c0_118] : memref<2000x128xf32, #tpu.memory_space<vmem>>, vector<1x128xf32>
    %c59 = arith.constant 59 : index
    %c0_119 = arith.constant 0 : index
    %360 = vector.load %arg3[%c59, %c0_119] : memref<64x128xf32, #tpu.memory_space<vmem>>, vector<1x128xf32>
    tpu.vector_store %arg3[%c59, %c0_119], %359 {strides = array<i32>} : memref<64x128xf32, #tpu.memory_space<vmem>>, vector<1x128xf32>,
    %c60_i32 = arith.constant 60 : i32
    %361 = arith.addi %0, %c60_i32 : i32
    %362 = arith.index_cast %361 : i32 to index
    %363 = memref.load %arg1[%362] : memref<256xi32, #tpu.memory_space<smem>>
    %364 = arith.index_cast %363 : i32 to index
    %c0_120 = arith.constant 0 : index
    %365 = vector.load %arg2[%364, %c0_120] : memref<2000x128xf32, #tpu.memory_space<vmem>>, vector<1x128xf32>
    %c60 = arith.constant 60 : index
    %c0_121 = arith.constant 0 : index
    %366 = vector.load %arg3[%c60, %c0_121] : memref<64x128xf32, #tpu.memory_space<vmem>>, vector<1x128xf32>
    tpu.vector_store %arg3[%c60, %c0_121], %365 {strides = array<i32>} : memref<64x128xf32, #tpu.memory_space<vmem>>, vector<1x128xf32>,
    %c61_i32 = arith.constant 61 : i32
    %367 = arith.addi %0, %c61_i32 : i32
    %368 = arith.index_cast %367 : i32 to index
    %369 = memref.load %arg1[%368] : memref<256xi32, #tpu.memory_space<smem>>
    %370 = arith.index_cast %369 : i32 to index
    %c0_122 = arith.constant 0 : index
    %371 = vector.load %arg2[%370, %c0_122] : memref<2000x128xf32, #tpu.memory_space<vmem>>, vector<1x128xf32>
    %c61 = arith.constant 61 : index
    %c0_123 = arith.constant 0 : index
    %372 = vector.load %arg3[%c61, %c0_123] : memref<64x128xf32, #tpu.memory_space<vmem>>, vector<1x128xf32>
    tpu.vector_store %arg3[%c61, %c0_123], %371 {strides = array<i32>} : memref<64x128xf32, #tpu.memory_space<vmem>>, vector<1x128xf32>,
    %c62_i32 = arith.constant 62 : i32
    %373 = arith.addi %0, %c62_i32 : i32
    %374 = arith.index_cast %373 : i32 to index
    %375 = memref.load %arg1[%374] : memref<256xi32, #tpu.memory_space<smem>>
    %376 = arith.index_cast %375 : i32 to index
    %c0_124 = arith.constant 0 : index
    %377 = vector.load %arg2[%376, %c0_124] : memref<2000x128xf32, #tpu.memory_space<vmem>>, vector<1x128xf32>
    %c62 = arith.constant 62 : index
    %c0_125 = arith.constant 0 : index
    %378 = vector.load %arg3[%c62, %c0_125] : memref<64x128xf32, #tpu.memory_space<vmem>>, vector<1x128xf32>
    tpu.vector_store %arg3[%c62, %c0_125], %377 {strides = array<i32>} : memref<64x128xf32, #tpu.memory_space<vmem>>, vector<1x128xf32>,
    %c63_i32 = arith.constant 63 : i32
    %379 = arith.addi %0, %c63_i32 : i32
    %380 = arith.index_cast %379 : i32 to index
    %381 = memref.load %arg1[%380] : memref<256xi32, #tpu.memory_space<smem>>
    %382 = arith.index_cast %381 : i32 to index
    %c0_126 = arith.constant 0 : index
    %383 = vector.load %arg2[%382, %c0_126] : memref<2000x128xf32, #tpu.memory_space<vmem>>, vector<1x128xf32>
    %c63 = arith.constant 63 : index
    %c0_127 = arith.constant 0 : index
    %384 = vector.load %arg3[%c63, %c0_127] : memref<64x128xf32, #tpu.memory_space<vmem>>, vector<1x128xf32>
    tpu.vector_store %arg3[%c63, %c0_127], %383 {strides = array<i32>} : memref<64x128xf32, #tpu.memory_space<vmem>>, vector<1x128xf32>,
    return
  }
  func.func @transform_0(%arg0: i32, %arg1: memref<256xi32, #tpu.memory_space<smem>>) -> (i32, i32) {
    %c0_i32 = arith.constant 0 : i32
    %c0_i32_0 = arith.constant 0 : i32
    %c0_i32_1 = arith.constant 0 : i32
    return %c0_i32, %c0_i32_0 : i32, i32
  }
  func.func @transform_1(%arg0: i32, %arg1: memref<256xi32, #tpu.memory_space<smem>>) -> (i32, i32) {
    %c0_i32 = arith.constant 0 : i32
    %c0_i32_0 = arith.constant 0 : i32
    return %arg0, %c0_i32 : i32, i32
  }
}

module attributes {stable_mosaic.version = 11 : i64} {
  func.func @rnn_kernel(%arg0: memref<16x8x128xf32, #tpu.memory_space<vmem>>, %arg1: memref<128x128xbf16, #tpu.memory_space<vmem>>, %arg2: memref<2x128x128xbf16, #tpu.memory_space<vmem>>, %arg3: memref<1x128xf32, #tpu.memory_space<vmem>>, %arg4: memref<16x8x128xf32, #tpu.memory_space<vmem>>) attributes {dimension_semantics = [], scalar_prefetch = 0 : i64, scratch_operands = 0 : i64, tpu.core_type = #tpu.core_type<tc>} {
    %c0 = arith.constant 0 : index
    %c0_0 = arith.constant 0 : index
    %c0_1 = arith.constant 0 : index
    %0 = vector.load %arg2[%c0, %c0_0, %c0_1] : memref<2x128x128xbf16, #tpu.memory_space<vmem>>, vector<1x128x128xbf16>
    %1 = vector.shape_cast %0 : vector<1x128x128xbf16> to vector<128x128xbf16>
    %c1 = arith.constant 1 : index
    %c0_2 = arith.constant 0 : index
    %c0_3 = arith.constant 0 : index
    %2 = vector.load %arg2[%c1, %c0_2, %c0_3] : memref<2x128x128xbf16, #tpu.memory_space<vmem>>, vector<1x128x128xbf16>
    %3 = vector.shape_cast %2 : vector<1x128x128xbf16> to vector<128x128xbf16>
    %c0_4 = arith.constant 0 : index
    %c0_5 = arith.constant 0 : index
    %4 = vector.load %arg1[%c0_4, %c0_5] : memref<128x128xbf16, #tpu.memory_space<vmem>>, vector<128x128xbf16>
    %c0_6 = arith.constant 0 : index
    %c0_7 = arith.constant 0 : index
    %5 = vector.load %arg3[%c0_6, %c0_7] : memref<1x128xf32, #tpu.memory_space<vmem>>, vector<1x128xf32>
    %c0_8 = arith.constant 0 : index
    %c0_9 = arith.constant 0 : index
    %c0_10 = arith.constant 0 : index
    %6 = vector.load %arg0[%c0_8, %c0_9, %c0_10] : memref<16x8x128xf32, #tpu.memory_space<vmem>>, vector<1x8x128xf32>
    %7 = vector.shape_cast %6 : vector<1x8x128xf32> to vector<8x128xf32>
    %8 = math.tanh %7 : vector<8x128xf32>
    %9 = arith.truncf %8 : vector<8x128xf32> to vector<8x128xbf16>
    %cst = arith.constant dense<0.000000e+00> : vector<8x128xf32>
    %10 = tpu.matmul %9, %4, %cst {dimension_numbers = #tpu.dot_dimension_numbers<[1], [0], [0], [1], [0, 0, 1, 1], [], []>} : vector<8x128xbf16>, vector<128x128xbf16>, vector<8x128xf32> -> vector<8x128xf32>
    %11 = vector.broadcast %5 : vector<1x128xf32> to vector<8x128xf32>
    %12 = arith.addf %10, %11 : vector<8x128xf32>
    %13 = math.tanh %12 : vector<8x128xf32>
    %14 = arith.truncf %13 : vector<8x128xf32> to vector<8x128xbf16>
    %c0_11 = arith.constant 0 : index
    %c0_12 = arith.constant 0 : index
    %c0_13 = arith.constant 0 : index
    %15 = vector.load %arg4[%c0_11, %c0_12, %c0_13] : memref<16x8x128xf32, #tpu.memory_space<vmem>>, vector<1x8x128xf32>
    %16 = vector.shape_cast %15 : vector<1x8x128xf32> to vector<8x128xf32>
    %17 = vector.shape_cast %13 : vector<8x128xf32> to vector<1x8x128xf32>
    tpu.vector_store %arg4[%c0_11, %c0_12, %c0_13], %17 {strides = array<i32>} : memref<16x8x128xf32, #tpu.memory_space<vmem>>, vector<1x8x128xf32>,
    %c1_14 = arith.constant 1 : index
    %c0_15 = arith.constant 0 : index
    %c0_16 = arith.constant 0 : index
    %18 = vector.load %arg0[%c1_14, %c0_15, %c0_16] : memref<16x8x128xf32, #tpu.memory_space<vmem>>, vector<1x8x128xf32>
    %19 = vector.shape_cast %18 : vector<1x8x128xf32> to vector<8x128xf32>
    %cst_17 = arith.constant dense<0.000000e+00> : vector<8x128xf32>
    %20 = tpu.matmul %9, %1, %cst_17 {dimension_numbers = #tpu.dot_dimension_numbers<[1], [0], [0], [1], [0, 0, 1, 1], [], []>} : vector<8x128xbf16>, vector<128x128xbf16>, vector<8x128xf32> -> vector<8x128xf32>
    %21 = arith.addf %19, %20 : vector<8x128xf32>
    %22 = math.tanh %21 : vector<8x128xf32>
    %23 = arith.truncf %22 : vector<8x128xf32> to vector<8x128xbf16>
    %cst_18 = arith.constant dense<0.000000e+00> : vector<8x128xf32>
    %24 = tpu.matmul %23, %4, %cst_18 {dimension_numbers = #tpu.dot_dimension_numbers<[1], [0], [0], [1], [0, 0, 1, 1], [], []>} : vector<8x128xbf16>, vector<128x128xbf16>, vector<8x128xf32> -> vector<8x128xf32>
    %25 = vector.broadcast %5 : vector<1x128xf32> to vector<8x128xf32>
    %26 = arith.addf %24, %25 : vector<8x128xf32>
    %cst_19 = arith.constant dense<0.000000e+00> : vector<8x128xf32>
    %27 = tpu.matmul %14, %3, %cst_19 {dimension_numbers = #tpu.dot_dimension_numbers<[1], [0], [0], [1], [0, 0, 1, 1], [], []>} : vector<8x128xbf16>, vector<128x128xbf16>, vector<8x128xf32> -> vector<8x128xf32>
    %28 = arith.addf %26, %27 : vector<8x128xf32>
    %29 = math.tanh %28 : vector<8x128xf32>
    %30 = arith.truncf %29 : vector<8x128xf32> to vector<8x128xbf16>
    %c1_20 = arith.constant 1 : index
    %c0_21 = arith.constant 0 : index
    %c0_22 = arith.constant 0 : index
    %31 = vector.load %arg4[%c1_20, %c0_21, %c0_22] : memref<16x8x128xf32, #tpu.memory_space<vmem>>, vector<1x8x128xf32>
    %32 = vector.shape_cast %31 : vector<1x8x128xf32> to vector<8x128xf32>
    %33 = vector.shape_cast %29 : vector<8x128xf32> to vector<1x8x128xf32>
    tpu.vector_store %arg4[%c1_20, %c0_21, %c0_22], %33 {strides = array<i32>} : memref<16x8x128xf32, #tpu.memory_space<vmem>>, vector<1x8x128xf32>,
    %c2 = arith.constant 2 : index
    %c0_23 = arith.constant 0 : index
    %c0_24 = arith.constant 0 : index
    %34 = vector.load %arg0[%c2, %c0_23, %c0_24] : memref<16x8x128xf32, #tpu.memory_space<vmem>>, vector<1x8x128xf32>
    %35 = vector.shape_cast %34 : vector<1x8x128xf32> to vector<8x128xf32>
    %cst_25 = arith.constant dense<0.000000e+00> : vector<8x128xf32>
    %36 = tpu.matmul %23, %1, %cst_25 {dimension_numbers = #tpu.dot_dimension_numbers<[1], [0], [0], [1], [0, 0, 1, 1], [], []>} : vector<8x128xbf16>, vector<128x128xbf16>, vector<8x128xf32> -> vector<8x128xf32>
    %37 = arith.addf %35, %36 : vector<8x128xf32>
    %38 = math.tanh %37 : vector<8x128xf32>
    %39 = arith.truncf %38 : vector<8x128xf32> to vector<8x128xbf16>
    %cst_26 = arith.constant dense<0.000000e+00> : vector<8x128xf32>
    %40 = tpu.matmul %39, %4, %cst_26 {dimension_numbers = #tpu.dot_dimension_numbers<[1], [0], [0], [1], [0, 0, 1, 1], [], []>} : vector<8x128xbf16>, vector<128x128xbf16>, vector<8x128xf32> -> vector<8x128xf32>
    %41 = vector.broadcast %5 : vector<1x128xf32> to vector<8x128xf32>
    %42 = arith.addf %40, %41 : vector<8x128xf32>
    %cst_27 = arith.constant dense<0.000000e+00> : vector<8x128xf32>
    %43 = tpu.matmul %30, %3, %cst_27 {dimension_numbers = #tpu.dot_dimension_numbers<[1], [0], [0], [1], [0, 0, 1, 1], [], []>} : vector<8x128xbf16>, vector<128x128xbf16>, vector<8x128xf32> -> vector<8x128xf32>
    %44 = arith.addf %42, %43 : vector<8x128xf32>
    %45 = math.tanh %44 : vector<8x128xf32>
    %46 = arith.truncf %45 : vector<8x128xf32> to vector<8x128xbf16>
    %c2_28 = arith.constant 2 : index
    %c0_29 = arith.constant 0 : index
    %c0_30 = arith.constant 0 : index
    %47 = vector.load %arg4[%c2_28, %c0_29, %c0_30] : memref<16x8x128xf32, #tpu.memory_space<vmem>>, vector<1x8x128xf32>
    %48 = vector.shape_cast %47 : vector<1x8x128xf32> to vector<8x128xf32>
    %49 = vector.shape_cast %45 : vector<8x128xf32> to vector<1x8x128xf32>
    tpu.vector_store %arg4[%c2_28, %c0_29, %c0_30], %49 {strides = array<i32>} : memref<16x8x128xf32, #tpu.memory_space<vmem>>, vector<1x8x128xf32>,
    %c3 = arith.constant 3 : index
    %c0_31 = arith.constant 0 : index
    %c0_32 = arith.constant 0 : index
    %50 = vector.load %arg0[%c3, %c0_31, %c0_32] : memref<16x8x128xf32, #tpu.memory_space<vmem>>, vector<1x8x128xf32>
    %51 = vector.shape_cast %50 : vector<1x8x128xf32> to vector<8x128xf32>
    %cst_33 = arith.constant dense<0.000000e+00> : vector<8x128xf32>
    %52 = tpu.matmul %39, %1, %cst_33 {dimension_numbers = #tpu.dot_dimension_numbers<[1], [0], [0], [1], [0, 0, 1, 1], [], []>} : vector<8x128xbf16>, vector<128x128xbf16>, vector<8x128xf32> -> vector<8x128xf32>
    %53 = arith.addf %51, %52 : vector<8x128xf32>
    %54 = math.tanh %53 : vector<8x128xf32>
    %55 = arith.truncf %54 : vector<8x128xf32> to vector<8x128xbf16>
    %cst_34 = arith.constant dense<0.000000e+00> : vector<8x128xf32>
    %56 = tpu.matmul %55, %4, %cst_34 {dimension_numbers = #tpu.dot_dimension_numbers<[1], [0], [0], [1], [0, 0, 1, 1], [], []>} : vector<8x128xbf16>, vector<128x128xbf16>, vector<8x128xf32> -> vector<8x128xf32>
    %57 = vector.broadcast %5 : vector<1x128xf32> to vector<8x128xf32>
    %58 = arith.addf %56, %57 : vector<8x128xf32>
    %cst_35 = arith.constant dense<0.000000e+00> : vector<8x128xf32>
    %59 = tpu.matmul %46, %3, %cst_35 {dimension_numbers = #tpu.dot_dimension_numbers<[1], [0], [0], [1], [0, 0, 1, 1], [], []>} : vector<8x128xbf16>, vector<128x128xbf16>, vector<8x128xf32> -> vector<8x128xf32>
    %60 = arith.addf %58, %59 : vector<8x128xf32>
    %61 = math.tanh %60 : vector<8x128xf32>
    %62 = arith.truncf %61 : vector<8x128xf32> to vector<8x128xbf16>
    %c3_36 = arith.constant 3 : index
    %c0_37 = arith.constant 0 : index
    %c0_38 = arith.constant 0 : index
    %63 = vector.load %arg4[%c3_36, %c0_37, %c0_38] : memref<16x8x128xf32, #tpu.memory_space<vmem>>, vector<1x8x128xf32>
    %64 = vector.shape_cast %63 : vector<1x8x128xf32> to vector<8x128xf32>
    %65 = vector.shape_cast %61 : vector<8x128xf32> to vector<1x8x128xf32>
    tpu.vector_store %arg4[%c3_36, %c0_37, %c0_38], %65 {strides = array<i32>} : memref<16x8x128xf32, #tpu.memory_space<vmem>>, vector<1x8x128xf32>,
    %c4 = arith.constant 4 : index
    %c0_39 = arith.constant 0 : index
    %c0_40 = arith.constant 0 : index
    %66 = vector.load %arg0[%c4, %c0_39, %c0_40] : memref<16x8x128xf32, #tpu.memory_space<vmem>>, vector<1x8x128xf32>
    %67 = vector.shape_cast %66 : vector<1x8x128xf32> to vector<8x128xf32>
    %cst_41 = arith.constant dense<0.000000e+00> : vector<8x128xf32>
    %68 = tpu.matmul %55, %1, %cst_41 {dimension_numbers = #tpu.dot_dimension_numbers<[1], [0], [0], [1], [0, 0, 1, 1], [], []>} : vector<8x128xbf16>, vector<128x128xbf16>, vector<8x128xf32> -> vector<8x128xf32>
    %69 = arith.addf %67, %68 : vector<8x128xf32>
    %70 = math.tanh %69 : vector<8x128xf32>
    %71 = arith.truncf %70 : vector<8x128xf32> to vector<8x128xbf16>
    %cst_42 = arith.constant dense<0.000000e+00> : vector<8x128xf32>
    %72 = tpu.matmul %71, %4, %cst_42 {dimension_numbers = #tpu.dot_dimension_numbers<[1], [0], [0], [1], [0, 0, 1, 1], [], []>} : vector<8x128xbf16>, vector<128x128xbf16>, vector<8x128xf32> -> vector<8x128xf32>
    %73 = vector.broadcast %5 : vector<1x128xf32> to vector<8x128xf32>
    %74 = arith.addf %72, %73 : vector<8x128xf32>
    %cst_43 = arith.constant dense<0.000000e+00> : vector<8x128xf32>
    %75 = tpu.matmul %62, %3, %cst_43 {dimension_numbers = #tpu.dot_dimension_numbers<[1], [0], [0], [1], [0, 0, 1, 1], [], []>} : vector<8x128xbf16>, vector<128x128xbf16>, vector<8x128xf32> -> vector<8x128xf32>
    %76 = arith.addf %74, %75 : vector<8x128xf32>
    %77 = math.tanh %76 : vector<8x128xf32>
    %78 = arith.truncf %77 : vector<8x128xf32> to vector<8x128xbf16>
    %c4_44 = arith.constant 4 : index
    %c0_45 = arith.constant 0 : index
    %c0_46 = arith.constant 0 : index
    %79 = vector.load %arg4[%c4_44, %c0_45, %c0_46] : memref<16x8x128xf32, #tpu.memory_space<vmem>>, vector<1x8x128xf32>
    %80 = vector.shape_cast %79 : vector<1x8x128xf32> to vector<8x128xf32>
    %81 = vector.shape_cast %77 : vector<8x128xf32> to vector<1x8x128xf32>
    tpu.vector_store %arg4[%c4_44, %c0_45, %c0_46], %81 {strides = array<i32>} : memref<16x8x128xf32, #tpu.memory_space<vmem>>, vector<1x8x128xf32>,
    %c5 = arith.constant 5 : index
    %c0_47 = arith.constant 0 : index
    %c0_48 = arith.constant 0 : index
    %82 = vector.load %arg0[%c5, %c0_47, %c0_48] : memref<16x8x128xf32, #tpu.memory_space<vmem>>, vector<1x8x128xf32>
    %83 = vector.shape_cast %82 : vector<1x8x128xf32> to vector<8x128xf32>
    %cst_49 = arith.constant dense<0.000000e+00> : vector<8x128xf32>
    %84 = tpu.matmul %71, %1, %cst_49 {dimension_numbers = #tpu.dot_dimension_numbers<[1], [0], [0], [1], [0, 0, 1, 1], [], []>} : vector<8x128xbf16>, vector<128x128xbf16>, vector<8x128xf32> -> vector<8x128xf32>
    %85 = arith.addf %83, %84 : vector<8x128xf32>
    %86 = math.tanh %85 : vector<8x128xf32>
    %87 = arith.truncf %86 : vector<8x128xf32> to vector<8x128xbf16>
    %cst_50 = arith.constant dense<0.000000e+00> : vector<8x128xf32>
    %88 = tpu.matmul %87, %4, %cst_50 {dimension_numbers = #tpu.dot_dimension_numbers<[1], [0], [0], [1], [0, 0, 1, 1], [], []>} : vector<8x128xbf16>, vector<128x128xbf16>, vector<8x128xf32> -> vector<8x128xf32>
    %89 = vector.broadcast %5 : vector<1x128xf32> to vector<8x128xf32>
    %90 = arith.addf %88, %89 : vector<8x128xf32>
    %cst_51 = arith.constant dense<0.000000e+00> : vector<8x128xf32>
    %91 = tpu.matmul %78, %3, %cst_51 {dimension_numbers = #tpu.dot_dimension_numbers<[1], [0], [0], [1], [0, 0, 1, 1], [], []>} : vector<8x128xbf16>, vector<128x128xbf16>, vector<8x128xf32> -> vector<8x128xf32>
    %92 = arith.addf %90, %91 : vector<8x128xf32>
    %93 = math.tanh %92 : vector<8x128xf32>
    %94 = arith.truncf %93 : vector<8x128xf32> to vector<8x128xbf16>
    %c5_52 = arith.constant 5 : index
    %c0_53 = arith.constant 0 : index
    %c0_54 = arith.constant 0 : index
    %95 = vector.load %arg4[%c5_52, %c0_53, %c0_54] : memref<16x8x128xf32, #tpu.memory_space<vmem>>, vector<1x8x128xf32>
    %96 = vector.shape_cast %95 : vector<1x8x128xf32> to vector<8x128xf32>
    %97 = vector.shape_cast %93 : vector<8x128xf32> to vector<1x8x128xf32>
    tpu.vector_store %arg4[%c5_52, %c0_53, %c0_54], %97 {strides = array<i32>} : memref<16x8x128xf32, #tpu.memory_space<vmem>>, vector<1x8x128xf32>,
    %c6 = arith.constant 6 : index
    %c0_55 = arith.constant 0 : index
    %c0_56 = arith.constant 0 : index
    %98 = vector.load %arg0[%c6, %c0_55, %c0_56] : memref<16x8x128xf32, #tpu.memory_space<vmem>>, vector<1x8x128xf32>
    %99 = vector.shape_cast %98 : vector<1x8x128xf32> to vector<8x128xf32>
    %cst_57 = arith.constant dense<0.000000e+00> : vector<8x128xf32>
    %100 = tpu.matmul %87, %1, %cst_57 {dimension_numbers = #tpu.dot_dimension_numbers<[1], [0], [0], [1], [0, 0, 1, 1], [], []>} : vector<8x128xbf16>, vector<128x128xbf16>, vector<8x128xf32> -> vector<8x128xf32>
    %101 = arith.addf %99, %100 : vector<8x128xf32>
    %102 = math.tanh %101 : vector<8x128xf32>
    %103 = arith.truncf %102 : vector<8x128xf32> to vector<8x128xbf16>
    %cst_58 = arith.constant dense<0.000000e+00> : vector<8x128xf32>
    %104 = tpu.matmul %103, %4, %cst_58 {dimension_numbers = #tpu.dot_dimension_numbers<[1], [0], [0], [1], [0, 0, 1, 1], [], []>} : vector<8x128xbf16>, vector<128x128xbf16>, vector<8x128xf32> -> vector<8x128xf32>
    %105 = vector.broadcast %5 : vector<1x128xf32> to vector<8x128xf32>
    %106 = arith.addf %104, %105 : vector<8x128xf32>
    %cst_59 = arith.constant dense<0.000000e+00> : vector<8x128xf32>
    %107 = tpu.matmul %94, %3, %cst_59 {dimension_numbers = #tpu.dot_dimension_numbers<[1], [0], [0], [1], [0, 0, 1, 1], [], []>} : vector<8x128xbf16>, vector<128x128xbf16>, vector<8x128xf32> -> vector<8x128xf32>
    %108 = arith.addf %106, %107 : vector<8x128xf32>
    %109 = math.tanh %108 : vector<8x128xf32>
    %110 = arith.truncf %109 : vector<8x128xf32> to vector<8x128xbf16>
    %c6_60 = arith.constant 6 : index
    %c0_61 = arith.constant 0 : index
    %c0_62 = arith.constant 0 : index
    %111 = vector.load %arg4[%c6_60, %c0_61, %c0_62] : memref<16x8x128xf32, #tpu.memory_space<vmem>>, vector<1x8x128xf32>
    %112 = vector.shape_cast %111 : vector<1x8x128xf32> to vector<8x128xf32>
    %113 = vector.shape_cast %109 : vector<8x128xf32> to vector<1x8x128xf32>
    tpu.vector_store %arg4[%c6_60, %c0_61, %c0_62], %113 {strides = array<i32>} : memref<16x8x128xf32, #tpu.memory_space<vmem>>, vector<1x8x128xf32>,
    %c7 = arith.constant 7 : index
    %c0_63 = arith.constant 0 : index
    %c0_64 = arith.constant 0 : index
    %114 = vector.load %arg0[%c7, %c0_63, %c0_64] : memref<16x8x128xf32, #tpu.memory_space<vmem>>, vector<1x8x128xf32>
    %115 = vector.shape_cast %114 : vector<1x8x128xf32> to vector<8x128xf32>
    %cst_65 = arith.constant dense<0.000000e+00> : vector<8x128xf32>
    %116 = tpu.matmul %103, %1, %cst_65 {dimension_numbers = #tpu.dot_dimension_numbers<[1], [0], [0], [1], [0, 0, 1, 1], [], []>} : vector<8x128xbf16>, vector<128x128xbf16>, vector<8x128xf32> -> vector<8x128xf32>
    %117 = arith.addf %115, %116 : vector<8x128xf32>
    %118 = math.tanh %117 : vector<8x128xf32>
    %119 = arith.truncf %118 : vector<8x128xf32> to vector<8x128xbf16>
    %cst_66 = arith.constant dense<0.000000e+00> : vector<8x128xf32>
    %120 = tpu.matmul %119, %4, %cst_66 {dimension_numbers = #tpu.dot_dimension_numbers<[1], [0], [0], [1], [0, 0, 1, 1], [], []>} : vector<8x128xbf16>, vector<128x128xbf16>, vector<8x128xf32> -> vector<8x128xf32>
    %121 = vector.broadcast %5 : vector<1x128xf32> to vector<8x128xf32>
    %122 = arith.addf %120, %121 : vector<8x128xf32>
    %cst_67 = arith.constant dense<0.000000e+00> : vector<8x128xf32>
    %123 = tpu.matmul %110, %3, %cst_67 {dimension_numbers = #tpu.dot_dimension_numbers<[1], [0], [0], [1], [0, 0, 1, 1], [], []>} : vector<8x128xbf16>, vector<128x128xbf16>, vector<8x128xf32> -> vector<8x128xf32>
    %124 = arith.addf %122, %123 : vector<8x128xf32>
    %125 = math.tanh %124 : vector<8x128xf32>
    %126 = arith.truncf %125 : vector<8x128xf32> to vector<8x128xbf16>
    %c7_68 = arith.constant 7 : index
    %c0_69 = arith.constant 0 : index
    %c0_70 = arith.constant 0 : index
    %127 = vector.load %arg4[%c7_68, %c0_69, %c0_70] : memref<16x8x128xf32, #tpu.memory_space<vmem>>, vector<1x8x128xf32>
    %128 = vector.shape_cast %127 : vector<1x8x128xf32> to vector<8x128xf32>
    %129 = vector.shape_cast %125 : vector<8x128xf32> to vector<1x8x128xf32>
    tpu.vector_store %arg4[%c7_68, %c0_69, %c0_70], %129 {strides = array<i32>} : memref<16x8x128xf32, #tpu.memory_space<vmem>>, vector<1x8x128xf32>,
    %c8 = arith.constant 8 : index
    %c0_71 = arith.constant 0 : index
    %c0_72 = arith.constant 0 : index
    %130 = vector.load %arg0[%c8, %c0_71, %c0_72] : memref<16x8x128xf32, #tpu.memory_space<vmem>>, vector<1x8x128xf32>
    %131 = vector.shape_cast %130 : vector<1x8x128xf32> to vector<8x128xf32>
    %cst_73 = arith.constant dense<0.000000e+00> : vector<8x128xf32>
    %132 = tpu.matmul %119, %1, %cst_73 {dimension_numbers = #tpu.dot_dimension_numbers<[1], [0], [0], [1], [0, 0, 1, 1], [], []>} : vector<8x128xbf16>, vector<128x128xbf16>, vector<8x128xf32> -> vector<8x128xf32>
    %133 = arith.addf %131, %132 : vector<8x128xf32>
    %134 = math.tanh %133 : vector<8x128xf32>
    %135 = arith.truncf %134 : vector<8x128xf32> to vector<8x128xbf16>
    %cst_74 = arith.constant dense<0.000000e+00> : vector<8x128xf32>
    %136 = tpu.matmul %135, %4, %cst_74 {dimension_numbers = #tpu.dot_dimension_numbers<[1], [0], [0], [1], [0, 0, 1, 1], [], []>} : vector<8x128xbf16>, vector<128x128xbf16>, vector<8x128xf32> -> vector<8x128xf32>
    %137 = vector.broadcast %5 : vector<1x128xf32> to vector<8x128xf32>
    %138 = arith.addf %136, %137 : vector<8x128xf32>
    %cst_75 = arith.constant dense<0.000000e+00> : vector<8x128xf32>
    %139 = tpu.matmul %126, %3, %cst_75 {dimension_numbers = #tpu.dot_dimension_numbers<[1], [0], [0], [1], [0, 0, 1, 1], [], []>} : vector<8x128xbf16>, vector<128x128xbf16>, vector<8x128xf32> -> vector<8x128xf32>
    %140 = arith.addf %138, %139 : vector<8x128xf32>
    %141 = math.tanh %140 : vector<8x128xf32>
    %142 = arith.truncf %141 : vector<8x128xf32> to vector<8x128xbf16>
    %c8_76 = arith.constant 8 : index
    %c0_77 = arith.constant 0 : index
    %c0_78 = arith.constant 0 : index
    %143 = vector.load %arg4[%c8_76, %c0_77, %c0_78] : memref<16x8x128xf32, #tpu.memory_space<vmem>>, vector<1x8x128xf32>
    %144 = vector.shape_cast %143 : vector<1x8x128xf32> to vector<8x128xf32>
    %145 = vector.shape_cast %141 : vector<8x128xf32> to vector<1x8x128xf32>
    tpu.vector_store %arg4[%c8_76, %c0_77, %c0_78], %145 {strides = array<i32>} : memref<16x8x128xf32, #tpu.memory_space<vmem>>, vector<1x8x128xf32>,
    %c9 = arith.constant 9 : index
    %c0_79 = arith.constant 0 : index
    %c0_80 = arith.constant 0 : index
    %146 = vector.load %arg0[%c9, %c0_79, %c0_80] : memref<16x8x128xf32, #tpu.memory_space<vmem>>, vector<1x8x128xf32>
    %147 = vector.shape_cast %146 : vector<1x8x128xf32> to vector<8x128xf32>
    %cst_81 = arith.constant dense<0.000000e+00> : vector<8x128xf32>
    %148 = tpu.matmul %135, %1, %cst_81 {dimension_numbers = #tpu.dot_dimension_numbers<[1], [0], [0], [1], [0, 0, 1, 1], [], []>} : vector<8x128xbf16>, vector<128x128xbf16>, vector<8x128xf32> -> vector<8x128xf32>
    %149 = arith.addf %147, %148 : vector<8x128xf32>
    %150 = math.tanh %149 : vector<8x128xf32>
    %151 = arith.truncf %150 : vector<8x128xf32> to vector<8x128xbf16>
    %cst_82 = arith.constant dense<0.000000e+00> : vector<8x128xf32>
    %152 = tpu.matmul %151, %4, %cst_82 {dimension_numbers = #tpu.dot_dimension_numbers<[1], [0], [0], [1], [0, 0, 1, 1], [], []>} : vector<8x128xbf16>, vector<128x128xbf16>, vector<8x128xf32> -> vector<8x128xf32>
    %153 = vector.broadcast %5 : vector<1x128xf32> to vector<8x128xf32>
    %154 = arith.addf %152, %153 : vector<8x128xf32>
    %cst_83 = arith.constant dense<0.000000e+00> : vector<8x128xf32>
    %155 = tpu.matmul %142, %3, %cst_83 {dimension_numbers = #tpu.dot_dimension_numbers<[1], [0], [0], [1], [0, 0, 1, 1], [], []>} : vector<8x128xbf16>, vector<128x128xbf16>, vector<8x128xf32> -> vector<8x128xf32>
    %156 = arith.addf %154, %155 : vector<8x128xf32>
    %157 = math.tanh %156 : vector<8x128xf32>
    %158 = arith.truncf %157 : vector<8x128xf32> to vector<8x128xbf16>
    %c9_84 = arith.constant 9 : index
    %c0_85 = arith.constant 0 : index
    %c0_86 = arith.constant 0 : index
    %159 = vector.load %arg4[%c9_84, %c0_85, %c0_86] : memref<16x8x128xf32, #tpu.memory_space<vmem>>, vector<1x8x128xf32>
    %160 = vector.shape_cast %159 : vector<1x8x128xf32> to vector<8x128xf32>
    %161 = vector.shape_cast %157 : vector<8x128xf32> to vector<1x8x128xf32>
    tpu.vector_store %arg4[%c9_84, %c0_85, %c0_86], %161 {strides = array<i32>} : memref<16x8x128xf32, #tpu.memory_space<vmem>>, vector<1x8x128xf32>,
    %c10 = arith.constant 10 : index
    %c0_87 = arith.constant 0 : index
    %c0_88 = arith.constant 0 : index
    %162 = vector.load %arg0[%c10, %c0_87, %c0_88] : memref<16x8x128xf32, #tpu.memory_space<vmem>>, vector<1x8x128xf32>
    %163 = vector.shape_cast %162 : vector<1x8x128xf32> to vector<8x128xf32>
    %cst_89 = arith.constant dense<0.000000e+00> : vector<8x128xf32>
    %164 = tpu.matmul %151, %1, %cst_89 {dimension_numbers = #tpu.dot_dimension_numbers<[1], [0], [0], [1], [0, 0, 1, 1], [], []>} : vector<8x128xbf16>, vector<128x128xbf16>, vector<8x128xf32> -> vector<8x128xf32>
    %165 = arith.addf %163, %164 : vector<8x128xf32>
    %166 = math.tanh %165 : vector<8x128xf32>
    %167 = arith.truncf %166 : vector<8x128xf32> to vector<8x128xbf16>
    %cst_90 = arith.constant dense<0.000000e+00> : vector<8x128xf32>
    %168 = tpu.matmul %167, %4, %cst_90 {dimension_numbers = #tpu.dot_dimension_numbers<[1], [0], [0], [1], [0, 0, 1, 1], [], []>} : vector<8x128xbf16>, vector<128x128xbf16>, vector<8x128xf32> -> vector<8x128xf32>
    %169 = vector.broadcast %5 : vector<1x128xf32> to vector<8x128xf32>
    %170 = arith.addf %168, %169 : vector<8x128xf32>
    %cst_91 = arith.constant dense<0.000000e+00> : vector<8x128xf32>
    %171 = tpu.matmul %158, %3, %cst_91 {dimension_numbers = #tpu.dot_dimension_numbers<[1], [0], [0], [1], [0, 0, 1, 1], [], []>} : vector<8x128xbf16>, vector<128x128xbf16>, vector<8x128xf32> -> vector<8x128xf32>
    %172 = arith.addf %170, %171 : vector<8x128xf32>
    %173 = math.tanh %172 : vector<8x128xf32>
    %174 = arith.truncf %173 : vector<8x128xf32> to vector<8x128xbf16>
    %c10_92 = arith.constant 10 : index
    %c0_93 = arith.constant 0 : index
    %c0_94 = arith.constant 0 : index
    %175 = vector.load %arg4[%c10_92, %c0_93, %c0_94] : memref<16x8x128xf32, #tpu.memory_space<vmem>>, vector<1x8x128xf32>
    %176 = vector.shape_cast %175 : vector<1x8x128xf32> to vector<8x128xf32>
    %177 = vector.shape_cast %173 : vector<8x128xf32> to vector<1x8x128xf32>
    tpu.vector_store %arg4[%c10_92, %c0_93, %c0_94], %177 {strides = array<i32>} : memref<16x8x128xf32, #tpu.memory_space<vmem>>, vector<1x8x128xf32>,
    %c11 = arith.constant 11 : index
    %c0_95 = arith.constant 0 : index
    %c0_96 = arith.constant 0 : index
    %178 = vector.load %arg0[%c11, %c0_95, %c0_96] : memref<16x8x128xf32, #tpu.memory_space<vmem>>, vector<1x8x128xf32>
    %179 = vector.shape_cast %178 : vector<1x8x128xf32> to vector<8x128xf32>
    %cst_97 = arith.constant dense<0.000000e+00> : vector<8x128xf32>
    %180 = tpu.matmul %167, %1, %cst_97 {dimension_numbers = #tpu.dot_dimension_numbers<[1], [0], [0], [1], [0, 0, 1, 1], [], []>} : vector<8x128xbf16>, vector<128x128xbf16>, vector<8x128xf32> -> vector<8x128xf32>
    %181 = arith.addf %179, %180 : vector<8x128xf32>
    %182 = math.tanh %181 : vector<8x128xf32>
    %183 = arith.truncf %182 : vector<8x128xf32> to vector<8x128xbf16>
    %cst_98 = arith.constant dense<0.000000e+00> : vector<8x128xf32>
    %184 = tpu.matmul %183, %4, %cst_98 {dimension_numbers = #tpu.dot_dimension_numbers<[1], [0], [0], [1], [0, 0, 1, 1], [], []>} : vector<8x128xbf16>, vector<128x128xbf16>, vector<8x128xf32> -> vector<8x128xf32>
    %185 = vector.broadcast %5 : vector<1x128xf32> to vector<8x128xf32>
    %186 = arith.addf %184, %185 : vector<8x128xf32>
    %cst_99 = arith.constant dense<0.000000e+00> : vector<8x128xf32>
    %187 = tpu.matmul %174, %3, %cst_99 {dimension_numbers = #tpu.dot_dimension_numbers<[1], [0], [0], [1], [0, 0, 1, 1], [], []>} : vector<8x128xbf16>, vector<128x128xbf16>, vector<8x128xf32> -> vector<8x128xf32>
    %188 = arith.addf %186, %187 : vector<8x128xf32>
    %189 = math.tanh %188 : vector<8x128xf32>
    %190 = arith.truncf %189 : vector<8x128xf32> to vector<8x128xbf16>
    %c11_100 = arith.constant 11 : index
    %c0_101 = arith.constant 0 : index
    %c0_102 = arith.constant 0 : index
    %191 = vector.load %arg4[%c11_100, %c0_101, %c0_102] : memref<16x8x128xf32, #tpu.memory_space<vmem>>, vector<1x8x128xf32>
    %192 = vector.shape_cast %191 : vector<1x8x128xf32> to vector<8x128xf32>
    %193 = vector.shape_cast %189 : vector<8x128xf32> to vector<1x8x128xf32>
    tpu.vector_store %arg4[%c11_100, %c0_101, %c0_102], %193 {strides = array<i32>} : memref<16x8x128xf32, #tpu.memory_space<vmem>>, vector<1x8x128xf32>,
    %c12 = arith.constant 12 : index
    %c0_103 = arith.constant 0 : index
    %c0_104 = arith.constant 0 : index
    %194 = vector.load %arg0[%c12, %c0_103, %c0_104] : memref<16x8x128xf32, #tpu.memory_space<vmem>>, vector<1x8x128xf32>
    %195 = vector.shape_cast %194 : vector<1x8x128xf32> to vector<8x128xf32>
    %cst_105 = arith.constant dense<0.000000e+00> : vector<8x128xf32>
    %196 = tpu.matmul %183, %1, %cst_105 {dimension_numbers = #tpu.dot_dimension_numbers<[1], [0], [0], [1], [0, 0, 1, 1], [], []>} : vector<8x128xbf16>, vector<128x128xbf16>, vector<8x128xf32> -> vector<8x128xf32>
    %197 = arith.addf %195, %196 : vector<8x128xf32>
    %198 = math.tanh %197 : vector<8x128xf32>
    %199 = arith.truncf %198 : vector<8x128xf32> to vector<8x128xbf16>
    %cst_106 = arith.constant dense<0.000000e+00> : vector<8x128xf32>
    %200 = tpu.matmul %199, %4, %cst_106 {dimension_numbers = #tpu.dot_dimension_numbers<[1], [0], [0], [1], [0, 0, 1, 1], [], []>} : vector<8x128xbf16>, vector<128x128xbf16>, vector<8x128xf32> -> vector<8x128xf32>
    %201 = vector.broadcast %5 : vector<1x128xf32> to vector<8x128xf32>
    %202 = arith.addf %200, %201 : vector<8x128xf32>
    %cst_107 = arith.constant dense<0.000000e+00> : vector<8x128xf32>
    %203 = tpu.matmul %190, %3, %cst_107 {dimension_numbers = #tpu.dot_dimension_numbers<[1], [0], [0], [1], [0, 0, 1, 1], [], []>} : vector<8x128xbf16>, vector<128x128xbf16>, vector<8x128xf32> -> vector<8x128xf32>
    %204 = arith.addf %202, %203 : vector<8x128xf32>
    %205 = math.tanh %204 : vector<8x128xf32>
    %206 = arith.truncf %205 : vector<8x128xf32> to vector<8x128xbf16>
    %c12_108 = arith.constant 12 : index
    %c0_109 = arith.constant 0 : index
    %c0_110 = arith.constant 0 : index
    %207 = vector.load %arg4[%c12_108, %c0_109, %c0_110] : memref<16x8x128xf32, #tpu.memory_space<vmem>>, vector<1x8x128xf32>
    %208 = vector.shape_cast %207 : vector<1x8x128xf32> to vector<8x128xf32>
    %209 = vector.shape_cast %205 : vector<8x128xf32> to vector<1x8x128xf32>
    tpu.vector_store %arg4[%c12_108, %c0_109, %c0_110], %209 {strides = array<i32>} : memref<16x8x128xf32, #tpu.memory_space<vmem>>, vector<1x8x128xf32>,
    %c13 = arith.constant 13 : index
    %c0_111 = arith.constant 0 : index
    %c0_112 = arith.constant 0 : index
    %210 = vector.load %arg0[%c13, %c0_111, %c0_112] : memref<16x8x128xf32, #tpu.memory_space<vmem>>, vector<1x8x128xf32>
    %211 = vector.shape_cast %210 : vector<1x8x128xf32> to vector<8x128xf32>
    %cst_113 = arith.constant dense<0.000000e+00> : vector<8x128xf32>
    %212 = tpu.matmul %199, %1, %cst_113 {dimension_numbers = #tpu.dot_dimension_numbers<[1], [0], [0], [1], [0, 0, 1, 1], [], []>} : vector<8x128xbf16>, vector<128x128xbf16>, vector<8x128xf32> -> vector<8x128xf32>
    %213 = arith.addf %211, %212 : vector<8x128xf32>
    %214 = math.tanh %213 : vector<8x128xf32>
    %215 = arith.truncf %214 : vector<8x128xf32> to vector<8x128xbf16>
    %cst_114 = arith.constant dense<0.000000e+00> : vector<8x128xf32>
    %216 = tpu.matmul %215, %4, %cst_114 {dimension_numbers = #tpu.dot_dimension_numbers<[1], [0], [0], [1], [0, 0, 1, 1], [], []>} : vector<8x128xbf16>, vector<128x128xbf16>, vector<8x128xf32> -> vector<8x128xf32>
    %217 = vector.broadcast %5 : vector<1x128xf32> to vector<8x128xf32>
    %218 = arith.addf %216, %217 : vector<8x128xf32>
    %cst_115 = arith.constant dense<0.000000e+00> : vector<8x128xf32>
    %219 = tpu.matmul %206, %3, %cst_115 {dimension_numbers = #tpu.dot_dimension_numbers<[1], [0], [0], [1], [0, 0, 1, 1], [], []>} : vector<8x128xbf16>, vector<128x128xbf16>, vector<8x128xf32> -> vector<8x128xf32>
    %220 = arith.addf %218, %219 : vector<8x128xf32>
    %221 = math.tanh %220 : vector<8x128xf32>
    %222 = arith.truncf %221 : vector<8x128xf32> to vector<8x128xbf16>
    %c13_116 = arith.constant 13 : index
    %c0_117 = arith.constant 0 : index
    %c0_118 = arith.constant 0 : index
    %223 = vector.load %arg4[%c13_116, %c0_117, %c0_118] : memref<16x8x128xf32, #tpu.memory_space<vmem>>, vector<1x8x128xf32>
    %224 = vector.shape_cast %223 : vector<1x8x128xf32> to vector<8x128xf32>
    %225 = vector.shape_cast %221 : vector<8x128xf32> to vector<1x8x128xf32>
    tpu.vector_store %arg4[%c13_116, %c0_117, %c0_118], %225 {strides = array<i32>} : memref<16x8x128xf32, #tpu.memory_space<vmem>>, vector<1x8x128xf32>,
    %c14 = arith.constant 14 : index
    %c0_119 = arith.constant 0 : index
    %c0_120 = arith.constant 0 : index
    %226 = vector.load %arg0[%c14, %c0_119, %c0_120] : memref<16x8x128xf32, #tpu.memory_space<vmem>>, vector<1x8x128xf32>
    %227 = vector.shape_cast %226 : vector<1x8x128xf32> to vector<8x128xf32>
    %cst_121 = arith.constant dense<0.000000e+00> : vector<8x128xf32>
    %228 = tpu.matmul %215, %1, %cst_121 {dimension_numbers = #tpu.dot_dimension_numbers<[1], [0], [0], [1], [0, 0, 1, 1], [], []>} : vector<8x128xbf16>, vector<128x128xbf16>, vector<8x128xf32> -> vector<8x128xf32>
    %229 = arith.addf %227, %228 : vector<8x128xf32>
    %230 = math.tanh %229 : vector<8x128xf32>
    %231 = arith.truncf %230 : vector<8x128xf32> to vector<8x128xbf16>
    %cst_122 = arith.constant dense<0.000000e+00> : vector<8x128xf32>
    %232 = tpu.matmul %231, %4, %cst_122 {dimension_numbers = #tpu.dot_dimension_numbers<[1], [0], [0], [1], [0, 0, 1, 1], [], []>} : vector<8x128xbf16>, vector<128x128xbf16>, vector<8x128xf32> -> vector<8x128xf32>
    %233 = vector.broadcast %5 : vector<1x128xf32> to vector<8x128xf32>
    %234 = arith.addf %232, %233 : vector<8x128xf32>
    %cst_123 = arith.constant dense<0.000000e+00> : vector<8x128xf32>
    %235 = tpu.matmul %222, %3, %cst_123 {dimension_numbers = #tpu.dot_dimension_numbers<[1], [0], [0], [1], [0, 0, 1, 1], [], []>} : vector<8x128xbf16>, vector<128x128xbf16>, vector<8x128xf32> -> vector<8x128xf32>
    %236 = arith.addf %234, %235 : vector<8x128xf32>
    %237 = math.tanh %236 : vector<8x128xf32>
    %238 = arith.truncf %237 : vector<8x128xf32> to vector<8x128xbf16>
    %c14_124 = arith.constant 14 : index
    %c0_125 = arith.constant 0 : index
    %c0_126 = arith.constant 0 : index
    %239 = vector.load %arg4[%c14_124, %c0_125, %c0_126] : memref<16x8x128xf32, #tpu.memory_space<vmem>>, vector<1x8x128xf32>
    %240 = vector.shape_cast %239 : vector<1x8x128xf32> to vector<8x128xf32>
    %241 = vector.shape_cast %237 : vector<8x128xf32> to vector<1x8x128xf32>
    tpu.vector_store %arg4[%c14_124, %c0_125, %c0_126], %241 {strides = array<i32>} : memref<16x8x128xf32, #tpu.memory_space<vmem>>, vector<1x8x128xf32>,
    %c15 = arith.constant 15 : index
    %c0_127 = arith.constant 0 : index
    %c0_128 = arith.constant 0 : index
    %242 = vector.load %arg0[%c15, %c0_127, %c0_128] : memref<16x8x128xf32, #tpu.memory_space<vmem>>, vector<1x8x128xf32>
    %243 = vector.shape_cast %242 : vector<1x8x128xf32> to vector<8x128xf32>
    %cst_129 = arith.constant dense<0.000000e+00> : vector<8x128xf32>
    %244 = tpu.matmul %231, %1, %cst_129 {dimension_numbers = #tpu.dot_dimension_numbers<[1], [0], [0], [1], [0, 0, 1, 1], [], []>} : vector<8x128xbf16>, vector<128x128xbf16>, vector<8x128xf32> -> vector<8x128xf32>
    %245 = arith.addf %243, %244 : vector<8x128xf32>
    %246 = math.tanh %245 : vector<8x128xf32>
    %247 = arith.truncf %246 : vector<8x128xf32> to vector<8x128xbf16>
    %cst_130 = arith.constant dense<0.000000e+00> : vector<8x128xf32>
    %248 = tpu.matmul %247, %4, %cst_130 {dimension_numbers = #tpu.dot_dimension_numbers<[1], [0], [0], [1], [0, 0, 1, 1], [], []>} : vector<8x128xbf16>, vector<128x128xbf16>, vector<8x128xf32> -> vector<8x128xf32>
    %249 = vector.broadcast %5 : vector<1x128xf32> to vector<8x128xf32>
    %250 = arith.addf %248, %249 : vector<8x128xf32>
    %cst_131 = arith.constant dense<0.000000e+00> : vector<8x128xf32>
    %251 = tpu.matmul %238, %3, %cst_131 {dimension_numbers = #tpu.dot_dimension_numbers<[1], [0], [0], [1], [0, 0, 1, 1], [], []>} : vector<8x128xbf16>, vector<128x128xbf16>, vector<8x128xf32> -> vector<8x128xf32>
    %252 = arith.addf %250, %251 : vector<8x128xf32>
    %253 = math.tanh %252 : vector<8x128xf32>
    %c15_132 = arith.constant 15 : index
    %c0_133 = arith.constant 0 : index
    %c0_134 = arith.constant 0 : index
    %254 = vector.load %arg4[%c15_132, %c0_133, %c0_134] : memref<16x8x128xf32, #tpu.memory_space<vmem>>, vector<1x8x128xf32>
    %255 = vector.shape_cast %254 : vector<1x8x128xf32> to vector<8x128xf32>
    %256 = vector.shape_cast %253 : vector<8x128xf32> to vector<1x8x128xf32>
    tpu.vector_store %arg4[%c15_132, %c0_133, %c0_134], %256 {strides = array<i32>} : memref<16x8x128xf32, #tpu.memory_space<vmem>>, vector<1x8x128xf32>,
    return
  }
}

</mosaic_0001>

<llo_original>
// kernel: sasrec_forward.2
$region0: #{sasrec_forward.2}
  #allocation0 [shape = 'u32[]', space=smem, size = 0x4, offset = 0x4, fixed_abs, tag = 'smem constant byte address 0x4 - core index']
  #allocation1 [shape = 'u32[72,128]{1,0:T(1,128)}', space=vmem, size = 0x9000, scoped, tag = 'internal scratch']
  #allocation2 [shape = 's32[1]{0}', space=sflag, size = 0x4, scoped, tag = 'scoped memory for sasrec_forward.2']
  #allocation3 [shape = 'u8[1024]{0}', space=smem, size = 0x400, scoped, tag = 'prefetched SMEM operand 0']
  %s0 = inlined_call_operand.vmem [shape: s32[256], index: 0, kind: input, shape index: {}]
  %s1 = inlined_call_operand.hbm [shape: f32[2000,128], index: 1, kind: input, shape index: {}]
  %s2 = inlined_call_operand.vmem [shape: f32[256,128], index: 2, kind: output, shape index: {}]
  %s3 = sld [smem:[#allocation0]]
  $region41: #{sasrec_forward.2} parent=0
    _
  %s5 = ssub.s32 1, %s3
  %s6 = scalar_select 0, %s5, %s3
  %s8 = sshll.u32 %s0, 4
  %s9 = int_to_ptr.vmem [resolvable:$true] %s8
  %11 = dma.vmem_to_smem %s9, 32, [#allocation3], [#allocation2]
  %13 = dma.done [#allocation2], 32
  %14 = sfence
  $region1: #{sasrec_forward.2} parent=0
    #allocation4 [shape = 'u8[1024000]{0}', space=vmem, size = 0xfa000, scoped, tag = 'input window, operand 1, single buffered']
    #allocation5 [shape = 's32[2]{0}', space=sflag, size = 0x8, scoped, tag = 'scoped memory for sasrec_forward.2']
    %15 = vsyncpa [#allocation5], 0
    loop: start=0, step=1, limit=6
    $region2: #{sasrec_forward.2} parent=1 // loop_pre_header
      _
    $region3: #{sasrec_forward.2} parent=1 // loop_header
      %s17 = sphi 0, %s21
      %p18 = scmp.ge.s32.totalorder %s17, 6
      %s25 = sphi 0, %s25
      %s27 = sphi 0, %s25
      %s28 = sphi 0, %s27
      %s42 = sphi 0, %s28
      %s48 = sphi 0, %s50
      %s51 = sphi 0, %s48
      %s52 = sphi 0, %s51
      %s68 = sphi 0, %s52
    $region4: #{sasrec_forward.2} parent=1 // loop_header_branch
      %20 = sbr.rel (%p18) target = $region8
    $region5: #{sasrec_forward.2} parent=1 // loop_body
      %s22 = ssub.s32 %s17, 1
      %s23 = ssub.s32 %s17, 2
      %s24 = sadd.s32 %s17, 1
      %s26 = sadd.s32 %s25, 1
      %p29 = scmp.eq.s32.totalorder %s17, 3
      %p30 = scmp.ne.s32.totalorder %s25, %s27
      %p31 = scmp.eq.s32.totalorder %s17, 0
      %p32 = por %p30, %p31
      %p33 = scmp.ne.s32.totalorder %s25, %s27
      %p34 = scmp.eq.s32.totalorder %s22, 3
      %p35 = por %p33, %p34
      %p36 = scmp.ne.s32.totalorder %s27, %s28
      %p37 = scmp.eq.s32.totalorder %s22, 0
      %p38 = por %p36, %p37
      %p39 = scmp.ne.s32.totalorder %s27, %s28
      %p40 = scmp.eq.s32.totalorder %s23, 3
      %p41 = por %p39, %p40
      %p43 = scmp.ne.s32.totalorder %s28, %s42
      %p44 = scmp.eq.s32.totalorder %s23, 0
      %p45 = por %p43, %p44
      %s46 = ssub.s32 %s17, %s24
      %p47 = scmp.eq.s32.totalorder %s46, 0
      %s49 = sadd.s32 %s48, 1
      %s50 = scalar_select %p47, %s48, %s49
      %p53 = pneg %p47
      %p54 = scmp.eq.s32.totalorder %s17, 3
      %p55 = por %p53, %p54
      %p56 = scmp.ne.s32.totalorder %s48, %s51
      %p57 = scmp.eq.s32.totalorder %s17, 0
      %p58 = por %p56, %p57
      %p59 = scmp.ne.s32.totalorder %s48, %s51
      %p60 = scmp.eq.s32.totalorder %s22, 3
      %p61 = por %p59, %p60
      %p62 = scmp.ne.s32.totalorder %s51, %s52
      %p63 = scmp.eq.s32.totalorder %s22, 0
      %p64 = por %p62, %p63
      %p65 = scmp.ne.s32.totalorder %s51, %s52
      %p66 = scmp.eq.s32.totalorder %s23, 3
      %p67 = por %p65, %p66
      %p69 = scmp.ne.s32.totalorder %s52, %s68
      %p70 = scmp.eq.s32.totalorder %s23, 0
      %p71 = por %p69, %p70
      %p72 = scmp.le.s32.totalorder 1, %s17
      %p73 = scmp.lt.s32.totalorder %s17, 5
      %p74 = pnand %p72, %p73
      %p75 = pneg %p74
      // Predicated region
      $region9: #{sasrec_forward.2} parent=5 // pred_check
        _
      $region10: #{sasrec_forward.2} parent=5 // pred_check_branch
        %77 = sbr.rel (%p74) target = $region12
      $region11: #{sasrec_forward.2} parent=5 // pred_region
        %s78 = ssub.s32 %s17, 1
        // Predicated region
        $region13: #{sasrec_forward.2} parent=11 // pred_check
          %p79 = pneg %p38
        $region14: #{sasrec_forward.2} parent=11 // pred_check_branch
          %81 = sbr.rel (%p79) target = $region16
        $region15: #{sasrec_forward.2} parent=11 // pred_region
          %83 = vsyncadd [#allocation5], 0
          %s84 = sshll.u32 %s1, 4
          %s85 = int_to_ptr.hbm [resolvable:$true] %s84
          %s86 = sshll.u32 [#allocation4], 4
          %s87 = int_to_ptr.vmem [resolvable:$true] %s86
          %92 = dma.hbm_to_vmem [thread:$0]  %s85, 32000, %s87, [#allocation5], 128, 128, 8
        $region16: #{sasrec_forward.2} parent=11 // pred_fallthru
          _
      $region12: #{sasrec_forward.2} parent=5 // pred_fallthru
        _
      %p93 = scmp.lt.s32.totalorder %s17, 4
      // Predicated region
      $region17: #{sasrec_forward.2} parent=5 // pred_check
        %p94 = pneg %p93
      $region18: #{sasrec_forward.2} parent=5 // pred_check_branch
        %96 = sbr.rel (%p94) target = $region20
      $region19: #{sasrec_forward.2} parent=5 // pred_region
        _
      $region20: #{sasrec_forward.2} parent=5 // pred_fallthru
        _
      %p97 = scmp.le.s32.totalorder 1, %s17
      %p98 = scmp.lt.s32.totalorder %s17, 5
      %p99 = pnand %p97, %p98
      %p100 = pneg %p99
      // Predicated region
      $region21: #{sasrec_forward.2} parent=5 // pred_check
        _
      $region22: #{sasrec_forward.2} parent=5 // pred_check_branch
        %102 = sbr.rel (%p99) target = $region24
      $region23: #{sasrec_forward.2} parent=5 // pred_region
        %s103 = ssub.s32 %s17, 1
        // Predicated region
        $region25: #{sasrec_forward.2} parent=23 // pred_check
          %p104 = pneg %p38
        $region26: #{sasrec_forward.2} parent=23 // pred_check_branch
          %106 = sbr.rel (%p104) target = $region28
        $region27: #{sasrec_forward.2} parent=23 // pred_region
          %108 = dma.done [#allocation5], 32000
        $region28: #{sasrec_forward.2} parent=23 // pred_fallthru
          _
        %p109 = pneg %p38
        %p110 = pneg %p35
        %p111 = pneg %p64
        %p112 = pneg %p61
        %s113 = smul.u32 8, %s22
        %p114 = scmp.lt.s32.totalorder %s113, 31
        %s115 = scalar_select %p114, %s113, 31
        %s116 = smul.addr %s115, 8
        %s117 = scalar_lea.vmem %s2, %s116
        %s118 = smul.u32 8, %s22
        %p119 = scmp.lt.s32.totalorder %s118, 31
        %s120 = scalar_select %p119, %s118, 31
        %s121 = smul.addr %s120, 8
        %s122 = scalar_lea.vmem %s2, %s121
        %s123 = smul.u32 8, %s22
        %s124 = smul.u32 %s22, 64
        %s125 = sld [smem:[#allocation3 + %s124]]
        %s126 = scalar_lea.vmem [#allocation4], %s125
        %v127 = vld [vmem:[%s126] sm:$0x1]
        %128 = vst [vmem:[%s122] sm:$0x1] %v127
        %s129 = sadd.s32 %s124, 1
        %s130 = sld [smem:[#allocation3 + %s129]]
        %s131 = scalar_lea.vmem [#allocation4], %s130
        %v132 = vld [vmem:[%s131] sm:$0x1]
        %133 = vst [vmem:[%s122 + $0x1] sm:$0x1] %v132
        %s134 = sadd.s32 %s124, 2
        %s135 = sld [smem:[#allocation3 + %s134]]
        %s136 = scalar_lea.vmem [#allocation4], %s135
        %v137 = vld [vmem:[%s136] sm:$0x1]
        %138 = vst [vmem:[%s122 + $0x2] sm:$0x1] %v137
        %s139 = sadd.s32 %s124, 3
        %s140 = sld [smem:[#allocation3 + %s139]]
        %s141 = scalar_lea.vmem [#allocation4], %s140
        %v142 = vld [vmem:[%s141] sm:$0x1]
        %143 = vst [vmem:[%s122 + $0x3] sm:$0x1] %v142
        %s144 = sadd.s32 %s124, 4
        %s145 = sld [smem:[#allocation3 + %s144]]
        %s146 = scalar_lea.vmem [#allocation4], %s145
        %v147 = vld [vmem:[%s146] sm:$0x1]
        %148 = vst [vmem:[%s122 + $0x4] sm:$0x1] %v147
        %s149 = sadd.s32 %s124, 5
        %s150 = sld [smem:[#allocation3 + %s149]]
        %s151 = scalar_lea.vmem [#allocation4], %s150
        %v152 = vld [vmem:[%s151] sm:$0x1]
        %153 = vst [vmem:[%s122 + $0x5] sm:$0x1] %v152
        %s154 = sadd.s32 %s124, 6
        %s155 = sld [smem:[#allocation3 + %s154]]
        %s156 = scalar_lea.vmem [#allocation4], %s155
        %v157 = vld [vmem:[%s156] sm:$0x1]
        %158 = vst [vmem:[%s122 + $0x6] sm:$0x1] %v157
        %s159 = sadd.s32 %s124, 7
        %s160 = sld [smem:[#allocation3 + %s159]]
        %s161 = scalar_lea.vmem [#allocation4], %s160
        %v162 = vld [vmem:[%s161] sm:$0x1]
        %163 = vst [vmem:[%s122 + $0x7] sm:$0x1] %v162
        %s164 = sadd.s32 %s124, 8
        %s165 = sld [smem:[#allocation3 + %s164]]
        %s166 = scalar_lea.vmem [#allocation4], %s165
        %v167 = vld [vmem:[%s166] sm:$0x1]
        %168 = vst [vmem:[%s122 + $0x8] sm:$0x1] %v167
        %s169 = sadd.s32 %s124, 9
        %s170 = sld [smem:[#allocation3 + %s169]]
        %s171 = scalar_lea.vmem [#allocation4], %s170
        %v172 = vld [vmem:[%s171] sm:$0x1]
        %173 = vst [vmem:[%s122 + $0x9] sm:$0x1] %v172
        %s174 = sadd.s32 %s124, 10
        %s175 = sld [smem:[#allocation3 + %s174]]
        %s176 = scalar_lea.vmem [#allocation4], %s175
        %v177 = vld [vmem:[%s176] sm:$0x1]
        %178 = vst [vmem:[%s122 + $0xa] sm:$0x1] %v177
        %s179 = sadd.s32 %s124, 11
        %s180 = sld [smem:[#allocation3 + %s179]]
        %s181 = scalar_lea.vmem [#allocation4], %s180
        %v182 = vld [vmem:[%s181] sm:$0x1]
        %183 = vst [vmem:[%s122 + $0xb] sm:$0x1] %v182
        %s184 = sadd.s32 %s124, 12
        %s185 = sld [smem:[#allocation3 + %s184]]
        %s186 = scalar_lea.vmem [#allocation4], %s185
        %v187 = vld [vmem:[%s186] sm:$0x1]
        %188 = vst [vmem:[%s122 + $0xc] sm:$0x1] %v187
        %s189 = sadd.s32 %s124, 13
        %s190 = sld [smem:[#allocation3 + %s189]]
        %s191 = scalar_lea.vmem [#allocation4], %s190
        %v192 = vld [vmem:[%s191] sm:$0x1]
        %193 = vst [vmem:[%s122 + $0xd] sm:$0x1] %v192
        %s194 = sadd.s32 %s124, 14
        %s195 = sld [smem:[#allocation3 + %s194]]
        %s196 = scalar_lea.vmem [#allocation4], %s195
        %v197 = vld [vmem:[%s196] sm:$0x1]
        %198 = vst [vmem:[%s122 + $0xe] sm:$0x1] %v197
        %s199 = sadd.s32 %s124, 15
        %s200 = sld [smem:[#allocation3 + %s199]]
        %s201 = scalar_lea.vmem [#allocation4], %s200
        %v202 = vld [vmem:[%s201] sm:$0x1]
        %203 = vst [vmem:[%s122 + $0xf] sm:$0x1] %v202
        %s204 = sadd.s32 %s124, 16
        %s205 = sld [smem:[#allocation3 + %s204]]
        %s206 = scalar_lea.vmem [#allocation4], %s205
        %v207 = vld [vmem:[%s206] sm:$0x1]
        %208 = vst [vmem:[%s122 + $0x10] sm:$0x1] %v207
        %s209 = sadd.s32 %s124, 17
        %s210 = sld [smem:[#allocation3 + %s209]]
        %s211 = scalar_lea.vmem [#allocation4], %s210
        %v212 = vld [vmem:[%s211] sm:$0x1]
        %213 = vst [vmem:[%s122 + $0x11] sm:$0x1] %v212
        %s214 = sadd.s32 %s124, 18
        %s215 = sld [smem:[#allocation3 + %s214]]
        %s216 = scalar_lea.vmem [#allocation4], %s215
        %v217 = vld [vmem:[%s216] sm:$0x1]
        %218 = vst [vmem:[%s122 + $0x12] sm:$0x1] %v217
        %s219 = sadd.s32 %s124, 19
        %s220 = sld [smem:[#allocation3 + %s219]]
        %s221 = scalar_lea.vmem [#allocation4], %s220
        %v222 = vld [vmem:[%s221] sm:$0x1]
        %223 = vst [vmem:[%s122 + $0x13] sm:$0x1] %v222
        %s224 = sadd.s32 %s124, 20
        %s225 = sld [smem:[#allocation3 + %s224]]
        %s226 = scalar_lea.vmem [#allocation4], %s225
        %v227 = vld [vmem:[%s226] sm:$0x1]
        %228 = vst [vmem:[%s122 + $0x14] sm:$0x1] %v227
        %s229 = sadd.s32 %s124, 21
        %s230 = sld [smem:[#allocation3 + %s229]]
        %s231 = scalar_lea.vmem [#allocation4], %s230
        %v232 = vld [vmem:[%s231] sm:$0x1]
        %233 = vst [vmem:[%s122 + $0x15] sm:$0x1] %v232
        %s234 = sadd.s32 %s124, 22
        %s235 = sld [smem:[#allocation3 + %s234]]
        %s236 = scalar_lea.vmem [#allocation4], %s235
        %v237 = vld [vmem:[%s236] sm:$0x1]
        %238 = vst [vmem:[%s122 + $0x16] sm:$0x1] %v237
        %s239 = sadd.s32 %s124, 23
        %s240 = sld [smem:[#allocation3 + %s239]]
        %s241 = scalar_lea.vmem [#allocation4], %s240
        %v242 = vld [vmem:[%s241] sm:$0x1]
        %243 = vst [vmem:[%s122 + $0x17] sm:$0x1] %v242
        %s244 = sadd.s32 %s124, 24
        %s245 = sld [smem:[#allocation3 + %s244]]
        %s246 = scalar_lea.vmem [#allocation4], %s245
        %v247 = vld [vmem:[%s246] sm:$0x1]
        %248 = vst [vmem:[%s122 + $0x18] sm:$0x1] %v247
        %s249 = sadd.s32 %s124, 25
        %s250 = sld [smem:[#allocation3 + %s249]]
        %s251 = scalar_lea.vmem [#allocation4], %s250
        %v252 = vld [vmem:[%s251] sm:$0x1]
        %253 = vst [vmem:[%s122 + $0x19] sm:$0x1] %v252
        %s254 = sadd.s32 %s124, 26
        %s255 = sld [smem:[#allocation3 + %s254]]
        %s256 = scalar_lea.vmem [#allocation4], %s255
        %v257 = vld [vmem:[%s256] sm:$0x1]
        %258 = vst [vmem:[%s122 + $0x1a] sm:$0x1] %v257
        %s259 = sadd.s32 %s124, 27
        %s260 = sld [smem:[#allocation3 + %s259]]
        %s261 = scalar_lea.vmem [#allocation4], %s260
        %v262 = vld [vmem:[%s261] sm:$0x1]
        %263 = vst [vmem:[%s122 + $0x1b] sm:$0x1] %v262
        %s264 = sadd.s32 %s124, 28
        %s265 = sld [smem:[#allocation3 + %s264]]
        %s266 = scalar_lea.vmem [#allocation4], %s265
        %v267 = vld [vmem:[%s266] sm:$0x1]
        %268 = vst [vmem:[%s122 + $0x1c] sm:$0x1] %v267
        %s269 = sadd.s32 %s124, 29
        %s270 = sld [smem:[#allocation3 + %s269]]
        %s271 = scalar_lea.vmem [#allocation4], %s270
        %v272 = vld [vmem:[%s271] sm:$0x1]
        %273 = vst [vmem:[%s122 + $0x1d] sm:$0x1] %v272
        %s274 = sadd.s32 %s124, 30
        %s275 = sld [smem:[#allocation3 + %s274]]
        %s276 = scalar_lea.vmem [#allocation4], %s275
        %v277 = vld [vmem:[%s276] sm:$0x1]
        %278 = vst [vmem:[%s122 + $0x1e] sm:$0x1] %v277
        %s279 = sadd.s32 %s124, 31
        %s280 = sld [smem:[#allocation3 + %s279]]
        %s281 = scalar_lea.vmem [#allocation4], %s280
        %v282 = vld [vmem:[%s281] sm:$0x1]
        %283 = vst [vmem:[%s122 + $0x1f] sm:$0x1] %v282
        %s284 = sadd.s32 %s124, 32
        %s285 = sld [smem:[#allocation3 + %s284]]
        %s286 = scalar_lea.vmem [#allocation4], %s285
        %v287 = vld [vmem:[%s286] sm:$0x1]
        %288 = vst [vmem:[%s122 + $0x20] sm:$0x1] %v287
        %s289 = sadd.s32 %s124, 33
        %s290 = sld [smem:[#allocation3 + %s289]]
        %s291 = scalar_lea.vmem [#allocation4], %s290
        %v292 = vld [vmem:[%s291] sm:$0x1]
        %293 = vst [vmem:[%s122 + $0x21] sm:$0x1] %v292
        %s294 = sadd.s32 %s124, 34
        %s295 = sld [smem:[#allocation3 + %s294]]
        %s296 = scalar_lea.vmem [#allocation4], %s295
        %v297 = vld [vmem:[%s296] sm:$0x1]
        %298 = vst [vmem:[%s122 + $0x22] sm:$0x1] %v297
        %s299 = sadd.s32 %s124, 35
        %s300 = sld [smem:[#allocation3 + %s299]]
        %s301 = scalar_lea.vmem [#allocation4], %s300
        %v302 = vld [vmem:[%s301] sm:$0x1]
        %303 = vst [vmem:[%s122 + $0x23] sm:$0x1] %v302
        %s304 = sadd.s32 %s124, 36
        %s305 = sld [smem:[#allocation3 + %s304]]
        %s306 = scalar_lea.vmem [#allocation4], %s305
        %v307 = vld [vmem:[%s306] sm:$0x1]
        %308 = vst [vmem:[%s122 + $0x24] sm:$0x1] %v307
        %s309 = sadd.s32 %s124, 37
        %s310 = sld [smem:[#allocation3 + %s309]]
        %s311 = scalar_lea.vmem [#allocation4], %s310
        %v312 = vld [vmem:[%s311] sm:$0x1]
        %313 = vst [vmem:[%s122 + $0x25] sm:$0x1] %v312
        %s314 = sadd.s32 %s124, 38
        %s315 = sld [smem:[#allocation3 + %s314]]
        %s316 = scalar_lea.vmem [#allocation4], %s315
        %v317 = vld [vmem:[%s316] sm:$0x1]
        %318 = vst [vmem:[%s122 + $0x26] sm:$0x1] %v317
        %s319 = sadd.s32 %s124, 39
        %s320 = sld [smem:[#allocation3 + %s319]]
        %s321 = scalar_lea.vmem [#allocation4], %s320
        %v322 = vld [vmem:[%s321] sm:$0x1]
        %323 = vst [vmem:[%s122 + $0x27] sm:$0x1] %v322
        %s324 = sadd.s32 %s124, 40
        %s325 = sld [smem:[#allocation3 + %s324]]
        %s326 = scalar_lea.vmem [#allocation4], %s325
        %v327 = vld [vmem:[%s326] sm:$0x1]
        %328 = vst [vmem:[%s122 + $0x28] sm:$0x1] %v327
        %s329 = sadd.s32 %s124, 41
        %s330 = sld [smem:[#allocation3 + %s329]]
        %s331 = scalar_lea.vmem [#allocation4], %s330
        %v332 = vld [vmem:[%s331] sm:$0x1]
        %333 = vst [vmem:[%s122 + $0x29] sm:$0x1] %v332
        %s334 = sadd.s32 %s124, 42
        %s335 = sld [smem:[#allocation3 + %s334]]
        %s336 = scalar_lea.vmem [#allocation4], %s335
        %v337 = vld [vmem:[%s336] sm:$0x1]
        %338 = vst [vmem:[%s122 + $0x2a] sm:$0x1] %v337
        %s339 = sadd.s32 %s124, 43
        %s340 = sld [smem:[#allocation3 + %s339]]
        %s341 = scalar_lea.vmem [#allocation4], %s340
        %v342 = vld [vmem:[%s341] sm:$0x1]
        %343 = vst [vmem:[%s122 + $0x2b] sm:$0x1] %v342
        %s344 = sadd.s32 %s124, 44
        %s345 = sld [smem:[#allocation3 + %s344]]
        %s346 = scalar_lea.vmem [#allocation4], %s345
        %v347 = vld [vmem:[%s346] sm:$0x1]
        %348 = vst [vmem:[%s122 + $0x2c] sm:$0x1] %v347
        %s349 = sadd.s32 %s124, 45
        %s350 = sld [smem:[#allocation3 + %s349]]
        %s351 = scalar_lea.vmem [#allocation4], %s350
        %v352 = vld [vmem:[%s351] sm:$0x1]
        %353 = vst [vmem:[%s122 + $0x2d] sm:$0x1] %v352
        %s354 = sadd.s32 %s124, 46
        %s355 = sld [smem:[#allocation3 + %s354]]
        %s356 = scalar_lea.vmem [#allocation4], %s355
        %v357 = vld [vmem:[%s356] sm:$0x1]
        %358 = vst [vmem:[%s122 + $0x2e] sm:$0x1] %v357
        %s359 = sadd.s32 %s124, 47
        %s360 = sld [smem:[#allocation3 + %s359]]
        %s361 = scalar_lea.vmem [#allocation4], %s360
        %v362 = vld [vmem:[%s361] sm:$0x1]
        %363 = vst [vmem:[%s122 + $0x2f] sm:$0x1] %v362
        %s364 = sadd.s32 %s124, 48
        %s365 = sld [smem:[#allocation3 + %s364]]
        %s366 = scalar_lea.vmem [#allocation4], %s365
        %v367 = vld [vmem:[%s366] sm:$0x1]
        %368 = vst [vmem:[%s122 + $0x30] sm:$0x1] %v367
        %s369 = sadd.s32 %s124, 49
        %s370 = sld [smem:[#allocation3 + %s369]]
        %s371 = scalar_lea.vmem [#allocation4], %s370
        %v372 = vld [vmem:[%s371] sm:$0x1]
        %373 = vst [vmem:[%s122 + $0x31] sm:$0x1] %v372
        %s374 = sadd.s32 %s124, 50
        %s375 = sld [smem:[#allocation3 + %s374]]
        %s376 = scalar_lea.vmem [#allocation4], %s375
        %v377 = vld [vmem:[%s376] sm:$0x1]
        %378 = vst [vmem:[%s122 + $0x32] sm:$0x1] %v377
        %s379 = sadd.s32 %s124, 51
        %s380 = sld [smem:[#allocation3 + %s379]]
        %s381 = scalar_lea.vmem [#allocation4], %s380
        %v382 = vld [vmem:[%s381] sm:$0x1]
        %383 = vst [vmem:[%s122 + $0x33] sm:$0x1] %v382
        %s384 = sadd.s32 %s124, 52
        %s385 = sld [smem:[#allocation3 + %s384]]
        %s386 = scalar_lea.vmem [#allocation4], %s385
        %v387 = vld [vmem:[%s386] sm:$0x1]
        %388 = vst [vmem:[%s122 + $0x34] sm:$0x1] %v387
        %s389 = sadd.s32 %s124, 53
        %s390 = sld [smem:[#allocation3 + %s389]]
        %s391 = scalar_lea.vmem [#allocation4], %s390
        %v392 = vld [vmem:[%s391] sm:$0x1]
        %393 = vst [vmem:[%s122 + $0x35] sm:$0x1] %v392
        %s394 = sadd.s32 %s124, 54
        %s395 = sld [smem:[#allocation3 + %s394]]
        %s396 = scalar_lea.vmem [#allocation4], %s395
        %v397 = vld [vmem:[%s396] sm:$0x1]
        %398 = vst [vmem:[%s122 + $0x36] sm:$0x1] %v397
        %s399 = sadd.s32 %s124, 55
        %s400 = sld [smem:[#allocation3 + %s399]]
        %s401 = scalar_lea.vmem [#allocation4], %s400
        %v402 = vld [vmem:[%s401] sm:$0x1]
        %403 = vst [vmem:[%s122 + $0x37] sm:$0x1] %v402
        %s404 = sadd.s32 %s124, 56
        %s405 = sld [smem:[#allocation3 + %s404]]
        %s406 = scalar_lea.vmem [#allocation4], %s405
        %v407 = vld [vmem:[%s406] sm:$0x1]
        %408 = vst [vmem:[%s122 + $0x38] sm:$0x1] %v407
        %s409 = sadd.s32 %s124, 57
        %s410 = sld [smem:[#allocation3 + %s409]]
        %s411 = scalar_lea.vmem [#allocation4], %s410
        %v412 = vld [vmem:[%s411] sm:$0x1]
        %413 = vst [vmem:[%s122 + $0x39] sm:$0x1] %v412
        %s414 = sadd.s32 %s124, 58
        %s415 = sld [smem:[#allocation3 + %s414]]
        %s416 = scalar_lea.vmem [#allocation4], %s415
        %v417 = vld [vmem:[%s416] sm:$0x1]
        %418 = vst [vmem:[%s122 + $0x3a] sm:$0x1] %v417
        %s419 = sadd.s32 %s124, 59
        %s420 = sld [smem:[#allocation3 + %s419]]
        %s421 = scalar_lea.vmem [#allocation4], %s420
        %v422 = vld [vmem:[%s421] sm:$0x1]
        %423 = vst [vmem:[%s122 + $0x3b] sm:$0x1] %v422
        %s424 = sadd.s32 %s124, 60
        %s425 = sld [smem:[#allocation3 + %s424]]
        %s426 = scalar_lea.vmem [#allocation4], %s425
        %v427 = vld [vmem:[%s426] sm:$0x1]
        %428 = vst [vmem:[%s122 + $0x3c] sm:$0x1] %v427
        %s429 = sadd.s32 %s124, 61
        %s430 = sld [smem:[#allocation3 + %s429]]
        %s431 = scalar_lea.vmem [#allocation4], %s430
        %v432 = vld [vmem:[%s431] sm:$0x1]
        %433 = vst [vmem:[%s122 + $0x3d] sm:$0x1] %v432
        %s434 = sadd.s32 %s124, 62
        %s435 = sld [smem:[#allocation3 + %s434]]
        %s436 = scalar_lea.vmem [#allocation4], %s435
        %v437 = vld [vmem:[%s436] sm:$0x1]
        %438 = vst [vmem:[%s122 + $0x3e] sm:$0x1] %v437
        %s439 = sadd.s32 %s124, 63
        %s440 = sld [smem:[#allocation3 + %s439]]
        %s441 = scalar_lea.vmem [#allocation4], %s440
        %v442 = vld [vmem:[%s441] sm:$0x1]
        %443 = vst [vmem:[%s122 + $0x3f] sm:$0x1] %v442
        %s444 = smul.u32 8, %s22
        %p445 = scmp.lt.s32.totalorder %s444, 31
        %s446 = scalar_select %p445, %s444, 31
        %s447 = smul.addr %s446, 8
        %s448 = scalar_lea.vmem %s2, %s447
        // Predicated region
        $region29: #{sasrec_forward.2} parent=23 // pred_check
          %p449 = pneg %p61
        $region30: #{sasrec_forward.2} parent=23 // pred_check_branch
          %451 = sbr.rel (%p449) target = $region32
        $region31: #{sasrec_forward.2} parent=23 // pred_region
          %s452 = smul.u32 8, %s22
        $region32: #{sasrec_forward.2} parent=23 // pred_fallthru
          _
      $region24: #{sasrec_forward.2} parent=5 // pred_fallthru
        _
      %p453 = scmp.le.s32.totalorder 2, %s17
      // Predicated region
      $region33: #{sasrec_forward.2} parent=5 // pred_check
        %p454 = pneg %p453
      $region34: #{sasrec_forward.2} parent=5 // pred_check_branch
        %456 = sbr.rel (%p454) target = $region36
      $region35: #{sasrec_forward.2} parent=5 // pred_region
        %s457 = ssub.s32 %s17, 2
        // Predicated region
        $region37: #{sasrec_forward.2} parent=35 // pred_check
          %p458 = pneg %p67
        $region38: #{sasrec_forward.2} parent=35 // pred_check_branch
          %460 = sbr.rel (%p458) target = $region40
        $region39: #{sasrec_forward.2} parent=35 // pred_region
          %s461 = smul.u32 8, %s23
          %p462 = scmp.lt.s32.totalorder %s461, 31
          %s463 = scalar_select %p462, %s461, 31
          %s464 = smul.addr %s463, 8
          %s465 = scalar_lea.vmem %s2, %s464
        $region40: #{sasrec_forward.2} parent=35 // pred_fallthru
          _
      $region36: #{sasrec_forward.2} parent=5 // pred_fallthru
        _
    $region6: #{sasrec_forward.2} parent=1 // loop_footer
      %s21 = sadd.s32 1, %s17
    $region7: #{sasrec_forward.2} parent=1 // loop_footer_branch
      %16 = sbr.rel target = $region3
    $region8: #{sasrec_forward.2} parent=1 // loop_exit
      _
    %466 = vsyncpa [#allocation5], 1
    %s467 = scalar_lea.sflag [#allocation5], 1
    %468 = vsyncpa %s467, 1

// kernel: sasrec_forward.3
$region0: #{sasrec_forward.3}
  #allocation0 [shape = 'u32[]', space=smem, size = 0x4, offset = 0x4, fixed_abs, tag = 'smem constant byte address 0x4 - core index']
  #allocation1 [shape = 'u32[72,128]{1,0:T(1,128)}', space=vmem, size = 0x9000, scoped, tag = 'internal scratch']
  %s0 = inlined_call_operand.vmem [shape: f32[16,8,128], index: 0, kind: input, shape index: {}]
  %s1 = inlined_call_operand.vmem [shape: bf16[128,128], index: 1, kind: input, shape index: {}]
  %s2 = inlined_call_operand.vmem [shape: bf16[2,128,128], index: 2, kind: input, shape index: {}]
  %s3 = inlined_call_operand.vmem [shape: f32[1,128], index: 3, kind: input, shape index: {}]
  %s4 = inlined_call_operand.vmem [shape: f32[16,8,128], index: 4, kind: output, shape index: {}]
  %s5 = sld [smem:[#allocation0]]
  $region26: #{sasrec_forward.3} parent=0
    _
  %s7 = ssub.s32 1, %s5
  %s8 = scalar_select 0, %s7, %s5
  // Predicated region
  $region2: #{sasrec_forward.3} parent=0 // pred_check
    _
  $region3: #{sasrec_forward.3} parent=0 // pred_check_branch
    %10 = sbr.rel (0) target = $region5
  $region4: #{sasrec_forward.3} parent=0 // pred_region
    _
  $region5: #{sasrec_forward.3} parent=0 // pred_fallthru
    _
  // Predicated region
  $region6: #{sasrec_forward.3} parent=0 // pred_check
    _
  $region7: #{sasrec_forward.3} parent=0 // pred_check_branch
    %12 = sbr.rel (0) target = $region9
  $region8: #{sasrec_forward.3} parent=0 // pred_region
    _
  $region9: #{sasrec_forward.3} parent=0 // pred_fallthru
    _
  // Predicated region
  $region10: #{sasrec_forward.3} parent=0 // pred_check
    _
  $region11: #{sasrec_forward.3} parent=0 // pred_check_branch
    %14 = sbr.rel (0) target = $region13
  $region12: #{sasrec_forward.3} parent=0 // pred_region
    _
  $region13: #{sasrec_forward.3} parent=0 // pred_fallthru
    _
  // Predicated region
  $region14: #{sasrec_forward.3} parent=0 // pred_check
    _
  $region15: #{sasrec_forward.3} parent=0 // pred_check_branch
    %16 = sbr.rel (0) target = $region17
  $region16: #{sasrec_forward.3} parent=0 // pred_region
    _
  $region17: #{sasrec_forward.3} parent=0 // pred_fallthru
    _
  %v17 = vld [vmem:[%s2] sm:$0xf]
  %v18 = vld [vmem:[%s2 + $0x4] sm:$0xf]
  %v19 = vld [vmem:[%s2 + $0x8] sm:$0xf]
  %v20 = vld [vmem:[%s2 + $0xc] sm:$0xf]
  %v21 = vld [vmem:[%s2 + $0x10] sm:$0xf]
  %v22 = vld [vmem:[%s2 + $0x14] sm:$0xf]
  %v23 = vld [vmem:[%s2 + $0x18] sm:$0xf]
  %v24 = vld [vmem:[%s2 + $0x1c] sm:$0xf]
  %v25 = vld [vmem:[%s2 + $0x20] sm:$0xf]
  %v26 = vld [vmem:[%s2 + $0x24] sm:$0xf]
  %v27 = vld [vmem:[%s2 + $0x28] sm:$0xf]
  %v28 = vld [vmem:[%s2 + $0x2c] sm:$0xf]
  %v29 = vld [vmem:[%s2 + $0x30] sm:$0xf]
  %v30 = vld [vmem:[%s2 + $0x34] sm:$0xf]
  %v31 = vld [vmem:[%s2 + $0x38] sm:$0xf]
  %v32 = vld [vmem:[%s2 + $0x3c] sm:$0xf]
  %s33 = scalar_lea.vmem %s2, 64
  %v34 = vld [vmem:[%s33] sm:$0xf]
  %v35 = vld [vmem:[%s33 + $0x4] sm:$0xf]
  %v36 = vld [vmem:[%s33 + $0x8] sm:$0xf]
  %v37 = vld [vmem:[%s33 + $0xc] sm:$0xf]
  %v38 = vld [vmem:[%s33 + $0x10] sm:$0xf]
  %v39 = vld [vmem:[%s33 + $0x14] sm:$0xf]
  %v40 = vld [vmem:[%s33 + $0x18] sm:$0xf]
  %v41 = vld [vmem:[%s33 + $0x1c] sm:$0xf]
  %v42 = vld [vmem:[%s33 + $0x20] sm:$0xf]
  %v43 = vld [vmem:[%s33 + $0x24] sm:$0xf]
  %v44 = vld [vmem:[%s33 + $0x28] sm:$0xf]
  %v45 = vld [vmem:[%s33 + $0x2c] sm:$0xf]
  %v46 = vld [vmem:[%s33 + $0x30] sm:$0xf]
  %v47 = vld [vmem:[%s33 + $0x34] sm:$0xf]
  %v48 = vld [vmem:[%s33 + $0x38] sm:$0xf]
  %v49 = vld [vmem:[%s33 + $0x3c] sm:$0xf]
  %v50 = vld [vmem:[%s1] sm:$0xf]
  %v51 = vld [vmem:[%s1 + $0x4] sm:$0xf]
  %v52 = vld [vmem:[%s1 + $0x8] sm:$0xf]
  %v53 = vld [vmem:[%s1 + $0xc] sm:$0xf]
  %v54 = vld [vmem:[%s1 + $0x10] sm:$0xf]
  %v55 = vld [vmem:[%s1 + $0x14] sm:$0xf]
  %v56 = vld [vmem:[%s1 + $0x18] sm:$0xf]
  %v57 = vld [vmem:[%s1 + $0x1c] sm:$0xf]
  %v58 = vld [vmem:[%s1 + $0x20] sm:$0xf]
  %v59 = vld [vmem:[%s1 + $0x24] sm:$0xf]
  %v60 = vld [vmem:[%s1 + $0x28] sm:$0xf]
  %v61 = vld [vmem:[%s1 + $0x2c] sm:$0xf]
  %v62 = vld [vmem:[%s1 + $0x30] sm:$0xf]
  %v63 = vld [vmem:[%s1 + $0x34] sm:$0xf]
  %v64 = vld [vmem:[%s1 + $0x38] sm:$0xf]
  %v65 = vld [vmem:[%s1 + $0x3c] sm:$0xf]
  %v66 = vld [vmem:[%s3] sm:$0x1]
  %v67 = vld [vmem:[%s0] sm:$0xff]
  %v68 = vtanh.pop %v67
  %v69 = vpack.c.bf16 %v68, %v68
  %v71 = vperm.slane %v66, 0
  %v89 = vunpack.c.l.b16 %v50
  %v90 = vunpack.c.l.b16 %v51
  %v91 = vunpack.c.l.b16 %v52
  %v92 = vunpack.c.l.b16 %v53
  %v93 = vunpack.c.l.b16 %v54
  %v94 = vunpack.c.l.b16 %v55
  %v95 = vunpack.c.l.b16 %v56
  %v96 = vunpack.c.l.b16 %v57
  %v97 = vunpack.c.l.b16 %v58
  %v98 = vunpack.c.l.b16 %v59
  %v99 = vunpack.c.l.b16 %v60
  %v100 = vunpack.c.l.b16 %v61
  %v101 = vunpack.c.l.b16 %v62
  %v102 = vunpack.c.l.b16 %v63
  %v103 = vunpack.c.l.b16 %v64
  %v104 = vunpack.c.l.b16 %v65
  %v105 = vpack.c.b16 %v90, %v89
  %v106 = vpack.c.b16 %v92, %v91
  %v107 = vpack.c.b16 %v94, %v93
  %v108 = vpack.c.b16 %v96, %v95
  %v109 = vpack.c.b16 %v98, %v97
  %v110 = vpack.c.b16 %v100, %v99
  %v111 = vpack.c.b16 %v102, %v101
  %v112 = vpack.c.b16 %v104, %v103
  %121 = vmatpush.bf16.msra.mxu0 %v112
  %122 = vmatpush.bf16.msra.mxu0 %v111
  %123 = vmatpush.bf16.msra.mxu0 %v110
  %124 = vmatpush.bf16.msra.mxu0 %v109
  %125 = vmatpush.bf16.msra.mxu0 %v108
  %126 = vmatpush.bf16.msra.mxu0 %v107
  %127 = vmatpush.bf16.msra.mxu0 %v106
  %128 = vmatpush.bf16.msra.mxu0 %v105
  %129 = vmatmul.bf16.gmra.mxu0 %v69
  %v130 = vpop.f32.mrf.mxu0
  %v131 = vadd.f32 %v71, %v130
  %v132 = vpop.f32.mrf.mxu0
  %133 = vdwg.mxu0
  %v134 = vtanh.pop %v131
  %v135 = vpack.c.bf16 %v134, %v134
  %136 = vst [vmem:[%s4] sm:$0xff] %v134
  %s137 = scalar_lea.vmem %s0, 8
  %v138 = vld [vmem:[%s137] sm:$0xff]
  %v155 = vunpack.c.l.b16 %v17
  %v156 = vunpack.c.l.b16 %v18
  %v157 = vunpack.c.l.b16 %v19
  %v158 = vunpack.c.l.b16 %v20
  %v159 = vunpack.c.l.b16 %v21
  %v160 = vunpack.c.l.b16 %v22
  %v161 = vunpack.c.l.b16 %v23
  %v162 = vunpack.c.l.b16 %v24
  %v163 = vunpack.c.l.b16 %v25
  %v164 = vunpack.c.l.b16 %v26
  %v165 = vunpack.c.l.b16 %v27
  %v166 = vunpack.c.l.b16 %v28
  %v167 = vunpack.c.l.b16 %v29
  %v168 = vunpack.c.l.b16 %v30
  %v169 = vunpack.c.l.b16 %v31
  %v170 = vunpack.c.l.b16 %v32
  %v171 = vpack.c.b16 %v156, %v155
  %v172 = vpack.c.b16 %v158, %v157
  %v173 = vpack.c.b16 %v160, %v159
  %v174 = vpack.c.b16 %v162, %v161
  %v175 = vpack.c.b16 %v164, %v163
  %v176 = vpack.c.b16 %v166, %v165
  %v177 = vpack.c.b16 %v168, %v167
  %v178 = vpack.c.b16 %v170, %v169
  %187 = vmatpush.bf16.msra.mxu0 %v178
  %188 = vmatpush.bf16.msra.mxu0 %v177
  %189 = vmatpush.bf16.msra.mxu0 %v176
  %190 = vmatpush.bf16.msra.mxu0 %v175
  %191 = vmatpush.bf16.msra.mxu0 %v174
  %192 = vmatpush.bf16.msra.mxu0 %v173
  %193 = vmatpush.bf16.msra.mxu0 %v172
  %194 = vmatpush.bf16.msra.mxu0 %v171
  %195 = vmatmul.bf16.gmra.mxu0 %v69
  %v196 = vpop.f32.mrf.mxu0
  %v197 = vadd.f32 0.0, %v196
  %v198 = vpop.f32.mrf.mxu0
  %199 = vdwg.mxu0
  %v200 = vadd.f32 %v138, %v197
  %v201 = vtanh.pop %v200
  %v202 = vpack.c.bf16 %v201, %v201
  %203 = vmatpush.bf16.msra.mxu0 %v112
  %204 = vmatpush.bf16.msra.mxu0 %v111
  %205 = vmatpush.bf16.msra.mxu0 %v110
  %206 = vmatpush.bf16.msra.mxu0 %v109
  %207 = vmatpush.bf16.msra.mxu0 %v108
  %208 = vmatpush.bf16.msra.mxu0 %v107
  %209 = vmatpush.bf16.msra.mxu0 %v106
  %210 = vmatpush.bf16.msra.mxu0 %v105
  %211 = vmatmul.bf16.gmra.mxu0 %v202
  %v212 = vpop.f32.mrf.mxu0
  %v213 = vadd.f32 %v71, %v212
  %v214 = vpop.f32.mrf.mxu0
  %215 = vdwg.mxu0
  %v232 = vunpack.c.l.b16 %v34
  %v233 = vunpack.c.l.b16 %v35
  %v234 = vunpack.c.l.b16 %v36
  %v235 = vunpack.c.l.b16 %v37
  %v236 = vunpack.c.l.b16 %v38
  %v237 = vunpack.c.l.b16 %v39
  %v238 = vunpack.c.l.b16 %v40
  %v239 = vunpack.c.l.b16 %v41
  %v240 = vunpack.c.l.b16 %v42
  %v241 = vunpack.c.l.b16 %v43
  %v242 = vunpack.c.l.b16 %v44
  %v243 = vunpack.c.l.b16 %v45
  %v244 = vunpack.c.l.b16 %v46
  %v245 = vunpack.c.l.b16 %v47
  %v246 = vunpack.c.l.b16 %v48
  %v247 = vunpack.c.l.b16 %v49
  %v248 = vpack.c.b16 %v233, %v232
  %v249 = vpack.c.b16 %v235, %v234
  %v250 = vpack.c.b16 %v237, %v236
  %v251 = vpack.c.b16 %v239, %v238
  %v252 = vpack.c.b16 %v241, %v240
  %v253 = vpack.c.b16 %v243, %v242
  %v254 = vpack.c.b16 %v245, %v244
  %v255 = vpack.c.b16 %v247, %v246
  %264 = vmatpush.bf16.msra.mxu0 %v255
  %265 = vmatpush.bf16.msra.mxu0 %v254
  %266 = vmatpush.bf16.msra.mxu0 %v253
  %267 = vmatpush.bf16.msra.mxu0 %v252
  %268 = vmatpush.bf16.msra.mxu0 %v251
  %269 = vmatpush.bf16.msra.mxu0 %v250
  %270 = vmatpush.bf16.msra.mxu0 %v249
  %271 = vmatpush.bf16.msra.mxu0 %v248
  %272 = vmatmul.bf16.gmra.mxu0 %v135
  %v273 = vpop.f32.mrf.mxu0
  %v274 = vadd.f32 0.0, %v273
  %v275 = vpop.f32.mrf.mxu0
  %276 = vdwg.mxu0
  %v277 = vadd.f32 %v213, %v274
  %v278 = vtanh.pop %v277
  %v279 = vpack.c.bf16 %v278, %v278
  %s280 = scalar_lea.vmem %s4, 8
  %281 = vst [vmem:[%s280] sm:$0xff] %v278
  %s282 = scalar_lea.vmem %s0, 16
  %v283 = vld [vmem:[%s282] sm:$0xff]
  %284 = vmatpush.bf16.msra.mxu0 %v178
  %285 = vmatpush.bf16.msra.mxu0 %v177
  %286 = vmatpush.bf16.msra.mxu0 %v176
  %287 = vmatpush.bf16.msra.mxu0 %v175
  %288 = vmatpush.bf16.msra.mxu0 %v174
  %289 = vmatpush.bf16.msra.mxu0 %v173
  %290 = vmatpush.bf16.msra.mxu0 %v172
  %291 = vmatpush.bf16.msra.mxu0 %v171
  %292 = vmatmul.bf16.gmra.mxu0 %v202
  %v293 = vpop.f32.mrf.mxu0
  %v294 = vadd.f32 0.0, %v293
  %v295 = vpop.f32.mrf.mxu0
  %296 = vdwg.mxu0
  %v297 = vadd.f32 %v283, %v294
  %v298 = vtanh.pop %v297
  %v299 = vpack.c.bf16 %v298, %v298
  %300 = vmatpush.bf16.msra.mxu0 %v112
  %301 = vmatpush.bf16.msra.mxu0 %v111
  %302 = vmatpush.bf16.msra.mxu0 %v110
  %303 = vmatpush.bf16.msra.mxu0 %v109
  %304 = vmatpush.bf16.msra.mxu0 %v108
  %305 = vmatpush.bf16.msra.mxu0 %v107
  %306 = vmatpush.bf16.msra.mxu0 %v106
  %307 = vmatpush.bf16.msra.mxu0 %v105
  %308 = vmatmul.bf16.gmra.mxu0 %v299
  %v309 = vpop.f32.mrf.mxu0
  %v310 = vadd.f32 %v71, %v309
  %v311 = vpop.f32.mrf.mxu0
  %312 = vdwg.mxu0
  %313 = vmatpush.bf16.msra.mxu0 %v255
  %314 = vmatpush.bf16.msra.mxu0 %v254
  %315 = vmatpush.bf16.msra.mxu0 %v253
  %316 = vmatpush.bf16.msra.mxu0 %v252
  %317 = vmatpush.bf16.msra.mxu0 %v251
  %318 = vmatpush.bf16.msra.mxu0 %v250
  %319 = vmatpush.bf16.msra.mxu0 %v249
  %320 = vmatpush.bf16.msra.mxu0 %v248
  %321 = vmatmul.bf16.gmra.mxu0 %v279
  %v322 = vpop.f32.mrf.mxu0
  %v323 = vadd.f32 0.0, %v322
  %v324 = vpop.f32.mrf.mxu0
  %325 = vdwg.mxu0
  %v326 = vadd.f32 %v310, %v323
  %v327 = vtanh.pop %v326
  %v328 = vpack.c.bf16 %v327, %v327
  %s329 = scalar_lea.vmem %s4, 16
  %330 = vst [vmem:[%s329] sm:$0xff] %v327
  %s331 = scalar_lea.vmem %s0, 24
  %v332 = vld [vmem:[%s331] sm:$0xff]
  %333 = vmatpush.bf16.msra.mxu0 %v178
  %334 = vmatpush.bf16.msra.mxu0 %v177
  %335 = vmatpush.bf16.msra.mxu0 %v176
  %336 = vmatpush.bf16.msra.mxu0 %v175
  %337 = vmatpush.bf16.msra.mxu0 %v174
  %338 = vmatpush.bf16.msra.mxu0 %v173
  %339 = vmatpush.bf16.msra.mxu0 %v172
  %340 = vmatpush.bf16.msra.mxu0 %v171
  %341 = vmatmul.bf16.gmra.mxu0 %v299
  %v342 = vpop.f32.mrf.mxu0
  %v343 = vadd.f32 0.0, %v342
  %v344 = vpop.f32.mrf.mxu0
  %345 = vdwg.mxu0
  %v346 = vadd.f32 %v332, %v343
  %v347 = vtanh.pop %v346
  %v348 = vpack.c.bf16 %v347, %v347
  %349 = vmatpush.bf16.msra.mxu0 %v112
  %350 = vmatpush.bf16.msra.mxu0 %v111
  %351 = vmatpush.bf16.msra.mxu0 %v110
  %352 = vmatpush.bf16.msra.mxu0 %v109
  %353 = vmatpush.bf16.msra.mxu0 %v108
  %354 = vmatpush.bf16.msra.mxu0 %v107
  %355 = vmatpush.bf16.msra.mxu0 %v106
  %356 = vmatpush.bf16.msra.mxu0 %v105
  %357 = vmatmul.bf16.gmra.mxu0 %v348
  %v358 = vpop.f32.mrf.mxu0
  %v359 = vadd.f32 %v71, %v358
  %v360 = vpop.f32.mrf.mxu0
  %361 = vdwg.mxu0
  %362 = vmatpush.bf16.msra.mxu0 %v255
  %363 = vmatpush.bf16.msra.mxu0 %v254
  %364 = vmatpush.bf16.msra.mxu0 %v253
  %365 = vmatpush.bf16.msra.mxu0 %v252
  %366 = vmatpush.bf16.msra.mxu0 %v251
  %367 = vmatpush.bf16.msra.mxu0 %v250
  %368 = vmatpush.bf16.msra.mxu0 %v249
  %369 = vmatpush.bf16.msra.mxu0 %v248
  %370 = vmatmul.bf16.gmra.mxu0 %v328
  %v371 = vpop.f32.mrf.mxu0
  %v372 = vadd.f32 0.0, %v371
  %v373 = vpop.f32.mrf.mxu0
  %374 = vdwg.mxu0
  %v375 = vadd.f32 %v359, %v372
  %v376 = vtanh.pop %v375
  %v377 = vpack.c.bf16 %v376, %v376
  %s378 = scalar_lea.vmem %s4, 24
  %379 = vst [vmem:[%s378] sm:$0xff] %v376
  %s380 = scalar_lea.vmem %s0, 32
  %v381 = vld [vmem:[%s380] sm:$0xff]
  %382 = vmatpush.bf16.msra.mxu0 %v178
  %383 = vmatpush.bf16.msra.mxu0 %v177
  %384 = vmatpush.bf16.msra.mxu0 %v176
  %385 = vmatpush.bf16.msra.mxu0 %v175
  %386 = vmatpush.bf16.msra.mxu0 %v174
  %387 = vmatpush.bf16.msra.mxu0 %v173
  %388 = vmatpush.bf16.msra.mxu0 %v172
  %389 = vmatpush.bf16.msra.mxu0 %v171
  %390 = vmatmul.bf16.gmra.mxu0 %v348
  %v391 = vpop.f32.mrf.mxu0
  %v392 = vadd.f32 0.0, %v391
  %v393 = vpop.f32.mrf.mxu0
  %394 = vdwg.mxu0
  %v395 = vadd.f32 %v381, %v392
  %v396 = vtanh.pop %v395
  %v397 = vpack.c.bf16 %v396, %v396
  %398 = vmatpush.bf16.msra.mxu0 %v112
  %399 = vmatpush.bf16.msra.mxu0 %v111
  %400 = vmatpush.bf16.msra.mxu0 %v110
  %401 = vmatpush.bf16.msra.mxu0 %v109
  %402 = vmatpush.bf16.msra.mxu0 %v108
  %403 = vmatpush.bf16.msra.mxu0 %v107
  %404 = vmatpush.bf16.msra.mxu0 %v106
  %405 = vmatpush.bf16.msra.mxu0 %v105
  %406 = vmatmul.bf16.gmra.mxu0 %v397
  %v407 = vpop.f32.mrf.mxu0
  %v408 = vadd.f32 %v71, %v407
  %v409 = vpop.f32.mrf.mxu0
  %410 = vdwg.mxu0
  %411 = vmatpush.bf16.msra.mxu0 %v255
  %412 = vmatpush.bf16.msra.mxu0 %v254
  %413 = vmatpush.bf16.msra.mxu0 %v253
  %414 = vmatpush.bf16.msra.mxu0 %v252
  %415 = vmatpush.bf16.msra.mxu0 %v251
  %416 = vmatpush.bf16.msra.mxu0 %v250
  %417 = vmatpush.bf16.msra.mxu0 %v249
  %418 = vmatpush.bf16.msra.mxu0 %v248
  %419 = vmatmul.bf16.gmra.mxu0 %v377
  %v420 = vpop.f32.mrf.mxu0
  %v421 = vadd.f32 0.0, %v420
  %v422 = vpop.f32.mrf.mxu0
  %423 = vdwg.mxu0
  %v424 = vadd.f32 %v408, %v421
  %v425 = vtanh.pop %v424
  %v426 = vpack.c.bf16 %v425, %v425
  %s427 = scalar_lea.vmem %s4, 32
  %428 = vst [vmem:[%s427] sm:$0xff] %v425
  %s429 = scalar_lea.vmem %s0, 40
  %v430 = vld [vmem:[%s429] sm:$0xff]
  %431 = vmatpush.bf16.msra.mxu0 %v178
  %432 = vmatpush.bf16.msra.mxu0 %v177
  %433 = vmatpush.bf16.msra.mxu0 %v176
  %434 = vmatpush.bf16.msra.mxu0 %v175
  %435 = vmatpush.bf16.msra.mxu0 %v174
  %436 = vmatpush.bf16.msra.mxu0 %v173
  %437 = vmatpush.bf16.msra.mxu0 %v172
  %438 = vmatpush.bf16.msra.mxu0 %v171
  %439 = vmatmul.bf16.gmra.mxu0 %v397
  %v440 = vpop.f32.mrf.mxu0
  %v441 = vadd.f32 0.0, %v440
  %v442 = vpop.f32.mrf.mxu0
  %443 = vdwg.mxu0
  %v444 = vadd.f32 %v430, %v441
  %v445 = vtanh.pop %v444
  %v446 = vpack.c.bf16 %v445, %v445
  %447 = vmatpush.bf16.msra.mxu0 %v112
  %448 = vmatpush.bf16.msra.mxu0 %v111
  %449 = vmatpush.bf16.msra.mxu0 %v110
  %450 = vmatpush.bf16.msra.mxu0 %v109
  %451 = vmatpush.bf16.msra.mxu0 %v108
  %452 = vmatpush.bf16.msra.mxu0 %v107
  %453 = vmatpush.bf16.msra.mxu0 %v106
  %454 = vmatpush.bf16.msra.mxu0 %v105
  %455 = vmatmul.bf16.gmra.mxu0 %v446
  %v456 = vpop.f32.mrf.mxu0
  %v457 = vadd.f32 %v71, %v456
  %v458 = vpop.f32.mrf.mxu0
  %459 = vdwg.mxu0
  %460 = vmatpush.bf16.msra.mxu0 %v255
  %461 = vmatpush.bf16.msra.mxu0 %v254
  %462 = vmatpush.bf16.msra.mxu0 %v253
  %463 = vmatpush.bf16.msra.mxu0 %v252
  %464 = vmatpush.bf16.msra.mxu0 %v251
  %465 = vmatpush.bf16.msra.mxu0 %v250
  %466 = vmatpush.bf16.msra.mxu0 %v249
  %467 = vmatpush.bf16.msra.mxu0 %v248
  %468 = vmatmul.bf16.gmra.mxu0 %v426
  %v469 = vpop.f32.mrf.mxu0
  %v470 = vadd.f32 0.0, %v469
  %v471 = vpop.f32.mrf.mxu0
  %472 = vdwg.mxu0
  %v473 = vadd.f32 %v457, %v470
  %v474 = vtanh.pop %v473
  %v475 = vpack.c.bf16 %v474, %v474
  %s476 = scalar_lea.vmem %s4, 40
  %477 = vst [vmem:[%s476] sm:$0xff] %v474
  %s478 = scalar_lea.vmem %s0, 48
  %v479 = vld [vmem:[%s478] sm:$0xff]
  %480 = vmatpush.bf16.msra.mxu0 %v178
  %481 = vmatpush.bf16.msra.mxu0 %v177
  %482 = vmatpush.bf16.msra.mxu0 %v176
  %483 = vmatpush.bf16.msra.mxu0 %v175
  %484 = vmatpush.bf16.msra.mxu0 %v174
  %485 = vmatpush.bf16.msra.mxu0 %v173
  %486 = vmatpush.bf16.msra.mxu0 %v172
  %487 = vmatpush.bf16.msra.mxu0 %v171
  %488 = vmatmul.bf16.gmra.mxu0 %v446
  %v489 = vpop.f32.mrf.mxu0
  %v490 = vadd.f32 0.0, %v489
  %v491 = vpop.f32.mrf.mxu0
  %492 = vdwg.mxu0
  %v493 = vadd.f32 %v479, %v490
  %v494 = vtanh.pop %v493
  %v495 = vpack.c.bf16 %v494, %v494
  %496 = vmatpush.bf16.msra.mxu0 %v112
  %497 = vmatpush.bf16.msra.mxu0 %v111
  %498 = vmatpush.bf16.msra.mxu0 %v110
  %499 = vmatpush.bf16.msra.mxu0 %v109
  %500 = vmatpush.bf16.msra.mxu0 %v108
  %501 = vmatpush.bf16.msra.mxu0 %v107
  %502 = vmatpush.bf16.msra.mxu0 %v106
  %503 = vmatpush.bf16.msra.mxu0 %v105
  %504 = vmatmul.bf16.gmra.mxu0 %v495
  %v505 = vpop.f32.mrf.mxu0
  %v506 = vadd.f32 %v71, %v505
  %v507 = vpop.f32.mrf.mxu0
  %508 = vdwg.mxu0
  %509 = vmatpush.bf16.msra.mxu0 %v255
  %510 = vmatpush.bf16.msra.mxu0 %v254
  %511 = vmatpush.bf16.msra.mxu0 %v253
  %512 = vmatpush.bf16.msra.mxu0 %v252
  %513 = vmatpush.bf16.msra.mxu0 %v251
  %514 = vmatpush.bf16.msra.mxu0 %v250
  %515 = vmatpush.bf16.msra.mxu0 %v249
  %516 = vmatpush.bf16.msra.mxu0 %v248
  %517 = vmatmul.bf16.gmra.mxu0 %v475
  %v518 = vpop.f32.mrf.mxu0
  %v519 = vadd.f32 0.0, %v518
  %v520 = vpop.f32.mrf.mxu0
  %521 = vdwg.mxu0
  %v522 = vadd.f32 %v506, %v519
  %v523 = vtanh.pop %v522
  %v524 = vpack.c.bf16 %v523, %v523
  %s525 = scalar_lea.vmem %s4, 48
  %526 = vst [vmem:[%s525] sm:$0xff] %v523
  %s527 = scalar_lea.vmem %s0, 56
  %v528 = vld [vmem:[%s527] sm:$0xff]
  %529 = vmatpush.bf16.msra.mxu0 %v178
  %530 = vmatpush.bf16.msra.mxu0 %v177
  %531 = vmatpush.bf16.msra.mxu0 %v176
  %532 = vmatpush.bf16.msra.mxu0 %v175
  %533 = vmatpush.bf16.msra.mxu0 %v174
  %534 = vmatpush.bf16.msra.mxu0 %v173
  %535 = vmatpush.bf16.msra.mxu0 %v172
  %536 = vmatpush.bf16.msra.mxu0 %v171
  %537 = vmatmul.bf16.gmra.mxu0 %v495
  %v538 = vpop.f32.mrf.mxu0
  %v539 = vadd.f32 0.0, %v538
  %v540 = vpop.f32.mrf.mxu0
  %541 = vdwg.mxu0
  %v542 = vadd.f32 %v528, %v539
  %v543 = vtanh.pop %v542
  %v544 = vpack.c.bf16 %v543, %v543
  %545 = vmatpush.bf16.msra.mxu0 %v112
  %546 = vmatpush.bf16.msra.mxu0 %v111
  %547 = vmatpush.bf16.msra.mxu0 %v110
  %548 = vmatpush.bf16.msra.mxu0 %v109
  %549 = vmatpush.bf16.msra.mxu0 %v108
  %550 = vmatpush.bf16.msra.mxu0 %v107
  %551 = vmatpush.bf16.msra.mxu0 %v106
  %552 = vmatpush.bf16.msra.mxu0 %v105
  %553 = vmatmul.bf16.gmra.mxu0 %v544
  %v554 = vpop.f32.mrf.mxu0
  %v555 = vadd.f32 %v71, %v554
  %v556 = vpop.f32.mrf.mxu0
  %557 = vdwg.mxu0
  %558 = vmatpush.bf16.msra.mxu0 %v255
  %559 = vmatpush.bf16.msra.mxu0 %v254
  %560 = vmatpush.bf16.msra.mxu0 %v253
  %561 = vmatpush.bf16.msra.mxu0 %v252
  %562 = vmatpush.bf16.msra.mxu0 %v251
  %563 = vmatpush.bf16.msra.mxu0 %v250
  %564 = vmatpush.bf16.msra.mxu0 %v249
  %565 = vmatpush.bf16.msra.mxu0 %v248
  %566 = vmatmul.bf16.gmra.mxu0 %v524
  %v567 = vpop.f32.mrf.mxu0
  %v568 = vadd.f32 0.0, %v567
  %v569 = vpop.f32.mrf.mxu0
  %570 = vdwg.mxu0
  %v571 = vadd.f32 %v555, %v568
  %v572 = vtanh.pop %v571
  %v573 = vpack.c.bf16 %v572, %v572
  %s574 = scalar_lea.vmem %s4, 56
  %575 = vst [vmem:[%s574] sm:$0xff] %v572
  %s576 = scalar_lea.vmem %s0, 64
  %v577 = vld [vmem:[%s576] sm:$0xff]
  %578 = vmatpush.bf16.msra.mxu0 %v178
  %579 = vmatpush.bf16.msra.mxu0 %v177
  %580 = vmatpush.bf16.msra.mxu0 %v176
  %581 = vmatpush.bf16.msra.mxu0 %v175
  %582 = vmatpush.bf16.msra.mxu0 %v174
  %583 = vmatpush.bf16.msra.mxu0 %v173
  %584 = vmatpush.bf16.msra.mxu0 %v172
  %585 = vmatpush.bf16.msra.mxu0 %v171
  %586 = vmatmul.bf16.gmra.mxu0 %v544
  %v587 = vpop.f32.mrf.mxu0
  %v588 = vadd.f32 0.0, %v587
  %v589 = vpop.f32.mrf.mxu0
  %590 = vdwg.mxu0
  %v591 = vadd.f32 %v577, %v588
  %v592 = vtanh.pop %v591
  %v593 = vpack.c.bf16 %v592, %v592
  %594 = vmatpush.bf16.msra.mxu0 %v112
  %595 = vmatpush.bf16.msra.mxu0 %v111
  %596 = vmatpush.bf16.msra.mxu0 %v110
  %597 = vmatpush.bf16.msra.mxu0 %v109
  %598 = vmatpush.bf16.msra.mxu0 %v108
  %599 = vmatpush.bf16.msra.mxu0 %v107
  %600 = vmatpush.bf16.msra.mxu0 %v106
  %601 = vmatpush.bf16.msra.mxu0 %v105
  %602 = vmatmul.bf16.gmra.mxu0 %v593
  %v603 = vpop.f32.mrf.mxu0
  %v604 = vadd.f32 %v71, %v603
  %v605 = vpop.f32.mrf.mxu0
  %606 = vdwg.mxu0
  %607 = vmatpush.bf16.msra.mxu0 %v255
  %608 = vmatpush.bf16.msra.mxu0 %v254
  %609 = vmatpush.bf16.msra.mxu0 %v253
  %610 = vmatpush.bf16.msra.mxu0 %v252
  %611 = vmatpush.bf16.msra.mxu0 %v251
  %612 = vmatpush.bf16.msra.mxu0 %v250
  %613 = vmatpush.bf16.msra.mxu0 %v249
  %614 = vmatpush.bf16.msra.mxu0 %v248
  %615 = vmatmul.bf16.gmra.mxu0 %v573
  %v616 = vpop.f32.mrf.mxu0
  %v617 = vadd.f32 0.0, %v616
  %v618 = vpop.f32.mrf.mxu0
  %619 = vdwg.mxu0
  %v620 = vadd.f32 %v604, %v617
  %v621 = vtanh.pop %v620
  %v622 = vpack.c.bf16 %v621, %v621
  %s623 = scalar_lea.vmem %s4, 64
  %624 = vst [vmem:[%s623] sm:$0xff] %v621
  %s625 = scalar_lea.vmem %s0, 72
  %v626 = vld [vmem:[%s625] sm:$0xff]
  %627 = vmatpush.bf16.msra.mxu0 %v178
  %628 = vmatpush.bf16.msra.mxu0 %v177
  %629 = vmatpush.bf16.msra.mxu0 %v176
  %630 = vmatpush.bf16.msra.mxu0 %v175
  %631 = vmatpush.bf16.msra.mxu0 %v174
  %632 = vmatpush.bf16.msra.mxu0 %v173
  %633 = vmatpush.bf16.msra.mxu0 %v172
  %634 = vmatpush.bf16.msra.mxu0 %v171
  %635 = vmatmul.bf16.gmra.mxu0 %v593
  %v636 = vpop.f32.mrf.mxu0
  %v637 = vadd.f32 0.0, %v636
  %v638 = vpop.f32.mrf.mxu0
  %639 = vdwg.mxu0
  %v640 = vadd.f32 %v626, %v637
  %v641 = vtanh.pop %v640
  %v642 = vpack.c.bf16 %v641, %v641
  %643 = vmatpush.bf16.msra.mxu0 %v112
  %644 = vmatpush.bf16.msra.mxu0 %v111
  %645 = vmatpush.bf16.msra.mxu0 %v110
  %646 = vmatpush.bf16.msra.mxu0 %v109
  %647 = vmatpush.bf16.msra.mxu0 %v108
  %648 = vmatpush.bf16.msra.mxu0 %v107
  %649 = vmatpush.bf16.msra.mxu0 %v106
  %650 = vmatpush.bf16.msra.mxu0 %v105
  %651 = vmatmul.bf16.gmra.mxu0 %v642
  %v652 = vpop.f32.mrf.mxu0
  %v653 = vadd.f32 %v71, %v652
  %v654 = vpop.f32.mrf.mxu0
  %655 = vdwg.mxu0
  %656 = vmatpush.bf16.msra.mxu0 %v255
  %657 = vmatpush.bf16.msra.mxu0 %v254
  %658 = vmatpush.bf16.msra.mxu0 %v253
  %659 = vmatpush.bf16.msra.mxu0 %v252
  %660 = vmatpush.bf16.msra.mxu0 %v251
  %661 = vmatpush.bf16.msra.mxu0 %v250
  %662 = vmatpush.bf16.msra.mxu0 %v249
  %663 = vmatpush.bf16.msra.mxu0 %v248
  %664 = vmatmul.bf16.gmra.mxu0 %v622
  %v665 = vpop.f32.mrf.mxu0
  %v666 = vadd.f32 0.0, %v665
  %v667 = vpop.f32.mrf.mxu0
  %668 = vdwg.mxu0
  %v669 = vadd.f32 %v653, %v666
  %v670 = vtanh.pop %v669
  %v671 = vpack.c.bf16 %v670, %v670
  %s672 = scalar_lea.vmem %s4, 72
  %673 = vst [vmem:[%s672] sm:$0xff] %v670
  %s674 = scalar_lea.vmem %s0, 80
  %v675 = vld [vmem:[%s674] sm:$0xff]
  %676 = vmatpush.bf16.msra.mxu0 %v178
  %677 = vmatpush.bf16.msra.mxu0 %v177
  %678 = vmatpush.bf16.msra.mxu0 %v176
  %679 = vmatpush.bf16.msra.mxu0 %v175
  %680 = vmatpush.bf16.msra.mxu0 %v174
  %681 = vmatpush.bf16.msra.mxu0 %v173
  %682 = vmatpush.bf16.msra.mxu0 %v172
  %683 = vmatpush.bf16.msra.mxu0 %v171
  %684 = vmatmul.bf16.gmra.mxu0 %v642
  %v685 = vpop.f32.mrf.mxu0
  %v686 = vadd.f32 0.0, %v685
  %v687 = vpop.f32.mrf.mxu0
  %688 = vdwg.mxu0
  %v689 = vadd.f32 %v675, %v686
  %v690 = vtanh.pop %v689
  %v691 = vpack.c.bf16 %v690, %v690
  %692 = vmatpush.bf16.msra.mxu0 %v112
  %693 = vmatpush.bf16.msra.mxu0 %v111
  %694 = vmatpush.bf16.msra.mxu0 %v110
  %695 = vmatpush.bf16.msra.mxu0 %v109
  %696 = vmatpush.bf16.msra.mxu0 %v108
  %697 = vmatpush.bf16.msra.mxu0 %v107
  %698 = vmatpush.bf16.msra.mxu0 %v106
  %699 = vmatpush.bf16.msra.mxu0 %v105
  %700 = vmatmul.bf16.gmra.mxu0 %v691
  %v701 = vpop.f32.mrf.mxu0
  %v702 = vadd.f32 %v71, %v701
  %v703 = vpop.f32.mrf.mxu0
  %704 = vdwg.mxu0
  %705 = vmatpush.bf16.msra.mxu0 %v255
  %706 = vmatpush.bf16.msra.mxu0 %v254
  %707 = vmatpush.bf16.msra.mxu0 %v253
  %708 = vmatpush.bf16.msra.mxu0 %v252
  %709 = vmatpush.bf16.msra.mxu0 %v251
  %710 = vmatpush.bf16.msra.mxu0 %v250
  %711 = vmatpush.bf16.msra.mxu0 %v249
  %712 = vmatpush.bf16.msra.mxu0 %v248
  %713 = vmatmul.bf16.gmra.mxu0 %v671
  %v714 = vpop.f32.mrf.mxu0
  %v715 = vadd.f32 0.0, %v714
  %v716 = vpop.f32.mrf.mxu0
  %717 = vdwg.mxu0
  %v718 = vadd.f32 %v702, %v715
  %v719 = vtanh.pop %v718
  %v720 = vpack.c.bf16 %v719, %v719
  %s721 = scalar_lea.vmem %s4, 80
  %722 = vst [vmem:[%s721] sm:$0xff] %v719
  %s723 = scalar_lea.vmem %s0, 88
  %v724 = vld [vmem:[%s723] sm:$0xff]
  %725 = vmatpush.bf16.msra.mxu0 %v178
  %726 = vmatpush.bf16.msra.mxu0 %v177
  %727 = vmatpush.bf16.msra.mxu0 %v176
  %728 = vmatpush.bf16.msra.mxu0 %v175
  %729 = vmatpush.bf16.msra.mxu0 %v174
  %730 = vmatpush.bf16.msra.mxu0 %v173
  %731 = vmatpush.bf16.msra.mxu0 %v172
  %732 = vmatpush.bf16.msra.mxu0 %v171
  %733 = vmatmul.bf16.gmra.mxu0 %v691
  %v734 = vpop.f32.mrf.mxu0
  %v735 = vadd.f32 0.0, %v734
  %v736 = vpop.f32.mrf.mxu0
  %737 = vdwg.mxu0
  %v738 = vadd.f32 %v724, %v735
  %v739 = vtanh.pop %v738
  %v740 = vpack.c.bf16 %v739, %v739
  %741 = vmatpush.bf16.msra.mxu0 %v112
  %742 = vmatpush.bf16.msra.mxu0 %v111
  %743 = vmatpush.bf16.msra.mxu0 %v110
  %744 = vmatpush.bf16.msra.mxu0 %v109
  %745 = vmatpush.bf16.msra.mxu0 %v108
  %746 = vmatpush.bf16.msra.mxu0 %v107
  %747 = vmatpush.bf16.msra.mxu0 %v106
  %748 = vmatpush.bf16.msra.mxu0 %v105
  %749 = vmatmul.bf16.gmra.mxu0 %v740
  %v750 = vpop.f32.mrf.mxu0
  %v751 = vadd.f32 %v71, %v750
  %v752 = vpop.f32.mrf.mxu0
  %753 = vdwg.mxu0
  %754 = vmatpush.bf16.msra.mxu0 %v255
  %755 = vmatpush.bf16.msra.mxu0 %v254
  %756 = vmatpush.bf16.msra.mxu0 %v253
  %757 = vmatpush.bf16.msra.mxu0 %v252
  %758 = vmatpush.bf16.msra.mxu0 %v251
  %759 = vmatpush.bf16.msra.mxu0 %v250
  %760 = vmatpush.bf16.msra.mxu0 %v249
  %761 = vmatpush.bf16.msra.mxu0 %v248
  %762 = vmatmul.bf16.gmra.mxu0 %v720
  %v763 = vpop.f32.mrf.mxu0
  %v764 = vadd.f32 0.0, %v763
  %v765 = vpop.f32.mrf.mxu0
  %766 = vdwg.mxu0
  %v767 = vadd.f32 %v751, %v764
  %v768 = vtanh.pop %v767
  %v769 = vpack.c.bf16 %v768, %v768
  %s770 = scalar_lea.vmem %s4, 88
  %771 = vst [vmem:[%s770] sm:$0xff] %v768
  %s772 = scalar_lea.vmem %s0, 96
  %v773 = vld [vmem:[%s772] sm:$0xff]
  %774 = vmatpush.bf16.msra.mxu0 %v178
  %775 = vmatpush.bf16.msra.mxu0 %v177
  %776 = vmatpush.bf16.msra.mxu0 %v176
  %777 = vmatpush.bf16.msra.mxu0 %v175
  %778 = vmatpush.bf16.msra.mxu0 %v174
  %779 = vmatpush.bf16.msra.mxu0 %v173
  %780 = vmatpush.bf16.msra.mxu0 %v172
  %781 = vmatpush.bf16.msra.mxu0 %v171
  %782 = vmatmul.bf16.gmra.mxu0 %v740
  %v783 = vpop.f32.mrf.mxu0
  %v784 = vadd.f32 0.0, %v783
  %v785 = vpop.f32.mrf.mxu0
  %786 = vdwg.mxu0
  %v787 = vadd.f32 %v773, %v784
  %v788 = vtanh.pop %v787
  %v789 = vpack.c.bf16 %v788, %v788
  %790 = vmatpush.bf16.msra.mxu0 %v112
  %791 = vmatpush.bf16.msra.mxu0 %v111
  %792 = vmatpush.bf16.msra.mxu0 %v110
  %793 = vmatpush.bf16.msra.mxu0 %v109
  %794 = vmatpush.bf16.msra.mxu0 %v108
  %795 = vmatpush.bf16.msra.mxu0 %v107
  %796 = vmatpush.bf16.msra.mxu0 %v106
  %797 = vmatpush.bf16.msra.mxu0 %v105
  %798 = vmatmul.bf16.gmra.mxu0 %v789
  %v799 = vpop.f32.mrf.mxu0
  %v800 = vadd.f32 %v71, %v799
  %v801 = vpop.f32.mrf.mxu0
  %802 = vdwg.mxu0
  %803 = vmatpush.bf16.msra.mxu0 %v255
  %804 = vmatpush.bf16.msra.mxu0 %v254
  %805 = vmatpush.bf16.msra.mxu0 %v253
  %806 = vmatpush.bf16.msra.mxu0 %v252
  %807 = vmatpush.bf16.msra.mxu0 %v251
  %808 = vmatpush.bf16.msra.mxu0 %v250
  %809 = vmatpush.bf16.msra.mxu0 %v249
  %810 = vmatpush.bf16.msra.mxu0 %v248
  %811 = vmatmul.bf16.gmra.mxu0 %v769
  %v812 = vpop.f32.mrf.mxu0
  %v813 = vadd.f32 0.0, %v812
  %v814 = vpop.f32.mrf.mxu0
  %815 = vdwg.mxu0
  %v816 = vadd.f32 %v800, %v813
  %v817 = vtanh.pop %v816
  %v818 = vpack.c.bf16 %v817, %v817
  %s819 = scalar_lea.vmem %s4, 96
  %820 = vst [vmem:[%s819] sm:$0xff] %v817
  %s821 = scalar_lea.vmem %s0, 104
  %v822 = vld [vmem:[%s821] sm:$0xff]
  %823 = vmatpush.bf16.msra.mxu0 %v178
  %824 = vmatpush.bf16.msra.mxu0 %v177
  %825 = vmatpush.bf16.msra.mxu0 %v176
  %826 = vmatpush.bf16.msra.mxu0 %v175
  %827 = vmatpush.bf16.msra.mxu0 %v174
  %828 = vmatpush.bf16.msra.mxu0 %v173
  %829 = vmatpush.bf16.msra.mxu0 %v172
  %830 = vmatpush.bf16.msra.mxu0 %v171
  %831 = vmatmul.bf16.gmra.mxu0 %v789
  %v832 = vpop.f32.mrf.mxu0
  %v833 = vadd.f32 0.0, %v832
  %v834 = vpop.f32.mrf.mxu0
  %835 = vdwg.mxu0
  %v836 = vadd.f32 %v822, %v833
  %v837 = vtanh.pop %v836
  %v838 = vpack.c.bf16 %v837, %v837
  %839 = vmatpush.bf16.msra.mxu0 %v112
  %840 = vmatpush.bf16.msra.mxu0 %v111
  %841 = vmatpush.bf16.msra.mxu0 %v110
  %842 = vmatpush.bf16.msra.mxu0 %v109
  %843 = vmatpush.bf16.msra.mxu0 %v108
  %844 = vmatpush.bf16.msra.mxu0 %v107
  %845 = vmatpush.bf16.msra.mxu0 %v106
  %846 = vmatpush.bf16.msra.mxu0 %v105
  %847 = vmatmul.bf16.gmra.mxu0 %v838
  %v848 = vpop.f32.mrf.mxu0
  %v849 = vadd.f32 %v71, %v848
  %v850 = vpop.f32.mrf.mxu0
  %851 = vdwg.mxu0
  %852 = vmatpush.bf16.msra.mxu0 %v255
  %853 = vmatpush.bf16.msra.mxu0 %v254
  %854 = vmatpush.bf16.msra.mxu0 %v253
  %855 = vmatpush.bf16.msra.mxu0 %v252
  %856 = vmatpush.bf16.msra.mxu0 %v251
  %857 = vmatpush.bf16.msra.mxu0 %v250
  %858 = vmatpush.bf16.msra.mxu0 %v249
  %859 = vmatpush.bf16.msra.mxu0 %v248
  %860 = vmatmul.bf16.gmra.mxu0 %v818
  %v861 = vpop.f32.mrf.mxu0
  %v862 = vadd.f32 0.0, %v861
  %v863 = vpop.f32.mrf.mxu0
  %864 = vdwg.mxu0
  %v865 = vadd.f32 %v849, %v862
  %v866 = vtanh.pop %v865
  %v867 = vpack.c.bf16 %v866, %v866
  %s868 = scalar_lea.vmem %s4, 104
  %869 = vst [vmem:[%s868] sm:$0xff] %v866
  %s870 = scalar_lea.vmem %s0, 112
  %v871 = vld [vmem:[%s870] sm:$0xff]
  %872 = vmatpush.bf16.msra.mxu0 %v178
  %873 = vmatpush.bf16.msra.mxu0 %v177
  %874 = vmatpush.bf16.msra.mxu0 %v176
  %875 = vmatpush.bf16.msra.mxu0 %v175
  %876 = vmatpush.bf16.msra.mxu0 %v174
  %877 = vmatpush.bf16.msra.mxu0 %v173
  %878 = vmatpush.bf16.msra.mxu0 %v172
  %879 = vmatpush.bf16.msra.mxu0 %v171
  %880 = vmatmul.bf16.gmra.mxu0 %v838
  %v881 = vpop.f32.mrf.mxu0
  %v882 = vadd.f32 0.0, %v881
  %v883 = vpop.f32.mrf.mxu0
  %884 = vdwg.mxu0
  %v885 = vadd.f32 %v871, %v882
  %v886 = vtanh.pop %v885
  %v887 = vpack.c.bf16 %v886, %v886
  %888 = vmatpush.bf16.msra.mxu0 %v112
  %889 = vmatpush.bf16.msra.mxu0 %v111
  %890 = vmatpush.bf16.msra.mxu0 %v110
  %891 = vmatpush.bf16.msra.mxu0 %v109
  %892 = vmatpush.bf16.msra.mxu0 %v108
  %893 = vmatpush.bf16.msra.mxu0 %v107
  %894 = vmatpush.bf16.msra.mxu0 %v106
  %895 = vmatpush.bf16.msra.mxu0 %v105
  %896 = vmatmul.bf16.gmra.mxu0 %v887
  %v897 = vpop.f32.mrf.mxu0
  %v898 = vadd.f32 %v71, %v897
  %v899 = vpop.f32.mrf.mxu0
  %900 = vdwg.mxu0
  %901 = vmatpush.bf16.msra.mxu0 %v255
  %902 = vmatpush.bf16.msra.mxu0 %v254
  %903 = vmatpush.bf16.msra.mxu0 %v253
  %904 = vmatpush.bf16.msra.mxu0 %v252
  %905 = vmatpush.bf16.msra.mxu0 %v251
  %906 = vmatpush.bf16.msra.mxu0 %v250
  %907 = vmatpush.bf16.msra.mxu0 %v249
  %908 = vmatpush.bf16.msra.mxu0 %v248
  %909 = vmatmul.bf16.gmra.mxu0 %v867
  %v910 = vpop.f32.mrf.mxu0
  %v911 = vadd.f32 0.0, %v910
  %v912 = vpop.f32.mrf.mxu0
  %913 = vdwg.mxu0
  %v914 = vadd.f32 %v898, %v911
  %v915 = vtanh.pop %v914
  %v916 = vpack.c.bf16 %v915, %v915
  %s917 = scalar_lea.vmem %s4, 112
  %918 = vst [vmem:[%s917] sm:$0xff] %v915
  %s919 = scalar_lea.vmem %s0, 120
  %v920 = vld [vmem:[%s919] sm:$0xff]
  %921 = vmatpush.bf16.msra.mxu0 %v178
  %922 = vmatpush.bf16.msra.mxu0 %v177
  %923 = vmatpush.bf16.msra.mxu0 %v176
  %924 = vmatpush.bf16.msra.mxu0 %v175
  %925 = vmatpush.bf16.msra.mxu0 %v174
  %926 = vmatpush.bf16.msra.mxu0 %v173
  %927 = vmatpush.bf16.msra.mxu0 %v172
  %928 = vmatpush.bf16.msra.mxu0 %v171
  %929 = vmatmul.bf16.gmra.mxu0 %v887
  %v930 = vpop.f32.mrf.mxu0
  %v931 = vadd.f32 0.0, %v930
  %v932 = vpop.f32.mrf.mxu0
  %933 = vdwg.mxu0
  %v934 = vadd.f32 %v920, %v931
  %v935 = vtanh.pop %v934
  %v936 = vpack.c.bf16 %v935, %v935
  %937 = vmatpush.bf16.msra.mxu0 %v112
  %938 = vmatpush.bf16.msra.mxu0 %v111
  %939 = vmatpush.bf16.msra.mxu0 %v110
  %940 = vmatpush.bf16.msra.mxu0 %v109
  %941 = vmatpush.bf16.msra.mxu0 %v108
  %942 = vmatpush.bf16.msra.mxu0 %v107
  %943 = vmatpush.bf16.msra.mxu0 %v106
  %944 = vmatpush.bf16.msra.mxu0 %v105
  %945 = vmatmul.bf16.gmra.mxu0 %v936
  %v946 = vpop.f32.mrf.mxu0
  %v947 = vadd.f32 %v71, %v946
  %v948 = vpop.f32.mrf.mxu0
  %949 = vdwg.mxu0
  %950 = vmatpush.bf16.msra.mxu0 %v255
  %951 = vmatpush.bf16.msra.mxu0 %v254
  %952 = vmatpush.bf16.msra.mxu0 %v253
  %953 = vmatpush.bf16.msra.mxu0 %v252
  %954 = vmatpush.bf16.msra.mxu0 %v251
  %955 = vmatpush.bf16.msra.mxu0 %v250
  %956 = vmatpush.bf16.msra.mxu0 %v249
  %957 = vmatpush.bf16.msra.mxu0 %v248
  %958 = vmatmul.bf16.gmra.mxu0 %v916
  %v959 = vpop.f32.mrf.mxu0
  %v960 = vadd.f32 0.0, %v959
  %v961 = vpop.f32.mrf.mxu0
  %962 = vdwg.mxu0
  %v963 = vadd.f32 %v947, %v960
  %v964 = vtanh.pop %v963
  %s965 = scalar_lea.vmem %s4, 120
  %966 = vst [vmem:[%s965] sm:$0xff] %v964
  // Predicated region
  $region18: #{sasrec_forward.3} parent=0 // pred_check
    _
  $region19: #{sasrec_forward.3} parent=0 // pred_check_branch
    %968 = sbr.rel (0) target = $region21
  $region20: #{sasrec_forward.3} parent=0 // pred_region
    _
  $region21: #{sasrec_forward.3} parent=0 // pred_fallthru
    _
  // Predicated region
  $region22: #{sasrec_forward.3} parent=0 // pred_check
    _
  $region23: #{sasrec_forward.3} parent=0 // pred_check_branch
    %970 = sbr.rel (0) target = $region25
  $region24: #{sasrec_forward.3} parent=0 // pred_region
    _
  $region25: #{sasrec_forward.3} parent=0 // pred_fallthru
    _

</llo_original>
